<compile_context>
chip_gen: v6e
topology: v6e:2x2x1
jax: 0.10.0
libtpu: 0.0.40
codegen_flags: <defaults>
</compile_context>

<pallas_src>
import numpy as np
import jax
import jax.numpy as jnp
from jax import lax
from jax.experimental import pallas as pl
from jax.experimental.pallas import tpu as pltpu

EPS = 1e-5
NEG_SLOPE = 0.2


# ----------------------------- helpers ------------------------------------ #

def _leaky(v):
    return jnp.maximum(v, NEG_SLOPE * v)


def _w_to_mat(w, dtype=jnp.bfloat16):
    """PyTorch Conv2d weight (Cout, Cin, 4, 4) -> (16*Cin, Cout), rows ordered
    (kh, kw, ci) to match the in-kernel tap concatenation."""
    Cout, Cin, KH, KW = w.shape
    return (jnp.transpose(w, (2, 3, 1, 0))
            .reshape(KH * KW * Cin, Cout).astype(dtype))


# --------------------------- fused Pallas kernel --------------------------- #

def _make_kernel(N, H, W, d):
    H1, W1 = H // 2, W // 2          # conv1 out
    H3, W3 = H // 8, W // 8          # conv3 out (= spatial size of phase blocks)
    H4, W4 = H3 - 1, W3 - 1          # conv4 out
    H5, W5 = H4 - 1, W4 - 1          # conv5 out
    C1, C2, C3, C4 = d, 2 * d, 4 * d, 8 * d
    blk = N * H3 * W3                # rows per spatial-phase / parity block
    f32, bf16 = jnp.float32, jnp.bfloat16

    def bn_affine(y, g_ref, be_ref):
        # y: (M, C) pre-activation; train-mode batch stats (biased variance).
        m = jnp.mean(y, axis=0, keepdims=True)
        v = jnp.mean(jnp.square(y - m), axis=0, keepdims=True)
        s = g_ref[...] * lax.rsqrt(v + EPS)
        return y * s + (be_ref[...] - m * s)

    def pad_hw(t, C):
        # zero-pad one row/col on each side of the two spatial axes (f32 only)
        zr = jnp.zeros((N, 1, t.shape[2], C), f32)
        t = jnp.concatenate([zr, t, zr], axis=1)
        zc = jnp.zeros((N, t.shape[1], 1, C), f32)
        return jnp.concatenate([zc, t, zc], axis=2)

    def kernel(p1_ref, w1_ref, b1_ref,
               w2_ref, b2_ref, g2_ref, be2_ref,
               w3_ref, b3_ref, g3_ref, be3_ref,
               w4_ref, b4_ref, g4_ref, be4_ref,
               w5_ref, b5_ref, o_ref):
        # ---- conv1 (im2col built wrapper-side, phase-ordered rows) + LeakyReLU
        y1 = jnp.dot(p1_ref[...], w1_ref[...],
                     preferred_element_type=f32) + b1_ref[0]
        a1 = _leaky(y1)                      # (16*blk, C1), rows = (rh, rw, n, i, j)

        # mod-4 spatial-phase views of a1, zero-padded along both spatial axes
        phase = {}
        for rh in range(4):
            for rw in range(4):
                idx = rh * 4 + rw
                b = a1[idx * blk:(idx + 1) * blk, :].reshape(N, H3, W3, C1)
                phase[(rh, rw)] = pad_hw(b, C1)          # (N, H3+2, W3+2, C1)

        # ---- conv2 (stride 2): output rows grouped by parity (p, q) wrt conv3
        groups = []
        for p in range(2):
            for q in range(2):
                taps = []
                for kh in range(4):
                    th = 2 * p + kh - 1
                    dh, rh = th // 4, th % 4
                    for kw in range(4):
                        tw = 2 * q + kw - 1
                        dw, rw = tw // 4, tw % 4
                        taps.append(phase[(rh, rw)][:, 1 + dh:1 + dh + H3,
                                                    1 + dw:1 + dw + W3, :])
                g = jnp.concatenate(taps, axis=-1)        # (N, H3, W3, 16*C1)
                groups.append(g.reshape(blk, 16 * C1))
        p2 = jnp.concatenate(groups, axis=0).astype(bf16)  # (4*blk, 16*C1)
        y2 = jnp.dot(p2, w2_ref[...], preferred_element_type=f32) + b2_ref[0]
        a2 = _leaky(bn_affine(y2, g2_ref, be2_ref))         # (4*blk, C2)

        # ---- conv3 (stride 2): consumes a2's parity views via static row slices
        pads = {}
        for p in range(2):
            for q in range(2):
                u = a2[(p * 2 + q) * blk:(p * 2 + q + 1) * blk, :]
                u = u.reshape(N, H3, W3, C2)
                zr = jnp.zeros((N, 1, W3, C2), f32)
                u = jnp.concatenate([zr, u] if p == 1 else [u, zr], axis=1)
                zc = jnp.zeros((N, H3 + 1, 1, C2), f32)
                u = jnp.concatenate([zc, u] if q == 1 else [u, zc], axis=2)
                pads[(p, q)] = u                          # (N, H3+1, W3+1, C2)
        taps = []
        for kh in range(4):
            p, rs = (kh + 1) % 2, kh // 2
            for kw in range(4):
                q, cs = (kw + 1) % 2, kw // 2
                taps.append(pads[(p, q)][:, rs:rs + H3, cs:cs + W3, :])
        p3 = jnp.concatenate(taps, axis=-1).reshape(blk, 16 * C2).astype(bf16)
        y3 = jnp.dot(p3, w3_ref[...], preferred_element_type=f32) + b3_ref[0]
        a3 = _leaky(bn_affine(y3, g3_ref, be3_ref))          # (blk, C3)

        # ---- conv4 (stride 1, pad 1)
        x4 = pad_hw(a3.reshape(N, H3, W3, C3), C3)           # (N, H3+2, W3+2, C3)
        taps = [x4[:, kh:kh + H4, kw:kw + W4, :]
                for kh in range(4) for kw in range(4)]
        p4 = jnp.concatenate(taps, axis=-1).reshape(N * H4 * W4, 16 * C3)
        y4 = jnp.dot(p4.astype(bf16), w4_ref[...],
                     preferred_element_type=f32) + b4_ref[0]
        a4 = _leaky(bn_affine(y4, g4_ref, be4_ref))          # (N*H4*W4, C4)

        # ---- conv5 (Cout=1): VPU multiply-accumulate + single lane reduce, sigmoid
        x5 = pad_hw(a4.reshape(N, H4, W4, C4), C4)           # (N, H4+2, W4+2, C4)
        w5 = w5_ref[...]                                     # (16, C4)
        acc = jnp.zeros((N, H5, W5, C4), f32)
        for kh in range(4):
            for kw in range(4):
                acc = acc + x5[:, kh:kh + H5, kw:kw + W5, :] * w5[kh * 4 + kw]
        logits = jnp.sum(acc, axis=-1, keepdims=True) + b5_ref[0]   # (N, H5, W5, 1)
        o_ref[...] = 1.0 / (1.0 + jnp.exp(-logits))

    return kernel


# ------------------------------ forward ------------------------------------ #

def discriminator_forward(x_nchw, p):
    """Discriminator forward.  x_nchw: (N, 2, H, W) -> (N, 1, H/8-2, W/8-2)."""
    N, Cin, H, W = x_nchw.shape
    d = p["w1"].shape[0]
    assert H % 8 == 0 and W % 8 == 0 and H >= 24 and W >= 24
    H1, W1 = H // 2, W // 2
    H3, W3 = H // 8, W // 8
    H4, W4 = H3 - 1, W3 - 1
    H5, W5 = H4 - 1, W4 - 1
    C4 = 8 * d
    K1 = 16 * Cin

    # conv1 im2col built wrapper-side (tiny), rows ordered by output-phase
    # (rh = oh1 % 4, rw = ow1 % 4), then (n, i = oh1 // 4, j = ow1 // 4).
    x = jnp.transpose(x_nchw, (0, 2, 3, 1)).astype(jnp.float32)       # NHWC
    xp = jnp.pad(x, ((0, 0), (1, 1), (1, 1), (0, 0)))
    taps = [xp[:, kh:kh + 2 * H1:2, kw:kw + 2 * W1:2, :]
            for kh in range(4) for kw in range(4)]
    pm = jnp.concatenate(taps, axis=-1)                               # (N,H1,W1,K1)
    pm = pm.reshape(N, H3, 4, W3, 4, K1)                              # (N,i,rh,j,rw,K1)
    pm = jnp.transpose(pm, (2, 4, 0, 1, 3, 5))                        # (rh,rw,N,i,j,K1)
    p1 = pm.reshape(16 * N * H3 * W3, K1).astype(jnp.bfloat16)

    # conv5 weight as 16 per-tap channel vectors (kh*4+kw, c)
    w5t = jnp.transpose(p["w5"][0], (1, 2, 0)).reshape(16, C4).astype(jnp.float32)

    def vec(a):
        return a.reshape(1, -1).astype(jnp.float32)

    args = [
        p1,
        _w_to_mat(p["w1"]), vec(p["b1"]),
        _w_to_mat(p["w2"]), vec(p["b2"]), vec(p["g2"]), vec(p["be2"]),
        _w_to_mat(p["w3"]), vec(p["b3"]), vec(p["g3"]), vec(p["be3"]),
        _w_to_mat(p["w4"]), vec(p["b4"]), vec(p["g4"]), vec(p["be4"]),
        w5t, p["b5"].reshape(1, 1).astype(jnp.float32),
    ]

    y = pl.pallas_call(
        _make_kernel(N, H, W, d),
        out_shape=jax.ShapeDtypeStruct((N, H5, W5, 1), jnp.float32),
    )(*args)
    return jnp.transpose(y, (0, 3, 1, 2))                             # NCHW


# --------------------------- numpy reference ------------------------------- #

def _conv2d_ref(x, w, b, stride, pad=1):
    N, Cin, H, W = x.shape
    Cout, _, KH, KW = w.shape
    OH = (H + 2 * pad - KH) // stride + 1
    OW = (W + 2 * pad - KW) // stride + 1
    xp = np.zeros((N, Cin, H + 2 * pad, W + 2 * pad), x.dtype)
    xp[:, :, pad:pad + H, pad:pad + W] = x
    y = np.zeros((N, Cout, OH, OW), x.dtype) + b.reshape(1, Cout, 1, 1)
    for kh in range(KH):
        for kw in range(KW):
            patch = xp[:, :, kh:kh + stride * OH:stride, kw:kw + stride * OW:stride]
            y += np.einsum("ncij,oc->noij", patch, w[:, :, kh, kw])
    return y


def _bn_ref(y, g, bt):
    mean = y.mean(axis=(0, 2, 3), keepdims=True)
    var = y.var(axis=(0, 2, 3), keepdims=True)                 # biased (train mode)
    return ((y - mean) / np.sqrt(var + EPS) * g.reshape(1, -1, 1, 1)
            + bt.reshape(1, -1, 1, 1))


def _leaky_ref(v):
    return np.where(v >= 0, v, NEG_SLOPE * v)


def _reference(x, p):
    f = lambda a: np.asarray(a, np.float64)
    x1 = _leaky_ref(_conv2d_ref(f(x), f(p["w1"]), f(p["b1"]), 2))
    x2 = _leaky_ref(_bn_ref(_conv2d_ref(x1, f(p["w2"]), f(p["b2"]), 2),
                            f(p["g2"]), f(p["be2"])))
    x3 = _leaky_ref(_bn_ref(_conv2d_ref(x2, f(p["w3"]), f(p["b3"]), 2),
                            f(p["g3"]), f(p["be3"])))
    x4 = _leaky_ref(_bn_ref(_conv2d_ref(x3, f(p["w4"]), f(p["b4"]), 1),
                            f(p["g4"]), f(p["be4"])))
    logits = _conv2d_ref(x4, f(p["w5"]), f(p["b5"]), 1)
    return 1.0 / (1.0 + np.exp(-logits))


# -------------------------------- main ------------------------------------- #

if __name__ == "__main__":
    d = 16
    N, C0, H, W = 2, 2, 32, 32
    key = jax.random.PRNGKey(0)
    ks = jax.random.split(key, 14)

    def conv_init(kw_key, kb_key, cout, cin):
        s = 1.0 / np.sqrt(cin * 16.0)
        w = s * jax.random.normal(kw_key, (cout, cin, 4, 4), jnp.float32)
        b = s * jax.random.normal(kb_key, (cout,), jnp.float32)
        return w, b

    def bn_init(k, c):
        kg, kb = jax.random.split(k)
        g = 1.0 + 0.1 * jax.random.normal(kg, (c,), jnp.float32)
        bt = 0.1 * jax.random.normal(kb, (c,), jnp.float32)
        return g, bt

    w1, b1 = conv_init(ks[0], ks[1], d, C0)
    w2, b2 = conv_init(ks[2], ks[3], 2 * d, d)
    w3, b3 = conv_init(ks[4], ks[5], 4 * d, 2 * d)
    w4, b4 = conv_init(ks[6], ks[7], 8 * d, 4 * d)
    w5, b5 = conv_init(ks[8], ks[9], 1, 8 * d)
    g2, be2 = bn_init(ks[10], 2 * d)
    g3, be3 = bn_init(ks[11], 4 * d)
    g4, be4 = bn_init(ks[12], 8 * d)

    x = jax.random.normal(ks[13], (N, C0, H, W), jnp.float32)

    params = dict(w1=w1, b1=b1, w2=w2, b2=b2, g2=g2, be2=be2,
                  w3=w3, b3=b3, g3=g3, be3=be3,
                  w4=w4, b4=b4, g4=g4, be4=be4, w5=w5, b5=b5)

    fwd = jax.jit(discriminator_forward)
    y = jax.block_until_ready(fwd(x, params))
    assert y.shape == (N, 1, 2, 2), y.shape

    y_ref = _reference(np.asarray(x), {k: np.asarray(v) for k, v in params.items()})
    np.testing.assert_allclose(np.asarray(y), y_ref, rtol=2e-2, atol=2e-2)

    print("KERNEL_OK")
</pallas_src>

<mosaic_0001>
module attributes {stable_mosaic.version = 11 : i64} {
  func.func @kernel(%arg0: memref<512x32xbf16, #tpu.memory_space<vmem>>, %arg1: memref<32x16xbf16, #tpu.memory_space<vmem>>, %arg2: memref<1x16xf32, #tpu.memory_space<vmem>>, %arg3: memref<256x32xbf16, #tpu.memory_space<vmem>>, %arg4: memref<1x32xf32, #tpu.memory_space<vmem>>, %arg5: memref<1x32xf32, #tpu.memory_space<vmem>>, %arg6: memref<1x32xf32, #tpu.memory_space<vmem>>, %arg7: memref<512x64xbf16, #tpu.memory_space<vmem>>, %arg8: memref<1x64xf32, #tpu.memory_space<vmem>>, %arg9: memref<1x64xf32, #tpu.memory_space<vmem>>, %arg10: memref<1x64xf32, #tpu.memory_space<vmem>>, %arg11: memref<1024x128xbf16, #tpu.memory_space<vmem>>, %arg12: memref<1x128xf32, #tpu.memory_space<vmem>>, %arg13: memref<1x128xf32, #tpu.memory_space<vmem>>, %arg14: memref<1x128xf32, #tpu.memory_space<vmem>>, %arg15: memref<16x128xf32, #tpu.memory_space<vmem>>, %arg16: memref<1x1xf32, #tpu.memory_space<vmem>>, %arg17: memref<2x2x2x1xf32, #tpu.memory_space<vmem>>) attributes {dimension_semantics = [], scalar_prefetch = 0 : i64, scratch_operands = 0 : i64, tpu.core_type = #tpu.core_type<tc>} {
    %c0 = arith.constant 0 : index
    %c0_0 = arith.constant 0 : index
    %0 = vector.load %arg0[%c0, %c0_0] : memref<512x32xbf16, #tpu.memory_space<vmem>>, vector<512x32xbf16>
    %c0_1 = arith.constant 0 : index
    %c0_2 = arith.constant 0 : index
    %1 = vector.load %arg1[%c0_1, %c0_2] : memref<32x16xbf16, #tpu.memory_space<vmem>>, vector<32x16xbf16>
    %cst = arith.constant dense<0.000000e+00> : vector<512x16xf32>
    %2 = tpu.matmul %0, %1, %cst {dimension_numbers = #tpu.dot_dimension_numbers<[1], [0], [0], [1], [0, 0, 1, 1], [], []>} : vector<512x32xbf16>, vector<32x16xbf16>, vector<512x16xf32> -> vector<512x16xf32>
    %c0_3 = arith.constant 0 : index
    %c0_4 = arith.constant 0 : index
    %3 = vector.load %arg2[%c0_3, %c0_4] : memref<1x16xf32, #tpu.memory_space<vmem>>, vector<1x16xf32>
    %4 = vector.shape_cast %3 : vector<1x16xf32> to vector<16xf32>
    %5 = vector.shape_cast %4 : vector<16xf32> to vector<1x16xf32>
    %6 = vector.broadcast %5 : vector<1x16xf32> to vector<512x16xf32>
    %7 = arith.addf %2, %6 : vector<512x16xf32>
    %cst_5 = arith.constant 2.000000e-01 : f32
    %8 = vector.broadcast %cst_5 : f32 to vector<512x16xf32>
    %9 = arith.mulf %8, %7 : vector<512x16xf32>
    %10 = arith.maximumf %7, %9 : vector<512x16xf32>
    %11 = vector.extract_strided_slice %10 {offsets = [0, 0], sizes = [32, 16], strides = [1, 1]} : vector<512x16xf32> to vector<32x16xf32>
    %12 = vector.shape_cast %11 : vector<32x16xf32> to vector<2x4x4x16xf32>
    %cst_6 = arith.constant 0.000000e+00 : f32
    %13 = vector.broadcast %cst_6 : f32 to vector<2x1x4x16xf32>
    %14 = tpu.concatenate %13, %12, %13 in 1 : vector<2x1x4x16xf32>, vector<2x4x4x16xf32>, vector<2x1x4x16xf32> -> vector<2x6x4x16xf32>
    %cst_7 = arith.constant 0.000000e+00 : f32
    %15 = vector.broadcast %cst_7 : f32 to vector<2x6x1x16xf32>
    %16 = tpu.concatenate %15, %14, %15 in 2 : vector<2x6x1x16xf32>, vector<2x6x4x16xf32>, vector<2x6x1x16xf32> -> vector<2x6x6x16xf32>
    %17 = vector.extract_strided_slice %10 {offsets = [32, 0], sizes = [32, 16], strides = [1, 1]} : vector<512x16xf32> to vector<32x16xf32>
    %18 = vector.shape_cast %17 : vector<32x16xf32> to vector<2x4x4x16xf32>
    %cst_8 = arith.constant 0.000000e+00 : f32
    %19 = vector.broadcast %cst_8 : f32 to vector<2x1x4x16xf32>
    %20 = tpu.concatenate %19, %18, %19 in 1 : vector<2x1x4x16xf32>, vector<2x4x4x16xf32>, vector<2x1x4x16xf32> -> vector<2x6x4x16xf32>
    %cst_9 = arith.constant 0.000000e+00 : f32
    %21 = vector.broadcast %cst_9 : f32 to vector<2x6x1x16xf32>
    %22 = tpu.concatenate %21, %20, %21 in 2 : vector<2x6x1x16xf32>, vector<2x6x4x16xf32>, vector<2x6x1x16xf32> -> vector<2x6x6x16xf32>
    %23 = vector.extract_strided_slice %10 {offsets = [64, 0], sizes = [32, 16], strides = [1, 1]} : vector<512x16xf32> to vector<32x16xf32>
    %24 = vector.shape_cast %23 : vector<32x16xf32> to vector<2x4x4x16xf32>
    %cst_10 = arith.constant 0.000000e+00 : f32
    %25 = vector.broadcast %cst_10 : f32 to vector<2x1x4x16xf32>
    %26 = tpu.concatenate %25, %24, %25 in 1 : vector<2x1x4x16xf32>, vector<2x4x4x16xf32>, vector<2x1x4x16xf32> -> vector<2x6x4x16xf32>
    %cst_11 = arith.constant 0.000000e+00 : f32
    %27 = vector.broadcast %cst_11 : f32 to vector<2x6x1x16xf32>
    %28 = tpu.concatenate %27, %26, %27 in 2 : vector<2x6x1x16xf32>, vector<2x6x4x16xf32>, vector<2x6x1x16xf32> -> vector<2x6x6x16xf32>
    %29 = vector.extract_strided_slice %10 {offsets = [96, 0], sizes = [32, 16], strides = [1, 1]} : vector<512x16xf32> to vector<32x16xf32>
    %30 = vector.shape_cast %29 : vector<32x16xf32> to vector<2x4x4x16xf32>
    %cst_12 = arith.constant 0.000000e+00 : f32
    %31 = vector.broadcast %cst_12 : f32 to vector<2x1x4x16xf32>
    %32 = tpu.concatenate %31, %30, %31 in 1 : vector<2x1x4x16xf32>, vector<2x4x4x16xf32>, vector<2x1x4x16xf32> -> vector<2x6x4x16xf32>
    %cst_13 = arith.constant 0.000000e+00 : f32
    %33 = vector.broadcast %cst_13 : f32 to vector<2x6x1x16xf32>
    %34 = tpu.concatenate %33, %32, %33 in 2 : vector<2x6x1x16xf32>, vector<2x6x4x16xf32>, vector<2x6x1x16xf32> -> vector<2x6x6x16xf32>
    %35 = vector.extract_strided_slice %10 {offsets = [128, 0], sizes = [32, 16], strides = [1, 1]} : vector<512x16xf32> to vector<32x16xf32>
    %36 = vector.shape_cast %35 : vector<32x16xf32> to vector<2x4x4x16xf32>
    %cst_14 = arith.constant 0.000000e+00 : f32
    %37 = vector.broadcast %cst_14 : f32 to vector<2x1x4x16xf32>
    %38 = tpu.concatenate %37, %36, %37 in 1 : vector<2x1x4x16xf32>, vector<2x4x4x16xf32>, vector<2x1x4x16xf32> -> vector<2x6x4x16xf32>
    %cst_15 = arith.constant 0.000000e+00 : f32
    %39 = vector.broadcast %cst_15 : f32 to vector<2x6x1x16xf32>
    %40 = tpu.concatenate %39, %38, %39 in 2 : vector<2x6x1x16xf32>, vector<2x6x4x16xf32>, vector<2x6x1x16xf32> -> vector<2x6x6x16xf32>
    %41 = vector.extract_strided_slice %10 {offsets = [160, 0], sizes = [32, 16], strides = [1, 1]} : vector<512x16xf32> to vector<32x16xf32>
    %42 = vector.shape_cast %41 : vector<32x16xf32> to vector<2x4x4x16xf32>
    %cst_16 = arith.constant 0.000000e+00 : f32
    %43 = vector.broadcast %cst_16 : f32 to vector<2x1x4x16xf32>
    %44 = tpu.concatenate %43, %42, %43 in 1 : vector<2x1x4x16xf32>, vector<2x4x4x16xf32>, vector<2x1x4x16xf32> -> vector<2x6x4x16xf32>
    %cst_17 = arith.constant 0.000000e+00 : f32
    %45 = vector.broadcast %cst_17 : f32 to vector<2x6x1x16xf32>
    %46 = tpu.concatenate %45, %44, %45 in 2 : vector<2x6x1x16xf32>, vector<2x6x4x16xf32>, vector<2x6x1x16xf32> -> vector<2x6x6x16xf32>
    %47 = vector.extract_strided_slice %10 {offsets = [192, 0], sizes = [32, 16], strides = [1, 1]} : vector<512x16xf32> to vector<32x16xf32>
    %48 = vector.shape_cast %47 : vector<32x16xf32> to vector<2x4x4x16xf32>
    %cst_18 = arith.constant 0.000000e+00 : f32
    %49 = vector.broadcast %cst_18 : f32 to vector<2x1x4x16xf32>
    %50 = tpu.concatenate %49, %48, %49 in 1 : vector<2x1x4x16xf32>, vector<2x4x4x16xf32>, vector<2x1x4x16xf32> -> vector<2x6x4x16xf32>
    %cst_19 = arith.constant 0.000000e+00 : f32
    %51 = vector.broadcast %cst_19 : f32 to vector<2x6x1x16xf32>
    %52 = tpu.concatenate %51, %50, %51 in 2 : vector<2x6x1x16xf32>, vector<2x6x4x16xf32>, vector<2x6x1x16xf32> -> vector<2x6x6x16xf32>
    %53 = vector.extract_strided_slice %10 {offsets = [224, 0], sizes = [32, 16], strides = [1, 1]} : vector<512x16xf32> to vector<32x16xf32>
    %54 = vector.shape_cast %53 : vector<32x16xf32> to vector<2x4x4x16xf32>
    %cst_20 = arith.constant 0.000000e+00 : f32
    %55 = vector.broadcast %cst_20 : f32 to vector<2x1x4x16xf32>
    %56 = tpu.concatenate %55, %54, %55 in 1 : vector<2x1x4x16xf32>, vector<2x4x4x16xf32>, vector<2x1x4x16xf32> -> vector<2x6x4x16xf32>
    %cst_21 = arith.constant 0.000000e+00 : f32
    %57 = vector.broadcast %cst_21 : f32 to vector<2x6x1x16xf32>
    %58 = tpu.concatenate %57, %56, %57 in 2 : vector<2x6x1x16xf32>, vector<2x6x4x16xf32>, vector<2x6x1x16xf32> -> vector<2x6x6x16xf32>
    %59 = vector.extract_strided_slice %10 {offsets = [256, 0], sizes = [32, 16], strides = [1, 1]} : vector<512x16xf32> to vector<32x16xf32>
    %60 = vector.shape_cast %59 : vector<32x16xf32> to vector<2x4x4x16xf32>
    %cst_22 = arith.constant 0.000000e+00 : f32
    %61 = vector.broadcast %cst_22 : f32 to vector<2x1x4x16xf32>
    %62 = tpu.concatenate %61, %60, %61 in 1 : vector<2x1x4x16xf32>, vector<2x4x4x16xf32>, vector<2x1x4x16xf32> -> vector<2x6x4x16xf32>
    %cst_23 = arith.constant 0.000000e+00 : f32
    %63 = vector.broadcast %cst_23 : f32 to vector<2x6x1x16xf32>
    %64 = tpu.concatenate %63, %62, %63 in 2 : vector<2x6x1x16xf32>, vector<2x6x4x16xf32>, vector<2x6x1x16xf32> -> vector<2x6x6x16xf32>
    %65 = vector.extract_strided_slice %10 {offsets = [288, 0], sizes = [32, 16], strides = [1, 1]} : vector<512x16xf32> to vector<32x16xf32>
    %66 = vector.shape_cast %65 : vector<32x16xf32> to vector<2x4x4x16xf32>
    %cst_24 = arith.constant 0.000000e+00 : f32
    %67 = vector.broadcast %cst_24 : f32 to vector<2x1x4x16xf32>
    %68 = tpu.concatenate %67, %66, %67 in 1 : vector<2x1x4x16xf32>, vector<2x4x4x16xf32>, vector<2x1x4x16xf32> -> vector<2x6x4x16xf32>
    %cst_25 = arith.constant 0.000000e+00 : f32
    %69 = vector.broadcast %cst_25 : f32 to vector<2x6x1x16xf32>
    %70 = tpu.concatenate %69, %68, %69 in 2 : vector<2x6x1x16xf32>, vector<2x6x4x16xf32>, vector<2x6x1x16xf32> -> vector<2x6x6x16xf32>
    %71 = vector.extract_strided_slice %10 {offsets = [320, 0], sizes = [32, 16], strides = [1, 1]} : vector<512x16xf32> to vector<32x16xf32>
    %72 = vector.shape_cast %71 : vector<32x16xf32> to vector<2x4x4x16xf32>
    %cst_26 = arith.constant 0.000000e+00 : f32
    %73 = vector.broadcast %cst_26 : f32 to vector<2x1x4x16xf32>
    %74 = tpu.concatenate %73, %72, %73 in 1 : vector<2x1x4x16xf32>, vector<2x4x4x16xf32>, vector<2x1x4x16xf32> -> vector<2x6x4x16xf32>
    %cst_27 = arith.constant 0.000000e+00 : f32
    %75 = vector.broadcast %cst_27 : f32 to vector<2x6x1x16xf32>
    %76 = tpu.concatenate %75, %74, %75 in 2 : vector<2x6x1x16xf32>, vector<2x6x4x16xf32>, vector<2x6x1x16xf32> -> vector<2x6x6x16xf32>
    %77 = vector.extract_strided_slice %10 {offsets = [352, 0], sizes = [32, 16], strides = [1, 1]} : vector<512x16xf32> to vector<32x16xf32>
    %78 = vector.shape_cast %77 : vector<32x16xf32> to vector<2x4x4x16xf32>
    %cst_28 = arith.constant 0.000000e+00 : f32
    %79 = vector.broadcast %cst_28 : f32 to vector<2x1x4x16xf32>
    %80 = tpu.concatenate %79, %78, %79 in 1 : vector<2x1x4x16xf32>, vector<2x4x4x16xf32>, vector<2x1x4x16xf32> -> vector<2x6x4x16xf32>
    %cst_29 = arith.constant 0.000000e+00 : f32
    %81 = vector.broadcast %cst_29 : f32 to vector<2x6x1x16xf32>
    %82 = tpu.concatenate %81, %80, %81 in 2 : vector<2x6x1x16xf32>, vector<2x6x4x16xf32>, vector<2x6x1x16xf32> -> vector<2x6x6x16xf32>
    %83 = vector.extract_strided_slice %10 {offsets = [384, 0], sizes = [32, 16], strides = [1, 1]} : vector<512x16xf32> to vector<32x16xf32>
    %84 = vector.shape_cast %83 : vector<32x16xf32> to vector<2x4x4x16xf32>
    %cst_30 = arith.constant 0.000000e+00 : f32
    %85 = vector.broadcast %cst_30 : f32 to vector<2x1x4x16xf32>
    %86 = tpu.concatenate %85, %84, %85 in 1 : vector<2x1x4x16xf32>, vector<2x4x4x16xf32>, vector<2x1x4x16xf32> -> vector<2x6x4x16xf32>
    %cst_31 = arith.constant 0.000000e+00 : f32
    %87 = vector.broadcast %cst_31 : f32 to vector<2x6x1x16xf32>
    %88 = tpu.concatenate %87, %86, %87 in 2 : vector<2x6x1x16xf32>, vector<2x6x4x16xf32>, vector<2x6x1x16xf32> -> vector<2x6x6x16xf32>
    %89 = vector.extract_strided_slice %10 {offsets = [416, 0], sizes = [32, 16], strides = [1, 1]} : vector<512x16xf32> to vector<32x16xf32>
    %90 = vector.shape_cast %89 : vector<32x16xf32> to vector<2x4x4x16xf32>
    %cst_32 = arith.constant 0.000000e+00 : f32
    %91 = vector.broadcast %cst_32 : f32 to vector<2x1x4x16xf32>
    %92 = tpu.concatenate %91, %90, %91 in 1 : vector<2x1x4x16xf32>, vector<2x4x4x16xf32>, vector<2x1x4x16xf32> -> vector<2x6x4x16xf32>
    %cst_33 = arith.constant 0.000000e+00 : f32
    %93 = vector.broadcast %cst_33 : f32 to vector<2x6x1x16xf32>
    %94 = tpu.concatenate %93, %92, %93 in 2 : vector<2x6x1x16xf32>, vector<2x6x4x16xf32>, vector<2x6x1x16xf32> -> vector<2x6x6x16xf32>
    %95 = vector.extract_strided_slice %10 {offsets = [448, 0], sizes = [32, 16], strides = [1, 1]} : vector<512x16xf32> to vector<32x16xf32>
    %96 = vector.shape_cast %95 : vector<32x16xf32> to vector<2x4x4x16xf32>
    %cst_34 = arith.constant 0.000000e+00 : f32
    %97 = vector.broadcast %cst_34 : f32 to vector<2x1x4x16xf32>
    %98 = tpu.concatenate %97, %96, %97 in 1 : vector<2x1x4x16xf32>, vector<2x4x4x16xf32>, vector<2x1x4x16xf32> -> vector<2x6x4x16xf32>
    %cst_35 = arith.constant 0.000000e+00 : f32
    %99 = vector.broadcast %cst_35 : f32 to vector<2x6x1x16xf32>
    %100 = tpu.concatenate %99, %98, %99 in 2 : vector<2x6x1x16xf32>, vector<2x6x4x16xf32>, vector<2x6x1x16xf32> -> vector<2x6x6x16xf32>
    %101 = vector.extract_strided_slice %10 {offsets = [480, 0], sizes = [32, 16], strides = [1, 1]} : vector<512x16xf32> to vector<32x16xf32>
    %102 = vector.shape_cast %101 : vector<32x16xf32> to vector<2x4x4x16xf32>
    %cst_36 = arith.constant 0.000000e+00 : f32
    %103 = vector.broadcast %cst_36 : f32 to vector<2x1x4x16xf32>
    %104 = tpu.concatenate %103, %102, %103 in 1 : vector<2x1x4x16xf32>, vector<2x4x4x16xf32>, vector<2x1x4x16xf32> -> vector<2x6x4x16xf32>
    %cst_37 = arith.constant 0.000000e+00 : f32
    %105 = vector.broadcast %cst_37 : f32 to vector<2x6x1x16xf32>
    %106 = tpu.concatenate %105, %104, %105 in 2 : vector<2x6x1x16xf32>, vector<2x6x4x16xf32>, vector<2x6x1x16xf32> -> vector<2x6x6x16xf32>
    %107 = vector.extract_strided_slice %106 {offsets = [0, 0, 0, 0], sizes = [2, 4, 4, 16], strides = [1, 1, 1, 1]} : vector<2x6x6x16xf32> to vector<2x4x4x16xf32>
    %108 = vector.extract_strided_slice %88 {offsets = [0, 0, 1, 0], sizes = [2, 4, 4, 16], strides = [1, 1, 1, 1]} : vector<2x6x6x16xf32> to vector<2x4x4x16xf32>
    %109 = vector.extract_strided_slice %94 {offsets = [0, 0, 1, 0], sizes = [2, 4, 4, 16], strides = [1, 1, 1, 1]} : vector<2x6x6x16xf32> to vector<2x4x4x16xf32>
    %110 = vector.extract_strided_slice %100 {offsets = [0, 0, 1, 0], sizes = [2, 4, 4, 16], strides = [1, 1, 1, 1]} : vector<2x6x6x16xf32> to vector<2x4x4x16xf32>
    %111 = vector.extract_strided_slice %34 {offsets = [0, 1, 0, 0], sizes = [2, 4, 4, 16], strides = [1, 1, 1, 1]} : vector<2x6x6x16xf32> to vector<2x4x4x16xf32>
    %112 = vector.extract_strided_slice %16 {offsets = [0, 1, 1, 0], sizes = [2, 4, 4, 16], strides = [1, 1, 1, 1]} : vector<2x6x6x16xf32> to vector<2x4x4x16xf32>
    %113 = vector.extract_strided_slice %22 {offsets = [0, 1, 1, 0], sizes = [2, 4, 4, 16], strides = [1, 1, 1, 1]} : vector<2x6x6x16xf32> to vector<2x4x4x16xf32>
    %114 = vector.extract_strided_slice %28 {offsets = [0, 1, 1, 0], sizes = [2, 4, 4, 16], strides = [1, 1, 1, 1]} : vector<2x6x6x16xf32> to vector<2x4x4x16xf32>
    %115 = vector.extract_strided_slice %58 {offsets = [0, 1, 0, 0], sizes = [2, 4, 4, 16], strides = [1, 1, 1, 1]} : vector<2x6x6x16xf32> to vector<2x4x4x16xf32>
    %116 = vector.extract_strided_slice %40 {offsets = [0, 1, 1, 0], sizes = [2, 4, 4, 16], strides = [1, 1, 1, 1]} : vector<2x6x6x16xf32> to vector<2x4x4x16xf32>
    %117 = vector.extract_strided_slice %46 {offsets = [0, 1, 1, 0], sizes = [2, 4, 4, 16], strides = [1, 1, 1, 1]} : vector<2x6x6x16xf32> to vector<2x4x4x16xf32>
    %118 = vector.extract_strided_slice %52 {offsets = [0, 1, 1, 0], sizes = [2, 4, 4, 16], strides = [1, 1, 1, 1]} : vector<2x6x6x16xf32> to vector<2x4x4x16xf32>
    %119 = vector.extract_strided_slice %82 {offsets = [0, 1, 0, 0], sizes = [2, 4, 4, 16], strides = [1, 1, 1, 1]} : vector<2x6x6x16xf32> to vector<2x4x4x16xf32>
    %120 = vector.extract_strided_slice %64 {offsets = [0, 1, 1, 0], sizes = [2, 4, 4, 16], strides = [1, 1, 1, 1]} : vector<2x6x6x16xf32> to vector<2x4x4x16xf32>
    %121 = vector.extract_strided_slice %70 {offsets = [0, 1, 1, 0], sizes = [2, 4, 4, 16], strides = [1, 1, 1, 1]} : vector<2x6x6x16xf32> to vector<2x4x4x16xf32>
    %122 = vector.extract_strided_slice %76 {offsets = [0, 1, 1, 0], sizes = [2, 4, 4, 16], strides = [1, 1, 1, 1]} : vector<2x6x6x16xf32> to vector<2x4x4x16xf32>
    %123 = tpu.concatenate %107, %108, %109, %110, %111, %112, %113, %114, %115, %116, %117, %118, %119, %120, %121, %122 in 3 : vector<2x4x4x16xf32>, vector<2x4x4x16xf32>, vector<2x4x4x16xf32>, vector<2x4x4x16xf32>, vector<2x4x4x16xf32>, vector<2x4x4x16xf32>, vector<2x4x4x16xf32>, vector<2x4x4x16xf32>, vector<2x4x4x16xf32>, vector<2x4x4x16xf32>, vector<2x4x4x16xf32>, vector<2x4x4x16xf32>, vector<2x4x4x16xf32>, vector<2x4x4x16xf32>, vector<2x4x4x16xf32>, vector<2x4x4x16xf32> -> vector<2x4x4x256xf32>
    %124 = vector.shape_cast %123 : vector<2x4x4x256xf32> to vector<32x256xf32>
    %125 = vector.extract_strided_slice %94 {offsets = [0, 0, 1, 0], sizes = [2, 4, 4, 16], strides = [1, 1, 1, 1]} : vector<2x6x6x16xf32> to vector<2x4x4x16xf32>
    %126 = vector.extract_strided_slice %100 {offsets = [0, 0, 1, 0], sizes = [2, 4, 4, 16], strides = [1, 1, 1, 1]} : vector<2x6x6x16xf32> to vector<2x4x4x16xf32>
    %127 = vector.extract_strided_slice %106 {offsets = [0, 0, 1, 0], sizes = [2, 4, 4, 16], strides = [1, 1, 1, 1]} : vector<2x6x6x16xf32> to vector<2x4x4x16xf32>
    %128 = vector.extract_strided_slice %88 {offsets = [0, 0, 2, 0], sizes = [2, 4, 4, 16], strides = [1, 1, 1, 1]} : vector<2x6x6x16xf32> to vector<2x4x4x16xf32>
    %129 = vector.extract_strided_slice %22 {offsets = [0, 1, 1, 0], sizes = [2, 4, 4, 16], strides = [1, 1, 1, 1]} : vector<2x6x6x16xf32> to vector<2x4x4x16xf32>
    %130 = vector.extract_strided_slice %28 {offsets = [0, 1, 1, 0], sizes = [2, 4, 4, 16], strides = [1, 1, 1, 1]} : vector<2x6x6x16xf32> to vector<2x4x4x16xf32>
    %131 = vector.extract_strided_slice %34 {offsets = [0, 1, 1, 0], sizes = [2, 4, 4, 16], strides = [1, 1, 1, 1]} : vector<2x6x6x16xf32> to vector<2x4x4x16xf32>
    %132 = vector.extract_strided_slice %16 {offsets = [0, 1, 2, 0], sizes = [2, 4, 4, 16], strides = [1, 1, 1, 1]} : vector<2x6x6x16xf32> to vector<2x4x4x16xf32>
    %133 = vector.extract_strided_slice %46 {offsets = [0, 1, 1, 0], sizes = [2, 4, 4, 16], strides = [1, 1, 1, 1]} : vector<2x6x6x16xf32> to vector<2x4x4x16xf32>
    %134 = vector.extract_strided_slice %52 {offsets = [0, 1, 1, 0], sizes = [2, 4, 4, 16], strides = [1, 1, 1, 1]} : vector<2x6x6x16xf32> to vector<2x4x4x16xf32>
    %135 = vector.extract_strided_slice %58 {offsets = [0, 1, 1, 0], sizes = [2, 4, 4, 16], strides = [1, 1, 1, 1]} : vector<2x6x6x16xf32> to vector<2x4x4x16xf32>
    %136 = vector.extract_strided_slice %40 {offsets = [0, 1, 2, 0], sizes = [2, 4, 4, 16], strides = [1, 1, 1, 1]} : vector<2x6x6x16xf32> to vector<2x4x4x16xf32>
    %137 = vector.extract_strided_slice %70 {offsets = [0, 1, 1, 0], sizes = [2, 4, 4, 16], strides = [1, 1, 1, 1]} : vector<2x6x6x16xf32> to vector<2x4x4x16xf32>
    %138 = vector.extract_strided_slice %76 {offsets = [0, 1, 1, 0], sizes = [2, 4, 4, 16], strides = [1, 1, 1, 1]} : vector<2x6x6x16xf32> to vector<2x4x4x16xf32>
    %139 = vector.extract_strided_slice %82 {offsets = [0, 1, 1, 0], sizes = [2, 4, 4, 16], strides = [1, 1, 1, 1]} : vector<2x6x6x16xf32> to vector<2x4x4x16xf32>
    %140 = vector.extract_strided_slice %64 {offsets = [0, 1, 2, 0], sizes = [2, 4, 4, 16], strides = [1, 1, 1, 1]} : vector<2x6x6x16xf32> to vector<2x4x4x16xf32>
    %141 = tpu.concatenate %125, %126, %127, %128, %129, %130, %131, %132, %133, %134, %135, %136, %137, %138, %139, %140 in 3 : vector<2x4x4x16xf32>, vector<2x4x4x16xf32>, vector<2x4x4x16xf32>, vector<2x4x4x16xf32>, vector<2x4x4x16xf32>, vector<2x4x4x16xf32>, vector<2x4x4x16xf32>, vector<2x4x4x16xf32>, vector<2x4x4x16xf32>, vector<2x4x4x16xf32>, vector<2x4x4x16xf32>, vector<2x4x4x16xf32>, vector<2x4x4x16xf32>, vector<2x4x4x16xf32>, vector<2x4x4x16xf32>, vector<2x4x4x16xf32> -> vector<2x4x4x256xf32>
    %142 = vector.shape_cast %141 : vector<2x4x4x256xf32> to vector<32x256xf32>
    %143 = vector.extract_strided_slice %58 {offsets = [0, 1, 0, 0], sizes = [2, 4, 4, 16], strides = [1, 1, 1, 1]} : vector<2x6x6x16xf32> to vector<2x4x4x16xf32>
    %144 = vector.extract_strided_slice %40 {offsets = [0, 1, 1, 0], sizes = [2, 4, 4, 16], strides = [1, 1, 1, 1]} : vector<2x6x6x16xf32> to vector<2x4x4x16xf32>
    %145 = vector.extract_strided_slice %46 {offsets = [0, 1, 1, 0], sizes = [2, 4, 4, 16], strides = [1, 1, 1, 1]} : vector<2x6x6x16xf32> to vector<2x4x4x16xf32>
    %146 = vector.extract_strided_slice %52 {offsets = [0, 1, 1, 0], sizes = [2, 4, 4, 16], strides = [1, 1, 1, 1]} : vector<2x6x6x16xf32> to vector<2x4x4x16xf32>
    %147 = vector.extract_strided_slice %82 {offsets = [0, 1, 0, 0], sizes = [2, 4, 4, 16], strides = [1, 1, 1, 1]} : vector<2x6x6x16xf32> to vector<2x4x4x16xf32>
    %148 = vector.extract_strided_slice %64 {offsets = [0, 1, 1, 0], sizes = [2, 4, 4, 16], strides = [1, 1, 1, 1]} : vector<2x6x6x16xf32> to vector<2x4x4x16xf32>
    %149 = vector.extract_strided_slice %70 {offsets = [0, 1, 1, 0], sizes = [2, 4, 4, 16], strides = [1, 1, 1, 1]} : vector<2x6x6x16xf32> to vector<2x4x4x16xf32>
    %150 = vector.extract_strided_slice %76 {offsets = [0, 1, 1, 0], sizes = [2, 4, 4, 16], strides = [1, 1, 1, 1]} : vector<2x6x6x16xf32> to vector<2x4x4x16xf32>
    %151 = vector.extract_strided_slice %106 {offsets = [0, 1, 0, 0], sizes = [2, 4, 4, 16], strides = [1, 1, 1, 1]} : vector<2x6x6x16xf32> to vector<2x4x4x16xf32>
    %152 = vector.extract_strided_slice %88 {offsets = [0, 1, 1, 0], sizes = [2, 4, 4, 16], strides = [1, 1, 1, 1]} : vector<2x6x6x16xf32> to vector<2x4x4x16xf32>
    %153 = vector.extract_strided_slice %94 {offsets = [0, 1, 1, 0], sizes = [2, 4, 4, 16], strides = [1, 1, 1, 1]} : vector<2x6x6x16xf32> to vector<2x4x4x16xf32>
    %154 = vector.extract_strided_slice %100 {offsets = [0, 1, 1, 0], sizes = [2, 4, 4, 16], strides = [1, 1, 1, 1]} : vector<2x6x6x16xf32> to vector<2x4x4x16xf32>
    %155 = vector.extract_strided_slice %34 {offsets = [0, 2, 0, 0], sizes = [2, 4, 4, 16], strides = [1, 1, 1, 1]} : vector<2x6x6x16xf32> to vector<2x4x4x16xf32>
    %156 = vector.extract_strided_slice %16 {offsets = [0, 2, 1, 0], sizes = [2, 4, 4, 16], strides = [1, 1, 1, 1]} : vector<2x6x6x16xf32> to vector<2x4x4x16xf32>
    %157 = vector.extract_strided_slice %22 {offsets = [0, 2, 1, 0], sizes = [2, 4, 4, 16], strides = [1, 1, 1, 1]} : vector<2x6x6x16xf32> to vector<2x4x4x16xf32>
    %158 = vector.extract_strided_slice %28 {offsets = [0, 2, 1, 0], sizes = [2, 4, 4, 16], strides = [1, 1, 1, 1]} : vector<2x6x6x16xf32> to vector<2x4x4x16xf32>
    %159 = tpu.concatenate %143, %144, %145, %146, %147, %148, %149, %150, %151, %152, %153, %154, %155, %156, %157, %158 in 3 : vector<2x4x4x16xf32>, vector<2x4x4x16xf32>, vector<2x4x4x16xf32>, vector<2x4x4x16xf32>, vector<2x4x4x16xf32>, vector<2x4x4x16xf32>, vector<2x4x4x16xf32>, vector<2x4x4x16xf32>, vector<2x4x4x16xf32>, vector<2x4x4x16xf32>, vector<2x4x4x16xf32>, vector<2x4x4x16xf32>, vector<2x4x4x16xf32>, vector<2x4x4x16xf32>, vector<2x4x4x16xf32>, vector<2x4x4x16xf32> -> vector<2x4x4x256xf32>
    %160 = vector.shape_cast %159 : vector<2x4x4x256xf32> to vector<32x256xf32>
    %161 = vector.extract_strided_slice %46 {offsets = [0, 1, 1, 0], sizes = [2, 4, 4, 16], strides = [1, 1, 1, 1]} : vector<2x6x6x16xf32> to vector<2x4x4x16xf32>
    %162 = vector.extract_strided_slice %52 {offsets = [0, 1, 1, 0], sizes = [2, 4, 4, 16], strides = [1, 1, 1, 1]} : vector<2x6x6x16xf32> to vector<2x4x4x16xf32>
    %163 = vector.extract_strided_slice %58 {offsets = [0, 1, 1, 0], sizes = [2, 4, 4, 16], strides = [1, 1, 1, 1]} : vector<2x6x6x16xf32> to vector<2x4x4x16xf32>
    %164 = vector.extract_strided_slice %40 {offsets = [0, 1, 2, 0], sizes = [2, 4, 4, 16], strides = [1, 1, 1, 1]} : vector<2x6x6x16xf32> to vector<2x4x4x16xf32>
    %165 = vector.extract_strided_slice %70 {offsets = [0, 1, 1, 0], sizes = [2, 4, 4, 16], strides = [1, 1, 1, 1]} : vector<2x6x6x16xf32> to vector<2x4x4x16xf32>
    %166 = vector.extract_strided_slice %76 {offsets = [0, 1, 1, 0], sizes = [2, 4, 4, 16], strides = [1, 1, 1, 1]} : vector<2x6x6x16xf32> to vector<2x4x4x16xf32>
    %167 = vector.extract_strided_slice %82 {offsets = [0, 1, 1, 0], sizes = [2, 4, 4, 16], strides = [1, 1, 1, 1]} : vector<2x6x6x16xf32> to vector<2x4x4x16xf32>
    %168 = vector.extract_strided_slice %64 {offsets = [0, 1, 2, 0], sizes = [2, 4, 4, 16], strides = [1, 1, 1, 1]} : vector<2x6x6x16xf32> to vector<2x4x4x16xf32>
    %169 = vector.extract_strided_slice %94 {offsets = [0, 1, 1, 0], sizes = [2, 4, 4, 16], strides = [1, 1, 1, 1]} : vector<2x6x6x16xf32> to vector<2x4x4x16xf32>
    %170 = vector.extract_strided_slice %100 {offsets = [0, 1, 1, 0], sizes = [2, 4, 4, 16], strides = [1, 1, 1, 1]} : vector<2x6x6x16xf32> to vector<2x4x4x16xf32>
    %171 = vector.extract_strided_slice %106 {offsets = [0, 1, 1, 0], sizes = [2, 4, 4, 16], strides = [1, 1, 1, 1]} : vector<2x6x6x16xf32> to vector<2x4x4x16xf32>
    %172 = vector.extract_strided_slice %88 {offsets = [0, 1, 2, 0], sizes = [2, 4, 4, 16], strides = [1, 1, 1, 1]} : vector<2x6x6x16xf32> to vector<2x4x4x16xf32>
    %173 = vector.extract_strided_slice %22 {offsets = [0, 2, 1, 0], sizes = [2, 4, 4, 16], strides = [1, 1, 1, 1]} : vector<2x6x6x16xf32> to vector<2x4x4x16xf32>
    %174 = vector.extract_strided_slice %28 {offsets = [0, 2, 1, 0], sizes = [2, 4, 4, 16], strides = [1, 1, 1, 1]} : vector<2x6x6x16xf32> to vector<2x4x4x16xf32>
    %175 = vector.extract_strided_slice %34 {offsets = [0, 2, 1, 0], sizes = [2, 4, 4, 16], strides = [1, 1, 1, 1]} : vector<2x6x6x16xf32> to vector<2x4x4x16xf32>
    %176 = vector.extract_strided_slice %16 {offsets = [0, 2, 2, 0], sizes = [2, 4, 4, 16], strides = [1, 1, 1, 1]} : vector<2x6x6x16xf32> to vector<2x4x4x16xf32>
    %177 = tpu.concatenate %161, %162, %163, %164, %165, %166, %167, %168, %169, %170, %171, %172, %173, %174, %175, %176 in 3 : vector<2x4x4x16xf32>, vector<2x4x4x16xf32>, vector<2x4x4x16xf32>, vector<2x4x4x16xf32>, vector<2x4x4x16xf32>, vector<2x4x4x16xf32>, vector<2x4x4x16xf32>, vector<2x4x4x16xf32>, vector<2x4x4x16xf32>, vector<2x4x4x16xf32>, vector<2x4x4x16xf32>, vector<2x4x4x16xf32>, vector<2x4x4x16xf32>, vector<2x4x4x16xf32>, vector<2x4x4x16xf32>, vector<2x4x4x16xf32> -> vector<2x4x4x256xf32>
    %178 = vector.shape_cast %177 : vector<2x4x4x256xf32> to vector<32x256xf32>
    %179 = tpu.concatenate %124, %142, %160, %178 in 0 : vector<32x256xf32>, vector<32x256xf32>, vector<32x256xf32>, vector<32x256xf32> -> vector<128x256xf32>
    %180 = arith.truncf %179 : vector<128x256xf32> to vector<128x256xbf16>
    %c0_38 = arith.constant 0 : index
    %c0_39 = arith.constant 0 : index
    %181 = vector.load %arg3[%c0_38, %c0_39] : memref<256x32xbf16, #tpu.memory_space<vmem>>, vector<256x32xbf16>
    %cst_40 = arith.constant dense<0.000000e+00> : vector<128x32xf32>
    %182 = tpu.matmul %180, %181, %cst_40 {dimension_numbers = #tpu.dot_dimension_numbers<[1], [0], [0], [1], [0, 0, 1, 1], [], []>} : vector<128x256xbf16>, vector<256x32xbf16>, vector<128x32xf32> -> vector<128x32xf32>
    %c0_41 = arith.constant 0 : index
    %c0_42 = arith.constant 0 : index
    %183 = vector.load %arg4[%c0_41, %c0_42] : memref<1x32xf32, #tpu.memory_space<vmem>>, vector<1x32xf32>
    %184 = vector.shape_cast %183 : vector<1x32xf32> to vector<32xf32>
    %185 = vector.shape_cast %184 : vector<32xf32> to vector<1x32xf32>
    %186 = vector.broadcast %185 : vector<1x32xf32> to vector<128x32xf32>
    %187 = arith.addf %182, %186 : vector<128x32xf32>
    %cst_43 = arith.constant dense<0.000000e+00> : vector<32xf32>
    %188 = vector.multi_reduction <add>, %187, %cst_43 [0] : vector<128x32xf32> to vector<32xf32>
    %189 = vector.shape_cast %188 : vector<32xf32> to vector<1x32xf32>
    %cst_44 = arith.constant 1.280000e+02 : f32
    %190 = vector.broadcast %cst_44 : f32 to vector<1x32xf32>
    %191 = arith.divf %189, %190 : vector<1x32xf32>
    %192 = vector.broadcast %191 : vector<1x32xf32> to vector<128x32xf32>
    %193 = arith.subf %187, %192 : vector<128x32xf32>
    %194 = arith.mulf %193, %193 : vector<128x32xf32>
    %cst_45 = arith.constant dense<0.000000e+00> : vector<32xf32>
    %195 = vector.multi_reduction <add>, %194, %cst_45 [0] : vector<128x32xf32> to vector<32xf32>
    %196 = vector.shape_cast %195 : vector<32xf32> to vector<1x32xf32>
    %cst_46 = arith.constant 1.280000e+02 : f32
    %197 = vector.broadcast %cst_46 : f32 to vector<1x32xf32>
    %198 = arith.divf %196, %197 : vector<1x32xf32>
    %c0_47 = arith.constant 0 : index
    %c0_48 = arith.constant 0 : index
    %199 = vector.load %arg5[%c0_47, %c0_48] : memref<1x32xf32, #tpu.memory_space<vmem>>, vector<1x32xf32>
    %cst_49 = arith.constant 9.99999974E-6 : f32
    %200 = vector.broadcast %cst_49 : f32 to vector<1x32xf32>
    %201 = arith.addf %198, %200 : vector<1x32xf32>
    %202 = math.rsqrt %201 : vector<1x32xf32>
    %203 = arith.mulf %199, %202 : vector<1x32xf32>
    %204 = vector.broadcast %203 : vector<1x32xf32> to vector<128x32xf32>
    %205 = arith.mulf %187, %204 : vector<128x32xf32>
    %c0_50 = arith.constant 0 : index
    %c0_51 = arith.constant 0 : index
    %206 = vector.load %arg6[%c0_50, %c0_51] : memref<1x32xf32, #tpu.memory_space<vmem>>, vector<1x32xf32>
    %207 = arith.mulf %191, %203 : vector<1x32xf32>
    %208 = arith.subf %206, %207 : vector<1x32xf32>
    %209 = vector.broadcast %208 : vector<1x32xf32> to vector<128x32xf32>
    %210 = arith.addf %205, %209 : vector<128x32xf32>
    %cst_52 = arith.constant 2.000000e-01 : f32
    %211 = vector.broadcast %cst_52 : f32 to vector<128x32xf32>
    %212 = arith.mulf %211, %210 : vector<128x32xf32>
    %213 = arith.maximumf %210, %212 : vector<128x32xf32>
    %214 = vector.extract_strided_slice %213 {offsets = [0, 0], sizes = [32, 32], strides = [1, 1]} : vector<128x32xf32> to vector<32x32xf32>
    %215 = vector.shape_cast %214 : vector<32x32xf32> to vector<2x4x4x32xf32>
    %cst_53 = arith.constant 0.000000e+00 : f32
    %216 = vector.broadcast %cst_53 : f32 to vector<2x1x4x32xf32>
    %217 = tpu.concatenate %215, %216 in 1 : vector<2x4x4x32xf32>, vector<2x1x4x32xf32> -> vector<2x5x4x32xf32>
    %cst_54 = arith.constant 0.000000e+00 : f32
    %218 = vector.broadcast %cst_54 : f32 to vector<2x5x1x32xf32>
    %219 = tpu.concatenate %217, %218 in 2 : vector<2x5x4x32xf32>, vector<2x5x1x32xf32> -> vector<2x5x5x32xf32>
    %220 = vector.extract_strided_slice %213 {offsets = [32, 0], sizes = [32, 32], strides = [1, 1]} : vector<128x32xf32> to vector<32x32xf32>
    %221 = vector.shape_cast %220 : vector<32x32xf32> to vector<2x4x4x32xf32>
    %cst_55 = arith.constant 0.000000e+00 : f32
    %222 = vector.broadcast %cst_55 : f32 to vector<2x1x4x32xf32>
    %223 = tpu.concatenate %221, %222 in 1 : vector<2x4x4x32xf32>, vector<2x1x4x32xf32> -> vector<2x5x4x32xf32>
    %cst_56 = arith.constant 0.000000e+00 : f32
    %224 = vector.broadcast %cst_56 : f32 to vector<2x5x1x32xf32>
    %225 = tpu.concatenate %224, %223 in 2 : vector<2x5x1x32xf32>, vector<2x5x4x32xf32> -> vector<2x5x5x32xf32>
    %226 = vector.extract_strided_slice %213 {offsets = [64, 0], sizes = [32, 32], strides = [1, 1]} : vector<128x32xf32> to vector<32x32xf32>
    %227 = vector.shape_cast %226 : vector<32x32xf32> to vector<2x4x4x32xf32>
    %cst_57 = arith.constant 0.000000e+00 : f32
    %228 = vector.broadcast %cst_57 : f32 to vector<2x1x4x32xf32>
    %229 = tpu.concatenate %228, %227 in 1 : vector<2x1x4x32xf32>, vector<2x4x4x32xf32> -> vector<2x5x4x32xf32>
    %cst_58 = arith.constant 0.000000e+00 : f32
    %230 = vector.broadcast %cst_58 : f32 to vector<2x5x1x32xf32>
    %231 = tpu.concatenate %229, %230 in 2 : vector<2x5x4x32xf32>, vector<2x5x1x32xf32> -> vector<2x5x5x32xf32>
    %232 = vector.extract_strided_slice %213 {offsets = [96, 0], sizes = [32, 32], strides = [1, 1]} : vector<128x32xf32> to vector<32x32xf32>
    %233 = vector.shape_cast %232 : vector<32x32xf32> to vector<2x4x4x32xf32>
    %cst_59 = arith.constant 0.000000e+00 : f32
    %234 = vector.broadcast %cst_59 : f32 to vector<2x1x4x32xf32>
    %235 = tpu.concatenate %234, %233 in 1 : vector<2x1x4x32xf32>, vector<2x4x4x32xf32> -> vector<2x5x4x32xf32>
    %cst_60 = arith.constant 0.000000e+00 : f32
    %236 = vector.broadcast %cst_60 : f32 to vector<2x5x1x32xf32>
    %237 = tpu.concatenate %236, %235 in 2 : vector<2x5x1x32xf32>, vector<2x5x4x32xf32> -> vector<2x5x5x32xf32>
    %238 = vector.extract_strided_slice %237 {offsets = [0, 0, 0, 0], sizes = [2, 4, 4, 32], strides = [1, 1, 1, 1]} : vector<2x5x5x32xf32> to vector<2x4x4x32xf32>
    %239 = vector.extract_strided_slice %231 {offsets = [0, 0, 0, 0], sizes = [2, 4, 4, 32], strides = [1, 1, 1, 1]} : vector<2x5x5x32xf32> to vector<2x4x4x32xf32>
    %240 = vector.extract_strided_slice %237 {offsets = [0, 0, 1, 0], sizes = [2, 4, 4, 32], strides = [1, 1, 1, 1]} : vector<2x5x5x32xf32> to vector<2x4x4x32xf32>
    %241 = vector.extract_strided_slice %231 {offsets = [0, 0, 1, 0], sizes = [2, 4, 4, 32], strides = [1, 1, 1, 1]} : vector<2x5x5x32xf32> to vector<2x4x4x32xf32>
    %242 = vector.extract_strided_slice %225 {offsets = [0, 0, 0, 0], sizes = [2, 4, 4, 32], strides = [1, 1, 1, 1]} : vector<2x5x5x32xf32> to vector<2x4x4x32xf32>
    %243 = vector.extract_strided_slice %219 {offsets = [0, 0, 0, 0], sizes = [2, 4, 4, 32], strides = [1, 1, 1, 1]} : vector<2x5x5x32xf32> to vector<2x4x4x32xf32>
    %244 = vector.extract_strided_slice %225 {offsets = [0, 0, 1, 0], sizes = [2, 4, 4, 32], strides = [1, 1, 1, 1]} : vector<2x5x5x32xf32> to vector<2x4x4x32xf32>
    %245 = vector.extract_strided_slice %219 {offsets = [0, 0, 1, 0], sizes = [2, 4, 4, 32], strides = [1, 1, 1, 1]} : vector<2x5x5x32xf32> to vector<2x4x4x32xf32>
    %246 = vector.extract_strided_slice %237 {offsets = [0, 1, 0, 0], sizes = [2, 4, 4, 32], strides = [1, 1, 1, 1]} : vector<2x5x5x32xf32> to vector<2x4x4x32xf32>
    %247 = vector.extract_strided_slice %231 {offsets = [0, 1, 0, 0], sizes = [2, 4, 4, 32], strides = [1, 1, 1, 1]} : vector<2x5x5x32xf32> to vector<2x4x4x32xf32>
    %248 = vector.extract_strided_slice %237 {offsets = [0, 1, 1, 0], sizes = [2, 4, 4, 32], strides = [1, 1, 1, 1]} : vector<2x5x5x32xf32> to vector<2x4x4x32xf32>
    %249 = vector.extract_strided_slice %231 {offsets = [0, 1, 1, 0], sizes = [2, 4, 4, 32], strides = [1, 1, 1, 1]} : vector<2x5x5x32xf32> to vector<2x4x4x32xf32>
    %250 = vector.extract_strided_slice %225 {offsets = [0, 1, 0, 0], sizes = [2, 4, 4, 32], strides = [1, 1, 1, 1]} : vector<2x5x5x32xf32> to vector<2x4x4x32xf32>
    %251 = vector.extract_strided_slice %219 {offsets = [0, 1, 0, 0], sizes = [2, 4, 4, 32], strides = [1, 1, 1, 1]} : vector<2x5x5x32xf32> to vector<2x4x4x32xf32>
    %252 = vector.extract_strided_slice %225 {offsets = [0, 1, 1, 0], sizes = [2, 4, 4, 32], strides = [1, 1, 1, 1]} : vector<2x5x5x32xf32> to vector<2x4x4x32xf32>
    %253 = vector.extract_strided_slice %219 {offsets = [0, 1, 1, 0], sizes = [2, 4, 4, 32], strides = [1, 1, 1, 1]} : vector<2x5x5x32xf32> to vector<2x4x4x32xf32>
    %254 = tpu.concatenate %238, %239, %240, %241, %242, %243, %244, %245, %246, %247, %248, %249, %250, %251, %252, %253 in 3 : vector<2x4x4x32xf32>, vector<2x4x4x32xf32>, vector<2x4x4x32xf32>, vector<2x4x4x32xf32>, vector<2x4x4x32xf32>, vector<2x4x4x32xf32>, vector<2x4x4x32xf32>, vector<2x4x4x32xf32>, vector<2x4x4x32xf32>, vector<2x4x4x32xf32>, vector<2x4x4x32xf32>, vector<2x4x4x32xf32>, vector<2x4x4x32xf32>, vector<2x4x4x32xf32>, vector<2x4x4x32xf32>, vector<2x4x4x32xf32> -> vector<2x4x4x512xf32>
    %255 = vector.shape_cast %254 : vector<2x4x4x512xf32> to vector<32x512xf32>
    %256 = arith.truncf %255 : vector<32x512xf32> to vector<32x512xbf16>
    %c0_61 = arith.constant 0 : index
    %c0_62 = arith.constant 0 : index
    %257 = vector.load %arg7[%c0_61, %c0_62] : memref<512x64xbf16, #tpu.memory_space<vmem>>, vector<512x64xbf16>
    %cst_63 = arith.constant dense<0.000000e+00> : vector<32x64xf32>
    %258 = tpu.matmul %256, %257, %cst_63 {dimension_numbers = #tpu.dot_dimension_numbers<[1], [0], [0], [1], [0, 0, 1, 1], [], []>} : vector<32x512xbf16>, vector<512x64xbf16>, vector<32x64xf32> -> vector<32x64xf32>
    %c0_64 = arith.constant 0 : index
    %c0_65 = arith.constant 0 : index
    %259 = vector.load %arg8[%c0_64, %c0_65] : memref<1x64xf32, #tpu.memory_space<vmem>>, vector<1x64xf32>
    %260 = vector.shape_cast %259 : vector<1x64xf32> to vector<64xf32>
    %261 = vector.shape_cast %260 : vector<64xf32> to vector<1x64xf32>
    %262 = vector.broadcast %261 : vector<1x64xf32> to vector<32x64xf32>
    %263 = arith.addf %258, %262 : vector<32x64xf32>
    %cst_66 = arith.constant dense<0.000000e+00> : vector<64xf32>
    %264 = vector.multi_reduction <add>, %263, %cst_66 [0] : vector<32x64xf32> to vector<64xf32>
    %265 = vector.shape_cast %264 : vector<64xf32> to vector<1x64xf32>
    %cst_67 = arith.constant 3.200000e+01 : f32
    %266 = vector.broadcast %cst_67 : f32 to vector<1x64xf32>
    %267 = arith.divf %265, %266 : vector<1x64xf32>
    %268 = vector.broadcast %267 : vector<1x64xf32> to vector<32x64xf32>
    %269 = arith.subf %263, %268 : vector<32x64xf32>
    %270 = arith.mulf %269, %269 : vector<32x64xf32>
    %cst_68 = arith.constant dense<0.000000e+00> : vector<64xf32>
    %271 = vector.multi_reduction <add>, %270, %cst_68 [0] : vector<32x64xf32> to vector<64xf32>
    %272 = vector.shape_cast %271 : vector<64xf32> to vector<1x64xf32>
    %cst_69 = arith.constant 3.200000e+01 : f32
    %273 = vector.broadcast %cst_69 : f32 to vector<1x64xf32>
    %274 = arith.divf %272, %273 : vector<1x64xf32>
    %c0_70 = arith.constant 0 : index
    %c0_71 = arith.constant 0 : index
    %275 = vector.load %arg9[%c0_70, %c0_71] : memref<1x64xf32, #tpu.memory_space<vmem>>, vector<1x64xf32>
    %cst_72 = arith.constant 9.99999974E-6 : f32
    %276 = vector.broadcast %cst_72 : f32 to vector<1x64xf32>
    %277 = arith.addf %274, %276 : vector<1x64xf32>
    %278 = math.rsqrt %277 : vector<1x64xf32>
    %279 = arith.mulf %275, %278 : vector<1x64xf32>
    %280 = vector.broadcast %279 : vector<1x64xf32> to vector<32x64xf32>
    %281 = arith.mulf %263, %280 : vector<32x64xf32>
    %c0_73 = arith.constant 0 : index
    %c0_74 = arith.constant 0 : index
    %282 = vector.load %arg10[%c0_73, %c0_74] : memref<1x64xf32, #tpu.memory_space<vmem>>, vector<1x64xf32>
    %283 = arith.mulf %267, %279 : vector<1x64xf32>
    %284 = arith.subf %282, %283 : vector<1x64xf32>
    %285 = vector.broadcast %284 : vector<1x64xf32> to vector<32x64xf32>
    %286 = arith.addf %281, %285 : vector<32x64xf32>
    %cst_75 = arith.constant 2.000000e-01 : f32
    %287 = vector.broadcast %cst_75 : f32 to vector<32x64xf32>
    %288 = arith.mulf %287, %286 : vector<32x64xf32>
    %289 = arith.maximumf %286, %288 : vector<32x64xf32>
    %290 = vector.shape_cast %289 : vector<32x64xf32> to vector<2x4x4x64xf32>
    %cst_76 = arith.constant 0.000000e+00 : f32
    %291 = vector.broadcast %cst_76 : f32 to vector<2x1x4x64xf32>
    %292 = tpu.concatenate %291, %290, %291 in 1 : vector<2x1x4x64xf32>, vector<2x4x4x64xf32>, vector<2x1x4x64xf32> -> vector<2x6x4x64xf32>
    %cst_77 = arith.constant 0.000000e+00 : f32
    %293 = vector.broadcast %cst_77 : f32 to vector<2x6x1x64xf32>
    %294 = tpu.concatenate %293, %292, %293 in 2 : vector<2x6x1x64xf32>, vector<2x6x4x64xf32>, vector<2x6x1x64xf32> -> vector<2x6x6x64xf32>
    %295 = vector.extract_strided_slice %294 {offsets = [0, 0, 0, 0], sizes = [2, 3, 3, 64], strides = [1, 1, 1, 1]} : vector<2x6x6x64xf32> to vector<2x3x3x64xf32>
    %296 = vector.extract_strided_slice %294 {offsets = [0, 0, 1, 0], sizes = [2, 3, 3, 64], strides = [1, 1, 1, 1]} : vector<2x6x6x64xf32> to vector<2x3x3x64xf32>
    %297 = vector.extract_strided_slice %294 {offsets = [0, 0, 2, 0], sizes = [2, 3, 3, 64], strides = [1, 1, 1, 1]} : vector<2x6x6x64xf32> to vector<2x3x3x64xf32>
    %298 = vector.extract_strided_slice %294 {offsets = [0, 0, 3, 0], sizes = [2, 3, 3, 64], strides = [1, 1, 1, 1]} : vector<2x6x6x64xf32> to vector<2x3x3x64xf32>
    %299 = vector.extract_strided_slice %294 {offsets = [0, 1, 0, 0], sizes = [2, 3, 3, 64], strides = [1, 1, 1, 1]} : vector<2x6x6x64xf32> to vector<2x3x3x64xf32>
    %300 = vector.extract_strided_slice %294 {offsets = [0, 1, 1, 0], sizes = [2, 3, 3, 64], strides = [1, 1, 1, 1]} : vector<2x6x6x64xf32> to vector<2x3x3x64xf32>
    %301 = vector.extract_strided_slice %294 {offsets = [0, 1, 2, 0], sizes = [2, 3, 3, 64], strides = [1, 1, 1, 1]} : vector<2x6x6x64xf32> to vector<2x3x3x64xf32>
    %302 = vector.extract_strided_slice %294 {offsets = [0, 1, 3, 0], sizes = [2, 3, 3, 64], strides = [1, 1, 1, 1]} : vector<2x6x6x64xf32> to vector<2x3x3x64xf32>
    %303 = vector.extract_strided_slice %294 {offsets = [0, 2, 0, 0], sizes = [2, 3, 3, 64], strides = [1, 1, 1, 1]} : vector<2x6x6x64xf32> to vector<2x3x3x64xf32>
    %304 = vector.extract_strided_slice %294 {offsets = [0, 2, 1, 0], sizes = [2, 3, 3, 64], strides = [1, 1, 1, 1]} : vector<2x6x6x64xf32> to vector<2x3x3x64xf32>
    %305 = vector.extract_strided_slice %294 {offsets = [0, 2, 2, 0], sizes = [2, 3, 3, 64], strides = [1, 1, 1, 1]} : vector<2x6x6x64xf32> to vector<2x3x3x64xf32>
    %306 = vector.extract_strided_slice %294 {offsets = [0, 2, 3, 0], sizes = [2, 3, 3, 64], strides = [1, 1, 1, 1]} : vector<2x6x6x64xf32> to vector<2x3x3x64xf32>
    %307 = vector.extract_strided_slice %294 {offsets = [0, 3, 0, 0], sizes = [2, 3, 3, 64], strides = [1, 1, 1, 1]} : vector<2x6x6x64xf32> to vector<2x3x3x64xf32>
    %308 = vector.extract_strided_slice %294 {offsets = [0, 3, 1, 0], sizes = [2, 3, 3, 64], strides = [1, 1, 1, 1]} : vector<2x6x6x64xf32> to vector<2x3x3x64xf32>
    %309 = vector.extract_strided_slice %294 {offsets = [0, 3, 2, 0], sizes = [2, 3, 3, 64], strides = [1, 1, 1, 1]} : vector<2x6x6x64xf32> to vector<2x3x3x64xf32>
    %310 = vector.extract_strided_slice %294 {offsets = [0, 3, 3, 0], sizes = [2, 3, 3, 64], strides = [1, 1, 1, 1]} : vector<2x6x6x64xf32> to vector<2x3x3x64xf32>
    %311 = tpu.concatenate %295, %296, %297, %298, %299, %300, %301, %302, %303, %304, %305, %306, %307, %308, %309, %310 in 3 : vector<2x3x3x64xf32>, vector<2x3x3x64xf32>, vector<2x3x3x64xf32>, vector<2x3x3x64xf32>, vector<2x3x3x64xf32>, vector<2x3x3x64xf32>, vector<2x3x3x64xf32>, vector<2x3x3x64xf32>, vector<2x3x3x64xf32>, vector<2x3x3x64xf32>, vector<2x3x3x64xf32>, vector<2x3x3x64xf32>, vector<2x3x3x64xf32>, vector<2x3x3x64xf32>, vector<2x3x3x64xf32>, vector<2x3x3x64xf32> -> vector<2x3x3x1024xf32>
    %312 = vector.shape_cast %311 : vector<2x3x3x1024xf32> to vector<18x1024xf32>
    %313 = arith.truncf %312 : vector<18x1024xf32> to vector<18x1024xbf16>
    %c0_78 = arith.constant 0 : index
    %c0_79 = arith.constant 0 : index
    %314 = vector.load %arg11[%c0_78, %c0_79] : memref<1024x128xbf16, #tpu.memory_space<vmem>>, vector<1024x128xbf16>
    %cst_80 = arith.constant dense<0.000000e+00> : vector<18x128xf32>
    %315 = tpu.matmul %313, %314, %cst_80 {dimension_numbers = #tpu.dot_dimension_numbers<[1], [0], [0], [1], [0, 0, 1, 1], [], []>} : vector<18x1024xbf16>, vector<1024x128xbf16>, vector<18x128xf32> -> vector<18x128xf32>
    %c0_81 = arith.constant 0 : index
    %c0_82 = arith.constant 0 : index
    %316 = vector.load %arg12[%c0_81, %c0_82] : memref<1x128xf32, #tpu.memory_space<vmem>>, vector<1x128xf32>
    %317 = vector.shape_cast %316 : vector<1x128xf32> to vector<128xf32>
    %318 = vector.shape_cast %317 : vector<128xf32> to vector<1x128xf32>
    %319 = vector.broadcast %318 : vector<1x128xf32> to vector<18x128xf32>
    %320 = arith.addf %315, %319 : vector<18x128xf32>
    %cst_83 = arith.constant dense<0.000000e+00> : vector<128xf32>
    %321 = vector.multi_reduction <add>, %320, %cst_83 [0] : vector<18x128xf32> to vector<128xf32>
    %322 = vector.shape_cast %321 : vector<128xf32> to vector<1x128xf32>
    %cst_84 = arith.constant 1.800000e+01 : f32
    %323 = vector.broadcast %cst_84 : f32 to vector<1x128xf32>
    %324 = arith.divf %322, %323 : vector<1x128xf32>
    %325 = vector.broadcast %324 : vector<1x128xf32> to vector<18x128xf32>
    %326 = arith.subf %320, %325 : vector<18x128xf32>
    %327 = arith.mulf %326, %326 : vector<18x128xf32>
    %cst_85 = arith.constant dense<0.000000e+00> : vector<128xf32>
    %328 = vector.multi_reduction <add>, %327, %cst_85 [0] : vector<18x128xf32> to vector<128xf32>
    %329 = vector.shape_cast %328 : vector<128xf32> to vector<1x128xf32>
    %cst_86 = arith.constant 1.800000e+01 : f32
    %330 = vector.broadcast %cst_86 : f32 to vector<1x128xf32>
    %331 = arith.divf %329, %330 : vector<1x128xf32>
    %c0_87 = arith.constant 0 : index
    %c0_88 = arith.constant 0 : index
    %332 = vector.load %arg13[%c0_87, %c0_88] : memref<1x128xf32, #tpu.memory_space<vmem>>, vector<1x128xf32>
    %cst_89 = arith.constant 9.99999974E-6 : f32
    %333 = vector.broadcast %cst_89 : f32 to vector<1x128xf32>
    %334 = arith.addf %331, %333 : vector<1x128xf32>
    %335 = math.rsqrt %334 : vector<1x128xf32>
    %336 = arith.mulf %332, %335 : vector<1x128xf32>
    %337 = vector.broadcast %336 : vector<1x128xf32> to vector<18x128xf32>
    %338 = arith.mulf %320, %337 : vector<18x128xf32>
    %c0_90 = arith.constant 0 : index
    %c0_91 = arith.constant 0 : index
    %339 = vector.load %arg14[%c0_90, %c0_91] : memref<1x128xf32, #tpu.memory_space<vmem>>, vector<1x128xf32>
    %340 = arith.mulf %324, %336 : vector<1x128xf32>
    %341 = arith.subf %339, %340 : vector<1x128xf32>
    %342 = vector.broadcast %341 : vector<1x128xf32> to vector<18x128xf32>
    %343 = arith.addf %338, %342 : vector<18x128xf32>
    %cst_92 = arith.constant 2.000000e-01 : f32
    %344 = vector.broadcast %cst_92 : f32 to vector<18x128xf32>
    %345 = arith.mulf %344, %343 : vector<18x128xf32>
    %346 = arith.maximumf %343, %345 : vector<18x128xf32>
    %347 = vector.shape_cast %346 : vector<18x128xf32> to vector<2x3x3x128xf32>
    %cst_93 = arith.constant 0.000000e+00 : f32
    %348 = vector.broadcast %cst_93 : f32 to vector<2x1x3x128xf32>
    %349 = tpu.concatenate %348, %347, %348 in 1 : vector<2x1x3x128xf32>, vector<2x3x3x128xf32>, vector<2x1x3x128xf32> -> vector<2x5x3x128xf32>
    %cst_94 = arith.constant 0.000000e+00 : f32
    %350 = vector.broadcast %cst_94 : f32 to vector<2x5x1x128xf32>
    %351 = tpu.concatenate %350, %349, %350 in 2 : vector<2x5x1x128xf32>, vector<2x5x3x128xf32>, vector<2x5x1x128xf32> -> vector<2x5x5x128xf32>
    %c0_95 = arith.constant 0 : index
    %c0_96 = arith.constant 0 : index
    %352 = vector.load %arg15[%c0_95, %c0_96] : memref<16x128xf32, #tpu.memory_space<vmem>>, vector<16x128xf32>
    %cst_97 = arith.constant 0.000000e+00 : f32
    %353 = vector.broadcast %cst_97 : f32 to vector<2x2x2x128xf32>
    %354 = vector.extract_strided_slice %351 {offsets = [0, 0, 0, 0], sizes = [2, 2, 2, 128], strides = [1, 1, 1, 1]} : vector<2x5x5x128xf32> to vector<2x2x2x128xf32>
    %355 = vector.extract_strided_slice %352 {offsets = [0, 0], sizes = [1, 128], strides = [1, 1]} : vector<16x128xf32> to vector<1x128xf32>
    %356 = vector.shape_cast %355 : vector<1x128xf32> to vector<128xf32>
    %357 = vector.shape_cast %356 : vector<128xf32> to vector<1x1x1x128xf32>
    %358 = vector.broadcast %357 : vector<1x1x1x128xf32> to vector<2x2x2x128xf32>
    %359 = arith.mulf %354, %358 : vector<2x2x2x128xf32>
    %360 = arith.addf %353, %359 : vector<2x2x2x128xf32>
    %361 = vector.extract_strided_slice %351 {offsets = [0, 0, 1, 0], sizes = [2, 2, 2, 128], strides = [1, 1, 1, 1]} : vector<2x5x5x128xf32> to vector<2x2x2x128xf32>
    %362 = vector.extract_strided_slice %352 {offsets = [1, 0], sizes = [1, 128], strides = [1, 1]} : vector<16x128xf32> to vector<1x128xf32>
    %363 = vector.shape_cast %362 : vector<1x128xf32> to vector<128xf32>
    %364 = vector.shape_cast %363 : vector<128xf32> to vector<1x1x1x128xf32>
    %365 = vector.broadcast %364 : vector<1x1x1x128xf32> to vector<2x2x2x128xf32>
    %366 = arith.mulf %361, %365 : vector<2x2x2x128xf32>
    %367 = arith.addf %360, %366 : vector<2x2x2x128xf32>
    %368 = vector.extract_strided_slice %351 {offsets = [0, 0, 2, 0], sizes = [2, 2, 2, 128], strides = [1, 1, 1, 1]} : vector<2x5x5x128xf32> to vector<2x2x2x128xf32>
    %369 = vector.extract_strided_slice %352 {offsets = [2, 0], sizes = [1, 128], strides = [1, 1]} : vector<16x128xf32> to vector<1x128xf32>
    %370 = vector.shape_cast %369 : vector<1x128xf32> to vector<128xf32>
    %371 = vector.shape_cast %370 : vector<128xf32> to vector<1x1x1x128xf32>
    %372 = vector.broadcast %371 : vector<1x1x1x128xf32> to vector<2x2x2x128xf32>
    %373 = arith.mulf %368, %372 : vector<2x2x2x128xf32>
    %374 = arith.addf %367, %373 : vector<2x2x2x128xf32>
    %375 = vector.extract_strided_slice %351 {offsets = [0, 0, 3, 0], sizes = [2, 2, 2, 128], strides = [1, 1, 1, 1]} : vector<2x5x5x128xf32> to vector<2x2x2x128xf32>
    %376 = vector.extract_strided_slice %352 {offsets = [3, 0], sizes = [1, 128], strides = [1, 1]} : vector<16x128xf32> to vector<1x128xf32>
    %377 = vector.shape_cast %376 : vector<1x128xf32> to vector<128xf32>
    %378 = vector.shape_cast %377 : vector<128xf32> to vector<1x1x1x128xf32>
    %379 = vector.broadcast %378 : vector<1x1x1x128xf32> to vector<2x2x2x128xf32>
    %380 = arith.mulf %375, %379 : vector<2x2x2x128xf32>
    %381 = arith.addf %374, %380 : vector<2x2x2x128xf32>
    %382 = vector.extract_strided_slice %351 {offsets = [0, 1, 0, 0], sizes = [2, 2, 2, 128], strides = [1, 1, 1, 1]} : vector<2x5x5x128xf32> to vector<2x2x2x128xf32>
    %383 = vector.extract_strided_slice %352 {offsets = [4, 0], sizes = [1, 128], strides = [1, 1]} : vector<16x128xf32> to vector<1x128xf32>
    %384 = vector.shape_cast %383 : vector<1x128xf32> to vector<128xf32>
    %385 = vector.shape_cast %384 : vector<128xf32> to vector<1x1x1x128xf32>
    %386 = vector.broadcast %385 : vector<1x1x1x128xf32> to vector<2x2x2x128xf32>
    %387 = arith.mulf %382, %386 : vector<2x2x2x128xf32>
    %388 = arith.addf %381, %387 : vector<2x2x2x128xf32>
    %389 = vector.extract_strided_slice %351 {offsets = [0, 1, 1, 0], sizes = [2, 2, 2, 128], strides = [1, 1, 1, 1]} : vector<2x5x5x128xf32> to vector<2x2x2x128xf32>
    %390 = vector.extract_strided_slice %352 {offsets = [5, 0], sizes = [1, 128], strides = [1, 1]} : vector<16x128xf32> to vector<1x128xf32>
    %391 = vector.shape_cast %390 : vector<1x128xf32> to vector<128xf32>
    %392 = vector.shape_cast %391 : vector<128xf32> to vector<1x1x1x128xf32>
    %393 = vector.broadcast %392 : vector<1x1x1x128xf32> to vector<2x2x2x128xf32>
    %394 = arith.mulf %389, %393 : vector<2x2x2x128xf32>
    %395 = arith.addf %388, %394 : vector<2x2x2x128xf32>
    %396 = vector.extract_strided_slice %351 {offsets = [0, 1, 2, 0], sizes = [2, 2, 2, 128], strides = [1, 1, 1, 1]} : vector<2x5x5x128xf32> to vector<2x2x2x128xf32>
    %397 = vector.extract_strided_slice %352 {offsets = [6, 0], sizes = [1, 128], strides = [1, 1]} : vector<16x128xf32> to vector<1x128xf32>
    %398 = vector.shape_cast %397 : vector<1x128xf32> to vector<128xf32>
    %399 = vector.shape_cast %398 : vector<128xf32> to vector<1x1x1x128xf32>
    %400 = vector.broadcast %399 : vector<1x1x1x128xf32> to vector<2x2x2x128xf32>
    %401 = arith.mulf %396, %400 : vector<2x2x2x128xf32>
    %402 = arith.addf %395, %401 : vector<2x2x2x128xf32>
    %403 = vector.extract_strided_slice %351 {offsets = [0, 1, 3, 0], sizes = [2, 2, 2, 128], strides = [1, 1, 1, 1]} : vector<2x5x5x128xf32> to vector<2x2x2x128xf32>
    %404 = vector.extract_strided_slice %352 {offsets = [7, 0], sizes = [1, 128], strides = [1, 1]} : vector<16x128xf32> to vector<1x128xf32>
    %405 = vector.shape_cast %404 : vector<1x128xf32> to vector<128xf32>
    %406 = vector.shape_cast %405 : vector<128xf32> to vector<1x1x1x128xf32>
    %407 = vector.broadcast %406 : vector<1x1x1x128xf32> to vector<2x2x2x128xf32>
    %408 = arith.mulf %403, %407 : vector<2x2x2x128xf32>
    %409 = arith.addf %402, %408 : vector<2x2x2x128xf32>
    %410 = vector.extract_strided_slice %351 {offsets = [0, 2, 0, 0], sizes = [2, 2, 2, 128], strides = [1, 1, 1, 1]} : vector<2x5x5x128xf32> to vector<2x2x2x128xf32>
    %411 = vector.extract_strided_slice %352 {offsets = [8, 0], sizes = [1, 128], strides = [1, 1]} : vector<16x128xf32> to vector<1x128xf32>
    %412 = vector.shape_cast %411 : vector<1x128xf32> to vector<128xf32>
    %413 = vector.shape_cast %412 : vector<128xf32> to vector<1x1x1x128xf32>
    %414 = vector.broadcast %413 : vector<1x1x1x128xf32> to vector<2x2x2x128xf32>
    %415 = arith.mulf %410, %414 : vector<2x2x2x128xf32>
    %416 = arith.addf %409, %415 : vector<2x2x2x128xf32>
    %417 = vector.extract_strided_slice %351 {offsets = [0, 2, 1, 0], sizes = [2, 2, 2, 128], strides = [1, 1, 1, 1]} : vector<2x5x5x128xf32> to vector<2x2x2x128xf32>
    %418 = vector.extract_strided_slice %352 {offsets = [9, 0], sizes = [1, 128], strides = [1, 1]} : vector<16x128xf32> to vector<1x128xf32>
    %419 = vector.shape_cast %418 : vector<1x128xf32> to vector<128xf32>
    %420 = vector.shape_cast %419 : vector<128xf32> to vector<1x1x1x128xf32>
    %421 = vector.broadcast %420 : vector<1x1x1x128xf32> to vector<2x2x2x128xf32>
    %422 = arith.mulf %417, %421 : vector<2x2x2x128xf32>
    %423 = arith.addf %416, %422 : vector<2x2x2x128xf32>
    %424 = vector.extract_strided_slice %351 {offsets = [0, 2, 2, 0], sizes = [2, 2, 2, 128], strides = [1, 1, 1, 1]} : vector<2x5x5x128xf32> to vector<2x2x2x128xf32>
    %425 = vector.extract_strided_slice %352 {offsets = [10, 0], sizes = [1, 128], strides = [1, 1]} : vector<16x128xf32> to vector<1x128xf32>
    %426 = vector.shape_cast %425 : vector<1x128xf32> to vector<128xf32>
    %427 = vector.shape_cast %426 : vector<128xf32> to vector<1x1x1x128xf32>
    %428 = vector.broadcast %427 : vector<1x1x1x128xf32> to vector<2x2x2x128xf32>
    %429 = arith.mulf %424, %428 : vector<2x2x2x128xf32>
    %430 = arith.addf %423, %429 : vector<2x2x2x128xf32>
    %431 = vector.extract_strided_slice %351 {offsets = [0, 2, 3, 0], sizes = [2, 2, 2, 128], strides = [1, 1, 1, 1]} : vector<2x5x5x128xf32> to vector<2x2x2x128xf32>
    %432 = vector.extract_strided_slice %352 {offsets = [11, 0], sizes = [1, 128], strides = [1, 1]} : vector<16x128xf32> to vector<1x128xf32>
    %433 = vector.shape_cast %432 : vector<1x128xf32> to vector<128xf32>
    %434 = vector.shape_cast %433 : vector<128xf32> to vector<1x1x1x128xf32>
    %435 = vector.broadcast %434 : vector<1x1x1x128xf32> to vector<2x2x2x128xf32>
    %436 = arith.mulf %431, %435 : vector<2x2x2x128xf32>
    %437 = arith.addf %430, %436 : vector<2x2x2x128xf32>
    %438 = vector.extract_strided_slice %351 {offsets = [0, 3, 0, 0], sizes = [2, 2, 2, 128], strides = [1, 1, 1, 1]} : vector<2x5x5x128xf32> to vector<2x2x2x128xf32>
    %439 = vector.extract_strided_slice %352 {offsets = [12, 0], sizes = [1, 128], strides = [1, 1]} : vector<16x128xf32> to vector<1x128xf32>
    %440 = vector.shape_cast %439 : vector<1x128xf32> to vector<128xf32>
    %441 = vector.shape_cast %440 : vector<128xf32> to vector<1x1x1x128xf32>
    %442 = vector.broadcast %441 : vector<1x1x1x128xf32> to vector<2x2x2x128xf32>
    %443 = arith.mulf %438, %442 : vector<2x2x2x128xf32>
    %444 = arith.addf %437, %443 : vector<2x2x2x128xf32>
    %445 = vector.extract_strided_slice %351 {offsets = [0, 3, 1, 0], sizes = [2, 2, 2, 128], strides = [1, 1, 1, 1]} : vector<2x5x5x128xf32> to vector<2x2x2x128xf32>
    %446 = vector.extract_strided_slice %352 {offsets = [13, 0], sizes = [1, 128], strides = [1, 1]} : vector<16x128xf32> to vector<1x128xf32>
    %447 = vector.shape_cast %446 : vector<1x128xf32> to vector<128xf32>
    %448 = vector.shape_cast %447 : vector<128xf32> to vector<1x1x1x128xf32>
    %449 = vector.broadcast %448 : vector<1x1x1x128xf32> to vector<2x2x2x128xf32>
    %450 = arith.mulf %445, %449 : vector<2x2x2x128xf32>
    %451 = arith.addf %444, %450 : vector<2x2x2x128xf32>
    %452 = vector.extract_strided_slice %351 {offsets = [0, 3, 2, 0], sizes = [2, 2, 2, 128], strides = [1, 1, 1, 1]} : vector<2x5x5x128xf32> to vector<2x2x2x128xf32>
    %453 = vector.extract_strided_slice %352 {offsets = [14, 0], sizes = [1, 128], strides = [1, 1]} : vector<16x128xf32> to vector<1x128xf32>
    %454 = vector.shape_cast %453 : vector<1x128xf32> to vector<128xf32>
    %455 = vector.shape_cast %454 : vector<128xf32> to vector<1x1x1x128xf32>
    %456 = vector.broadcast %455 : vector<1x1x1x128xf32> to vector<2x2x2x128xf32>
    %457 = arith.mulf %452, %456 : vector<2x2x2x128xf32>
    %458 = arith.addf %451, %457 : vector<2x2x2x128xf32>
    %459 = vector.extract_strided_slice %351 {offsets = [0, 3, 3, 0], sizes = [2, 2, 2, 128], strides = [1, 1, 1, 1]} : vector<2x5x5x128xf32> to vector<2x2x2x128xf32>
    %460 = vector.extract_strided_slice %352 {offsets = [15, 0], sizes = [1, 128], strides = [1, 1]} : vector<16x128xf32> to vector<1x128xf32>
    %461 = vector.shape_cast %460 : vector<1x128xf32> to vector<128xf32>
    %462 = vector.shape_cast %461 : vector<128xf32> to vector<1x1x1x128xf32>
    %463 = vector.broadcast %462 : vector<1x1x1x128xf32> to vector<2x2x2x128xf32>
    %464 = arith.mulf %459, %463 : vector<2x2x2x128xf32>
    %465 = arith.addf %458, %464 : vector<2x2x2x128xf32>
    %cst_98 = arith.constant dense<0.000000e+00> : vector<2x2x2xf32>
    %466 = vector.multi_reduction <add>, %465, %cst_98 [3] : vector<2x2x2x128xf32> to vector<2x2x2xf32>
    %467 = vector.shape_cast %466 : vector<2x2x2xf32> to vector<2x2x2x1xf32>
    %c0_99 = arith.constant 0 : index
    %c0_100 = arith.constant 0 : index
    %468 = vector.load %arg16[%c0_99, %c0_100] : memref<1x1xf32, #tpu.memory_space<vmem>>, vector<1x1xf32>
    %469 = vector.shape_cast %468 : vector<1x1xf32> to vector<1xf32>
    %470 = vector.shape_cast %469 : vector<1xf32> to vector<1x1x1x1xf32>
    %471 = vector.broadcast %470 : vector<1x1x1x1xf32> to vector<2x2x2x1xf32>
    %472 = arith.addf %467, %471 : vector<2x2x2x1xf32>
    %cst_101 = arith.constant 0.000000e+00 : f32
    %473 = vector.broadcast %cst_101 : f32 to vector<2x2x2x1xf32>
    %474 = arith.subf %473, %472 : vector<2x2x2x1xf32>
    %475 = math.exp %474 : vector<2x2x2x1xf32>
    %cst_102 = arith.constant 1.000000e+00 : f32
    %476 = vector.broadcast %cst_102 : f32 to vector<2x2x2x1xf32>
    %477 = arith.addf %476, %475 : vector<2x2x2x1xf32>
    %cst_103 = arith.constant 1.000000e+00 : f32
    %478 = vector.broadcast %cst_103 : f32 to vector<2x2x2x1xf32>
    %479 = arith.divf %478, %477 : vector<2x2x2x1xf32>
    %c0_104 = arith.constant 0 : index
    %c0_105 = arith.constant 0 : index
    %c0_106 = arith.constant 0 : index
    %c0_107 = arith.constant 0 : index
    %480 = vector.load %arg17[%c0_104, %c0_105, %c0_106, %c0_107] : memref<2x2x2x1xf32, #tpu.memory_space<vmem>>, vector<2x2x2x1xf32>
    tpu.vector_store %arg17[%c0_104, %c0_105, %c0_106, %c0_107], %479 {strides = array<i32>} : memref<2x2x2x1xf32, #tpu.memory_space<vmem>>, vector<2x2x2x1xf32>,
    return
  }
}

</mosaic_0001>

<llo_original>
// kernel: discriminator_forward.1
$region0: #{discriminator_forward.1}
  #allocation0 [shape = 'u32[]', space=smem, size = 0x4, offset = 0x4, fixed_abs, tag = 'smem constant byte address 0x4 - core index']
  #allocation1 [shape = 'u32[144,128]{1,0:T(1,128)}', space=vmem, size = 0x12000, scoped, tag = 'internal scratch']
  #allocation2 [shape = 'f32[1,1]{1,0:T(1,128)S(1)}', space=vmem, size = 0x200, scoped, tag = 'scoped memory for discriminator_forward.1']
  %s0 = inlined_call_operand.vmem [shape: bf16[512,32], index: 0, kind: input, shape index: {}]
  %s1 = inlined_call_operand.vmem [shape: bf16[32,16], index: 1, kind: input, shape index: {}]
  %s2 = inlined_call_operand.vmem [shape: f32[1,16], index: 2, kind: input, shape index: {}]
  %s3 = inlined_call_operand.vmem [shape: bf16[256,32], index: 3, kind: input, shape index: {}]
  %s4 = inlined_call_operand.vmem [shape: f32[1,32], index: 4, kind: input, shape index: {}]
  %s5 = inlined_call_operand.vmem [shape: f32[1,32], index: 5, kind: input, shape index: {}]
  %s6 = inlined_call_operand.vmem [shape: f32[1,32], index: 6, kind: input, shape index: {}]
  %s7 = inlined_call_operand.vmem [shape: bf16[512,64], index: 7, kind: input, shape index: {}]
  %s8 = inlined_call_operand.vmem [shape: f32[1,64], index: 8, kind: input, shape index: {}]
  %s9 = inlined_call_operand.vmem [shape: f32[1,64], index: 9, kind: input, shape index: {}]
  %s10 = inlined_call_operand.vmem [shape: f32[1,64], index: 10, kind: input, shape index: {}]
  %s11 = inlined_call_operand.vmem [shape: bf16[1024,128], index: 11, kind: input, shape index: {}]
  %s12 = inlined_call_operand.vmem [shape: f32[1,128], index: 12, kind: input, shape index: {}]
  %s13 = inlined_call_operand.vmem [shape: f32[1,128], index: 13, kind: input, shape index: {}]
  %s14 = inlined_call_operand.vmem [shape: f32[1,128], index: 14, kind: input, shape index: {}]
  %s15 = inlined_call_operand.vmem [shape: f32[16,128], index: 15, kind: input, shape index: {}]
  %s16 = inlined_call_operand.<no memory space> [shape: f32[1,1], index: 16, kind: input, shape index: {}]
  %s17 = inlined_call_operand.vmem [shape: f32[2,2,2,1], index: 17, kind: output, shape index: {}]
  %s18 = sld [smem:[#allocation0]]
  $region78: #{discriminator_forward.1} parent=0
    _
  %s20 = ssub.s32 1, %s18
  %s21 = scalar_select 0, %s20, %s18
  %v22 = vstv %s16
  %23 = vst [vmem:[#allocation2] sm:$0x1] %v22
  // Predicated region
  $region2: #{discriminator_forward.1} parent=0 // pred_check
    _
  $region3: #{discriminator_forward.1} parent=0 // pred_check_branch
    %25 = sbr.rel (0) target = $region5
  $region4: #{discriminator_forward.1} parent=0 // pred_region
    _
  $region5: #{discriminator_forward.1} parent=0 // pred_fallthru
    _
  // Predicated region
  $region6: #{discriminator_forward.1} parent=0 // pred_check
    _
  $region7: #{discriminator_forward.1} parent=0 // pred_check_branch
    %27 = sbr.rel (0) target = $region9
  $region8: #{discriminator_forward.1} parent=0 // pred_region
    _
  $region9: #{discriminator_forward.1} parent=0 // pred_fallthru
    _
  // Predicated region
  $region10: #{discriminator_forward.1} parent=0 // pred_check
    _
  $region11: #{discriminator_forward.1} parent=0 // pred_check_branch
    %29 = sbr.rel (0) target = $region13
  $region12: #{discriminator_forward.1} parent=0 // pred_region
    _
  $region13: #{discriminator_forward.1} parent=0 // pred_fallthru
    _
  // Predicated region
  $region14: #{discriminator_forward.1} parent=0 // pred_check
    _
  $region15: #{discriminator_forward.1} parent=0 // pred_check_branch
    %31 = sbr.rel (0) target = $region17
  $region16: #{discriminator_forward.1} parent=0 // pred_region
    _
  $region17: #{discriminator_forward.1} parent=0 // pred_fallthru
    _
  // Predicated region
  $region18: #{discriminator_forward.1} parent=0 // pred_check
    _
  $region19: #{discriminator_forward.1} parent=0 // pred_check_branch
    %33 = sbr.rel (0) target = $region21
  $region20: #{discriminator_forward.1} parent=0 // pred_region
    _
  $region21: #{discriminator_forward.1} parent=0 // pred_fallthru
    _
  // Predicated region
  $region22: #{discriminator_forward.1} parent=0 // pred_check
    _
  $region23: #{discriminator_forward.1} parent=0 // pred_check_branch
    %35 = sbr.rel (0) target = $region25
  $region24: #{discriminator_forward.1} parent=0 // pred_region
    _
  $region25: #{discriminator_forward.1} parent=0 // pred_fallthru
    _
  // Predicated region
  $region26: #{discriminator_forward.1} parent=0 // pred_check
    _
  $region27: #{discriminator_forward.1} parent=0 // pred_check_branch
    %37 = sbr.rel (0) target = $region29
  $region28: #{discriminator_forward.1} parent=0 // pred_region
    _
  $region29: #{discriminator_forward.1} parent=0 // pred_fallthru
    _
  // Predicated region
  $region30: #{discriminator_forward.1} parent=0 // pred_check
    _
  $region31: #{discriminator_forward.1} parent=0 // pred_check_branch
    %39 = sbr.rel (0) target = $region33
  $region32: #{discriminator_forward.1} parent=0 // pred_region
    _
  $region33: #{discriminator_forward.1} parent=0 // pred_fallthru
    _
  // Predicated region
  $region34: #{discriminator_forward.1} parent=0 // pred_check
    _
  $region35: #{discriminator_forward.1} parent=0 // pred_check_branch
    %41 = sbr.rel (0) target = $region37
  $region36: #{discriminator_forward.1} parent=0 // pred_region
    _
  $region37: #{discriminator_forward.1} parent=0 // pred_fallthru
    _
  // Predicated region
  $region38: #{discriminator_forward.1} parent=0 // pred_check
    _
  $region39: #{discriminator_forward.1} parent=0 // pred_check_branch
    %43 = sbr.rel (0) target = $region41
  $region40: #{discriminator_forward.1} parent=0 // pred_region
    _
  $region41: #{discriminator_forward.1} parent=0 // pred_fallthru
    _
  // Predicated region
  $region42: #{discriminator_forward.1} parent=0 // pred_check
    _
  $region43: #{discriminator_forward.1} parent=0 // pred_check_branch
    %45 = sbr.rel (0) target = $region45
  $region44: #{discriminator_forward.1} parent=0 // pred_region
    _
  $region45: #{discriminator_forward.1} parent=0 // pred_fallthru
    _
  // Predicated region
  $region46: #{discriminator_forward.1} parent=0 // pred_check
    _
  $region47: #{discriminator_forward.1} parent=0 // pred_check_branch
    %47 = sbr.rel (0) target = $region49
  $region48: #{discriminator_forward.1} parent=0 // pred_region
    _
  $region49: #{discriminator_forward.1} parent=0 // pred_fallthru
    _
  // Predicated region
  $region50: #{discriminator_forward.1} parent=0 // pred_check
    _
  $region51: #{discriminator_forward.1} parent=0 // pred_check_branch
    %49 = sbr.rel (0) target = $region53
  $region52: #{discriminator_forward.1} parent=0 // pred_region
    _
  $region53: #{discriminator_forward.1} parent=0 // pred_fallthru
    _
  // Predicated region
  $region54: #{discriminator_forward.1} parent=0 // pred_check
    _
  $region55: #{discriminator_forward.1} parent=0 // pred_check_branch
    %51 = sbr.rel (0) target = $region57
  $region56: #{discriminator_forward.1} parent=0 // pred_region
    _
  $region57: #{discriminator_forward.1} parent=0 // pred_fallthru
    _
  // Predicated region
  $region58: #{discriminator_forward.1} parent=0 // pred_check
    _
  $region59: #{discriminator_forward.1} parent=0 // pred_check_branch
    %53 = sbr.rel (0) target = $region61
  $region60: #{discriminator_forward.1} parent=0 // pred_region
    _
  $region61: #{discriminator_forward.1} parent=0 // pred_fallthru
    _
  // Predicated region
  $region62: #{discriminator_forward.1} parent=0 // pred_check
    _
  $region63: #{discriminator_forward.1} parent=0 // pred_check_branch
    %55 = sbr.rel (0) target = $region65
  $region64: #{discriminator_forward.1} parent=0 // pred_region
    _
  $region65: #{discriminator_forward.1} parent=0 // pred_fallthru
    _
  // Predicated region
  $region66: #{discriminator_forward.1} parent=0 // pred_check
    _
  $region67: #{discriminator_forward.1} parent=0 // pred_check_branch
    %57 = sbr.rel (0) target = $region69
  $region68: #{discriminator_forward.1} parent=0 // pred_region
    _
  $region69: #{discriminator_forward.1} parent=0 // pred_fallthru
    _
  %v59 = vld [vmem:[%s0] sm:$0xf]
  %v60 = vld [vmem:[%s0 + $0x4] sm:$0xf]
  %v61 = vld [vmem:[%s0 + $0x8] sm:$0xf]
  %v62 = vld [vmem:[%s0 + $0xc] sm:$0xf]
  %v63 = vld [vmem:[%s0 + $0x10] sm:$0xf]
  %v64 = vld [vmem:[%s0 + $0x14] sm:$0xf]
  %v65 = vld [vmem:[%s0 + $0x18] sm:$0xf]
  %v66 = vld [vmem:[%s0 + $0x1c] sm:$0xf]
  %v67 = vld [vmem:[%s0 + $0x20] sm:$0xf]
  %v68 = vld [vmem:[%s0 + $0x24] sm:$0xf]
  %v69 = vld [vmem:[%s0 + $0x28] sm:$0xf]
  %v70 = vld [vmem:[%s0 + $0x2c] sm:$0xf]
  %v71 = vld [vmem:[%s0 + $0x30] sm:$0xf]
  %v72 = vld [vmem:[%s0 + $0x34] sm:$0xf]
  %v73 = vld [vmem:[%s0 + $0x38] sm:$0xf]
  %v74 = vld [vmem:[%s0 + $0x3c] sm:$0xf]
  %v75 = vld [vmem:[%s0 + $0x40] sm:$0xf]
  %v76 = vld [vmem:[%s0 + $0x44] sm:$0xf]
  %v77 = vld [vmem:[%s0 + $0x48] sm:$0xf]
  %v78 = vld [vmem:[%s0 + $0x4c] sm:$0xf]
  %v79 = vld [vmem:[%s0 + $0x50] sm:$0xf]
  %v80 = vld [vmem:[%s0 + $0x54] sm:$0xf]
  %v81 = vld [vmem:[%s0 + $0x58] sm:$0xf]
  %v82 = vld [vmem:[%s0 + $0x5c] sm:$0xf]
  %v83 = vld [vmem:[%s0 + $0x60] sm:$0xf]
  %v84 = vld [vmem:[%s0 + $0x64] sm:$0xf]
  %v85 = vld [vmem:[%s0 + $0x68] sm:$0xf]
  %v86 = vld [vmem:[%s0 + $0x6c] sm:$0xf]
  %v87 = vld [vmem:[%s0 + $0x70] sm:$0xf]
  %v88 = vld [vmem:[%s0 + $0x74] sm:$0xf]
  %v89 = vld [vmem:[%s0 + $0x78] sm:$0xf]
  %v90 = vld [vmem:[%s0 + $0x7c] sm:$0xf]
  %v91 = vld [vmem:[%s0 + $0x80] sm:$0xf]
  %v92 = vld [vmem:[%s0 + $0x84] sm:$0xf]
  %v93 = vld [vmem:[%s0 + $0x88] sm:$0xf]
  %v94 = vld [vmem:[%s0 + $0x8c] sm:$0xf]
  %v95 = vld [vmem:[%s0 + $0x90] sm:$0xf]
  %v96 = vld [vmem:[%s0 + $0x94] sm:$0xf]
  %v97 = vld [vmem:[%s0 + $0x98] sm:$0xf]
  %v98 = vld [vmem:[%s0 + $0x9c] sm:$0xf]
  %v99 = vld [vmem:[%s0 + $0xa0] sm:$0xf]
  %v100 = vld [vmem:[%s0 + $0xa4] sm:$0xf]
  %v101 = vld [vmem:[%s0 + $0xa8] sm:$0xf]
  %v102 = vld [vmem:[%s0 + $0xac] sm:$0xf]
  %v103 = vld [vmem:[%s0 + $0xb0] sm:$0xf]
  %v104 = vld [vmem:[%s0 + $0xb4] sm:$0xf]
  %v105 = vld [vmem:[%s0 + $0xb8] sm:$0xf]
  %v106 = vld [vmem:[%s0 + $0xbc] sm:$0xf]
  %v107 = vld [vmem:[%s0 + $0xc0] sm:$0xf]
  %v108 = vld [vmem:[%s0 + $0xc4] sm:$0xf]
  %v109 = vld [vmem:[%s0 + $0xc8] sm:$0xf]
  %v110 = vld [vmem:[%s0 + $0xcc] sm:$0xf]
  %v111 = vld [vmem:[%s0 + $0xd0] sm:$0xf]
  %v112 = vld [vmem:[%s0 + $0xd4] sm:$0xf]
  %v113 = vld [vmem:[%s0 + $0xd8] sm:$0xf]
  %v114 = vld [vmem:[%s0 + $0xdc] sm:$0xf]
  %v115 = vld [vmem:[%s0 + $0xe0] sm:$0xf]
  %v116 = vld [vmem:[%s0 + $0xe4] sm:$0xf]
  %v117 = vld [vmem:[%s0 + $0xe8] sm:$0xf]
  %v118 = vld [vmem:[%s0 + $0xec] sm:$0xf]
  %v119 = vld [vmem:[%s0 + $0xf0] sm:$0xf]
  %v120 = vld [vmem:[%s0 + $0xf4] sm:$0xf]
  %v121 = vld [vmem:[%s0 + $0xf8] sm:$0xf]
  %v122 = vld [vmem:[%s0 + $0xfc] sm:$0xf]
  %v123 = vld [vmem:[%s1] sm:$0xf]
  %v124 = vld [vmem:[%s1 + $0x4] sm:$0xf]
  %v125 = vld [vmem:[%s1 + $0x8] sm:$0xf]
  %v126 = vld [vmem:[%s1 + $0xc] sm:$0xf]
  %v127 = vld [vmem:[%s2] sm:$0x1]
  %v129 = vlaneseq
  %v130 = vshrl.u32 %v129, 7
  %v131 = vsub.s32 0, %v130
  %v132 = vrot.slane %v127, %v131
  %v198 = vunpack.c.l.b16 %v59
  %v199 = vunpack.c.l.b16 %v60
  %v200 = vunpack.c.l.b16 %v61
  %v201 = vunpack.c.l.b16 %v62
  %v202 = vunpack.c.l.b16 %v63
  %v203 = vunpack.c.l.b16 %v64
  %v204 = vunpack.c.l.b16 %v65
  %v205 = vunpack.c.l.b16 %v66
  %v206 = vunpack.c.l.b16 %v67
  %v207 = vunpack.c.l.b16 %v68
  %v208 = vunpack.c.l.b16 %v69
  %v209 = vunpack.c.l.b16 %v70
  %v210 = vunpack.c.l.b16 %v71
  %v211 = vunpack.c.l.b16 %v72
  %v212 = vunpack.c.l.b16 %v73
  %v213 = vunpack.c.l.b16 %v74
  %v214 = vunpack.c.l.b16 %v75
  %v215 = vunpack.c.l.b16 %v76
  %v216 = vunpack.c.l.b16 %v77
  %v217 = vunpack.c.l.b16 %v78
  %v218 = vunpack.c.l.b16 %v79
  %v219 = vunpack.c.l.b16 %v80
  %v220 = vunpack.c.l.b16 %v81
  %v221 = vunpack.c.l.b16 %v82
  %v222 = vunpack.c.l.b16 %v83
  %v223 = vunpack.c.l.b16 %v84
  %v224 = vunpack.c.l.b16 %v85
  %v225 = vunpack.c.l.b16 %v86
  %v226 = vunpack.c.l.b16 %v87
  %v227 = vunpack.c.l.b16 %v88
  %v228 = vunpack.c.l.b16 %v89
  %v229 = vunpack.c.l.b16 %v90
  %v230 = vunpack.c.l.b16 %v91
  %v231 = vunpack.c.l.b16 %v92
  %v232 = vunpack.c.l.b16 %v93
  %v233 = vunpack.c.l.b16 %v94
  %v234 = vunpack.c.l.b16 %v95
  %v235 = vunpack.c.l.b16 %v96
  %v236 = vunpack.c.l.b16 %v97
  %v237 = vunpack.c.l.b16 %v98
  %v238 = vunpack.c.l.b16 %v99
  %v239 = vunpack.c.l.b16 %v100
  %v240 = vunpack.c.l.b16 %v101
  %v241 = vunpack.c.l.b16 %v102
  %v242 = vunpack.c.l.b16 %v103
  %v243 = vunpack.c.l.b16 %v104
  %v244 = vunpack.c.l.b16 %v105
  %v245 = vunpack.c.l.b16 %v106
  %v246 = vunpack.c.l.b16 %v107
  %v247 = vunpack.c.l.b16 %v108
  %v248 = vunpack.c.l.b16 %v109
  %v249 = vunpack.c.l.b16 %v110
  %v250 = vunpack.c.l.b16 %v111
  %v251 = vunpack.c.l.b16 %v112
  %v252 = vunpack.c.l.b16 %v113
  %v253 = vunpack.c.l.b16 %v114
  %v254 = vunpack.c.l.b16 %v115
  %v255 = vunpack.c.l.b16 %v116
  %v256 = vunpack.c.l.b16 %v117
  %v257 = vunpack.c.l.b16 %v118
  %v258 = vunpack.c.l.b16 %v119
  %v259 = vunpack.c.l.b16 %v120
  %v260 = vunpack.c.l.b16 %v121
  %v261 = vunpack.c.l.b16 %v122
  %v262 = vpack.c.b16 %v199, %v198
  %v263 = vpack.c.b16 %v201, %v200
  %v264 = vpack.c.b16 %v203, %v202
  %v265 = vpack.c.b16 %v205, %v204
  %v266 = vpack.c.b16 %v207, %v206
  %v267 = vpack.c.b16 %v209, %v208
  %v268 = vpack.c.b16 %v211, %v210
  %v269 = vpack.c.b16 %v213, %v212
  %v270 = vpack.c.b16 %v215, %v214
  %v271 = vpack.c.b16 %v217, %v216
  %v272 = vpack.c.b16 %v219, %v218
  %v273 = vpack.c.b16 %v221, %v220
  %v274 = vpack.c.b16 %v223, %v222
  %v275 = vpack.c.b16 %v225, %v224
  %v276 = vpack.c.b16 %v227, %v226
  %v277 = vpack.c.b16 %v229, %v228
  %v278 = vpack.c.b16 %v231, %v230
  %v279 = vpack.c.b16 %v233, %v232
  %v280 = vpack.c.b16 %v235, %v234
  %v281 = vpack.c.b16 %v237, %v236
  %v282 = vpack.c.b16 %v239, %v238
  %v283 = vpack.c.b16 %v241, %v240
  %v284 = vpack.c.b16 %v243, %v242
  %v285 = vpack.c.b16 %v245, %v244
  %v286 = vpack.c.b16 %v247, %v246
  %v287 = vpack.c.b16 %v249, %v248
  %v288 = vpack.c.b16 %v251, %v250
  %v289 = vpack.c.b16 %v253, %v252
  %v290 = vpack.c.b16 %v255, %v254
  %v291 = vpack.c.b16 %v257, %v256
  %v292 = vpack.c.b16 %v259, %v258
  %v293 = vpack.c.b16 %v261, %v260
  %v298 = vunpack.c.l.b16 %v123
  %v299 = vunpack.c.l.b16 %v124
  %v300 = vunpack.c.l.b16 %v125
  %v301 = vunpack.c.l.b16 %v126
  %v302 = vpack.c.b16 %v299, %v298
  %v303 = vpack.c.b16 %v301, %v300
  %vm306 = vcmask 261120
  %v308 = vsel %vm306, %v262, 0
  %v311 = vsel %vm306, %v263, 0
  %v314 = vsel %vm306, %v264, 0
  %v317 = vsel %vm306, %v265, 0
  %v320 = vsel %vm306, %v266, 0
  %v323 = vsel %vm306, %v267, 0
  %v326 = vsel %vm306, %v268, 0
  %v329 = vsel %vm306, %v269, 0
  %v332 = vsel %vm306, %v270, 0
  %v335 = vsel %vm306, %v271, 0
  %v338 = vsel %vm306, %v272, 0
  %v341 = vsel %vm306, %v273, 0
  %v344 = vsel %vm306, %v274, 0
  %v347 = vsel %vm306, %v275, 0
  %v350 = vsel %vm306, %v276, 0
  %v353 = vsel %vm306, %v277, 0
  %v356 = vsel %vm306, %v278, 0
  %v359 = vsel %vm306, %v279, 0
  %v362 = vsel %vm306, %v280, 0
  %v365 = vsel %vm306, %v281, 0
  %v368 = vsel %vm306, %v282, 0
  %v371 = vsel %vm306, %v283, 0
  %v374 = vsel %vm306, %v284, 0
  %v377 = vsel %vm306, %v285, 0
  %v380 = vsel %vm306, %v286, 0
  %v383 = vsel %vm306, %v287, 0
  %v386 = vsel %vm306, %v288, 0
  %v389 = vsel %vm306, %v289, 0
  %v392 = vsel %vm306, %v290, 0
  %v395 = vsel %vm306, %v291, 0
  %v398 = vsel %vm306, %v292, 0
  %v401 = vsel %vm306, %v293, 0
  %403 = vmatprep.subr.bf16.mxu0 0
  %404 = vmatpush1.bf16.msra.mxu0 0
  %405 = vmatprep.subr.bf16.mxu0 0
  %406 = vmatpush1.bf16.msra.mxu0 0
  %407 = vmatprep.subr.bf16.mxu0 0
  %408 = vmatpush1.bf16.msra.mxu0 0
  %409 = vmatprep.subr.bf16.mxu0 0
  %410 = vmatpush1.bf16.msra.mxu0 0
  %411 = vmatprep.subr.bf16.mxu0 0
  %412 = vmatpush1.bf16.msra.mxu0 0
  %413 = vmatprep.subr.bf16.mxu0 0
  %414 = vmatpush1.bf16.msra.mxu0 0
  %415 = vmatprep.subr.bf16.mxu0 0
  %416 = vmatpush1.bf16.msra.mxu0 %v303
  %417 = vmatprep.subr.bf16.mxu0 0
  %418 = vmatpush1.bf16.msra.mxu0 %v302
  %419 = vmatprep.subr.bf16.mxu0 0
  %420 = vmatpush2.bf16.msra.mxu0 0
  %421 = vmatprep.subr.bf16.mxu0 0
  %422 = vmatpush2.bf16.msra.mxu0 0
  %423 = vmatprep.subr.bf16.mxu0 0
  %424 = vmatpush2.bf16.msra.mxu0 0
  %425 = vmatprep.subr.bf16.mxu0 0
  %426 = vmatpush2.bf16.msra.mxu0 0
  %427 = vmatprep.subr.bf16.mxu0 0
  %428 = vmatpush2.bf16.msra.mxu0 0
  %429 = vmatprep.subr.bf16.mxu0 0
  %430 = vmatpush2.bf16.msra.mxu0 0
  %431 = vmatprep.subr.bf16.mxu0 0
  %432 = vmatpush2.bf16.msra.mxu0 0
  %433 = vmatprep.subr.bf16.mxu0 0
  %434 = vmatpush2.bf16.msra.mxu0 0
  %435 = vmatprep.mubr.bf16.mxu0 0
  %436 = vmatmul.mubr.bf16.gmra.mxu0 %v308
  %v437 = vpop.f32.mrf.mxu0
  %v438 = vadd.f32 %v132, %v437
  %v439 = vpop.f32.mrf.mxu0
  %v440 = vpop.f32.mrf.mxu0
  %v441 = vadd.f32 %v132, %v440
  %v442 = vpop.f32.mrf.mxu0
  %443 = vmatprep.mubr.bf16.mxu0 0
  %444 = vmatmul.mubr.bf16.gmra.mxu0 %v311
  %v445 = vpop.f32.mrf.mxu0
  %v446 = vadd.f32 %v132, %v445
  %v447 = vpop.f32.mrf.mxu0
  %v448 = vpop.f32.mrf.mxu0
  %v449 = vadd.f32 %v132, %v448
  %v450 = vpop.f32.mrf.mxu0
  %451 = vmatprep.mubr.bf16.mxu0 0
  %452 = vmatmul.mubr.bf16.gmra.mxu0 %v314
  %v453 = vpop.f32.mrf.mxu0
  %v454 = vadd.f32 %v132, %v453
  %v455 = vpop.f32.mrf.mxu0
  %v456 = vpop.f32.mrf.mxu0
  %v457 = vadd.f32 %v132, %v456
  %v458 = vpop.f32.mrf.mxu0
  %459 = vmatprep.mubr.bf16.mxu0 0
  %460 = vmatmul.mubr.bf16.gmra.mxu0 %v317
  %v461 = vpop.f32.mrf.mxu0
  %v462 = vadd.f32 %v132, %v461
  %v463 = vpop.f32.mrf.mxu0
  %v464 = vpop.f32.mrf.mxu0
  %v465 = vadd.f32 %v132, %v464
  %v466 = vpop.f32.mrf.mxu0
  %467 = vmatprep.mubr.bf16.mxu0 0
  %468 = vmatmul.mubr.bf16.gmra.mxu0 %v320
  %v469 = vpop.f32.mrf.mxu0
  %v470 = vadd.f32 %v132, %v469
  %v471 = vpop.f32.mrf.mxu0
  %v472 = vpop.f32.mrf.mxu0
  %v473 = vadd.f32 %v132, %v472
  %v474 = vpop.f32.mrf.mxu0
  %475 = vmatprep.mubr.bf16.mxu0 0
  %476 = vmatmul.mubr.bf16.gmra.mxu0 %v323
  %v477 = vpop.f32.mrf.mxu0
  %v478 = vadd.f32 %v132, %v477
  %v479 = vpop.f32.mrf.mxu0
  %v480 = vpop.f32.mrf.mxu0
  %v481 = vadd.f32 %v132, %v480
  %v482 = vpop.f32.mrf.mxu0
  %483 = vmatprep.mubr.bf16.mxu0 0
  %484 = vmatmul.mubr.bf16.gmra.mxu0 %v326
  %v485 = vpop.f32.mrf.mxu0
  %v486 = vadd.f32 %v132, %v485
  %v487 = vpop.f32.mrf.mxu0
  %v488 = vpop.f32.mrf.mxu0
  %v489 = vadd.f32 %v132, %v488
  %v490 = vpop.f32.mrf.mxu0
  %491 = vmatprep.mubr.bf16.mxu0 0
  %492 = vmatmul.mubr.bf16.gmra.mxu0 %v329
  %v493 = vpop.f32.mrf.mxu0
  %v494 = vadd.f32 %v132, %v493
  %v495 = vpop.f32.mrf.mxu0
  %v496 = vpop.f32.mrf.mxu0
  %v497 = vadd.f32 %v132, %v496
  %v498 = vpop.f32.mrf.mxu0
  %499 = vmatprep.mubr.bf16.mxu0 0
  %500 = vmatmul.mubr.bf16.gmra.mxu0 %v332
  %v501 = vpop.f32.mrf.mxu0
  %v502 = vadd.f32 %v132, %v501
  %v503 = vpop.f32.mrf.mxu0
  %v504 = vpop.f32.mrf.mxu0
  %v505 = vadd.f32 %v132, %v504
  %v506 = vpop.f32.mrf.mxu0
  %507 = vmatprep.mubr.bf16.mxu0 0
  %508 = vmatmul.mubr.bf16.gmra.mxu0 %v335
  %v509 = vpop.f32.mrf.mxu0
  %v510 = vadd.f32 %v132, %v509
  %v511 = vpop.f32.mrf.mxu0
  %v512 = vpop.f32.mrf.mxu0
  %v513 = vadd.f32 %v132, %v512
  %v514 = vpop.f32.mrf.mxu0
  %515 = vmatprep.mubr.bf16.mxu0 0
  %516 = vmatmul.mubr.bf16.gmra.mxu0 %v338
  %v517 = vpop.f32.mrf.mxu0
  %v518 = vadd.f32 %v132, %v517
  %v519 = vpop.f32.mrf.mxu0
  %v520 = vpop.f32.mrf.mxu0
  %v521 = vadd.f32 %v132, %v520
  %v522 = vpop.f32.mrf.mxu0
  %523 = vmatprep.mubr.bf16.mxu0 0
  %524 = vmatmul.mubr.bf16.gmra.mxu0 %v341
  %v525 = vpop.f32.mrf.mxu0
  %v526 = vadd.f32 %v132, %v525
  %v527 = vpop.f32.mrf.mxu0
  %v528 = vpop.f32.mrf.mxu0
  %v529 = vadd.f32 %v132, %v528
  %v530 = vpop.f32.mrf.mxu0
  %531 = vmatprep.mubr.bf16.mxu0 0
  %532 = vmatmul.mubr.bf16.gmra.mxu0 %v344
  %v533 = vpop.f32.mrf.mxu0
  %v534 = vadd.f32 %v132, %v533
  %v535 = vpop.f32.mrf.mxu0
  %v536 = vpop.f32.mrf.mxu0
  %v537 = vadd.f32 %v132, %v536
  %v538 = vpop.f32.mrf.mxu0
  %539 = vmatprep.mubr.bf16.mxu0 0
  %540 = vmatmul.mubr.bf16.gmra.mxu0 %v347
  %v541 = vpop.f32.mrf.mxu0
  %v542 = vadd.f32 %v132, %v541
  %v543 = vpop.f32.mrf.mxu0
  %v544 = vpop.f32.mrf.mxu0
  %v545 = vadd.f32 %v132, %v544
  %v546 = vpop.f32.mrf.mxu0
  %547 = vmatprep.mubr.bf16.mxu0 0
  %548 = vmatmul.mubr.bf16.gmra.mxu0 %v350
  %v549 = vpop.f32.mrf.mxu0
  %v550 = vadd.f32 %v132, %v549
  %v551 = vpop.f32.mrf.mxu0
  %v552 = vpop.f32.mrf.mxu0
  %v553 = vadd.f32 %v132, %v552
  %v554 = vpop.f32.mrf.mxu0
  %555 = vmatprep.mubr.bf16.mxu0 0
  %556 = vmatmul.mubr.bf16.gmra.mxu0 %v353
  %v557 = vpop.f32.mrf.mxu0
  %v558 = vadd.f32 %v132, %v557
  %v559 = vpop.f32.mrf.mxu0
  %v560 = vpop.f32.mrf.mxu0
  %v561 = vadd.f32 %v132, %v560
  %v562 = vpop.f32.mrf.mxu0
  %563 = vmatprep.mubr.bf16.mxu0 0
  %564 = vmatmul.mubr.bf16.gmra.mxu0 %v356
  %v565 = vpop.f32.mrf.mxu0
  %v566 = vadd.f32 %v132, %v565
  %v567 = vpop.f32.mrf.mxu0
  %v568 = vpop.f32.mrf.mxu0
  %v569 = vadd.f32 %v132, %v568
  %v570 = vpop.f32.mrf.mxu0
  %571 = vmatprep.mubr.bf16.mxu0 0
  %572 = vmatmul.mubr.bf16.gmra.mxu0 %v359
  %v573 = vpop.f32.mrf.mxu0
  %v574 = vadd.f32 %v132, %v573
  %v575 = vpop.f32.mrf.mxu0
  %v576 = vpop.f32.mrf.mxu0
  %v577 = vadd.f32 %v132, %v576
  %v578 = vpop.f32.mrf.mxu0
  %579 = vmatprep.mubr.bf16.mxu0 0
  %580 = vmatmul.mubr.bf16.gmra.mxu0 %v362
  %v581 = vpop.f32.mrf.mxu0
  %v582 = vadd.f32 %v132, %v581
  %v583 = vpop.f32.mrf.mxu0
  %v584 = vpop.f32.mrf.mxu0
  %v585 = vadd.f32 %v132, %v584
  %v586 = vpop.f32.mrf.mxu0
  %587 = vmatprep.mubr.bf16.mxu0 0
  %588 = vmatmul.mubr.bf16.gmra.mxu0 %v365
  %v589 = vpop.f32.mrf.mxu0
  %v590 = vadd.f32 %v132, %v589
  %v591 = vpop.f32.mrf.mxu0
  %v592 = vpop.f32.mrf.mxu0
  %v593 = vadd.f32 %v132, %v592
  %v594 = vpop.f32.mrf.mxu0
  %595 = vmatprep.mubr.bf16.mxu0 0
  %596 = vmatmul.mubr.bf16.gmra.mxu0 %v368
  %v597 = vpop.f32.mrf.mxu0
  %v598 = vadd.f32 %v132, %v597
  %v599 = vpop.f32.mrf.mxu0
  %v600 = vpop.f32.mrf.mxu0
  %v601 = vadd.f32 %v132, %v600
  %v602 = vpop.f32.mrf.mxu0
  %603 = vmatprep.mubr.bf16.mxu0 0
  %604 = vmatmul.mubr.bf16.gmra.mxu0 %v371
  %v605 = vpop.f32.mrf.mxu0
  %v606 = vadd.f32 %v132, %v605
  %v607 = vpop.f32.mrf.mxu0
  %v608 = vpop.f32.mrf.mxu0
  %v609 = vadd.f32 %v132, %v608
  %v610 = vpop.f32.mrf.mxu0
  %611 = vmatprep.mubr.bf16.mxu0 0
  %612 = vmatmul.mubr.bf16.gmra.mxu0 %v374
  %v613 = vpop.f32.mrf.mxu0
  %v614 = vadd.f32 %v132, %v613
  %v615 = vpop.f32.mrf.mxu0
  %v616 = vpop.f32.mrf.mxu0
  %v617 = vadd.f32 %v132, %v616
  %v618 = vpop.f32.mrf.mxu0
  %619 = vmatprep.mubr.bf16.mxu0 0
  %620 = vmatmul.mubr.bf16.gmra.mxu0 %v377
  %v621 = vpop.f32.mrf.mxu0
  %v622 = vadd.f32 %v132, %v621
  %v623 = vpop.f32.mrf.mxu0
  %v624 = vpop.f32.mrf.mxu0
  %v625 = vadd.f32 %v132, %v624
  %v626 = vpop.f32.mrf.mxu0
  %627 = vmatprep.mubr.bf16.mxu0 0
  %628 = vmatmul.mubr.bf16.gmra.mxu0 %v380
  %v629 = vpop.f32.mrf.mxu0
  %v630 = vadd.f32 %v132, %v629
  %v631 = vpop.f32.mrf.mxu0
  %v632 = vpop.f32.mrf.mxu0
  %v633 = vadd.f32 %v132, %v632
  %v634 = vpop.f32.mrf.mxu0
  %635 = vmatprep.mubr.bf16.mxu0 0
  %636 = vmatmul.mubr.bf16.gmra.mxu0 %v383
  %v637 = vpop.f32.mrf.mxu0
  %v638 = vadd.f32 %v132, %v637
  %v639 = vpop.f32.mrf.mxu0
  %v640 = vpop.f32.mrf.mxu0
  %v641 = vadd.f32 %v132, %v640
  %v642 = vpop.f32.mrf.mxu0
  %643 = vmatprep.mubr.bf16.mxu0 0
  %644 = vmatmul.mubr.bf16.gmra.mxu0 %v386
  %v645 = vpop.f32.mrf.mxu0
  %v646 = vadd.f32 %v132, %v645
  %v647 = vpop.f32.mrf.mxu0
  %v648 = vpop.f32.mrf.mxu0
  %v649 = vadd.f32 %v132, %v648
  %v650 = vpop.f32.mrf.mxu0
  %651 = vmatprep.mubr.bf16.mxu0 0
  %652 = vmatmul.mubr.bf16.gmra.mxu0 %v389
  %v653 = vpop.f32.mrf.mxu0
  %v654 = vadd.f32 %v132, %v653
  %v655 = vpop.f32.mrf.mxu0
  %v656 = vpop.f32.mrf.mxu0
  %v657 = vadd.f32 %v132, %v656
  %v658 = vpop.f32.mrf.mxu0
  %659 = vmatprep.mubr.bf16.mxu0 0
  %660 = vmatmul.mubr.bf16.gmra.mxu0 %v392
  %v661 = vpop.f32.mrf.mxu0
  %v662 = vadd.f32 %v132, %v661
  %v663 = vpop.f32.mrf.mxu0
  %v664 = vpop.f32.mrf.mxu0
  %v665 = vadd.f32 %v132, %v664
  %v666 = vpop.f32.mrf.mxu0
  %667 = vmatprep.mubr.bf16.mxu0 0
  %668 = vmatmul.mubr.bf16.gmra.mxu0 %v395
  %v669 = vpop.f32.mrf.mxu0
  %v670 = vadd.f32 %v132, %v669
  %v671 = vpop.f32.mrf.mxu0
  %v672 = vpop.f32.mrf.mxu0
  %v673 = vadd.f32 %v132, %v672
  %v674 = vpop.f32.mrf.mxu0
  %675 = vmatprep.mubr.bf16.mxu0 0
  %676 = vmatmul.mubr.bf16.gmra.mxu0 %v398
  %v677 = vpop.f32.mrf.mxu0
  %v678 = vadd.f32 %v132, %v677
  %v679 = vpop.f32.mrf.mxu0
  %v680 = vpop.f32.mrf.mxu0
  %v681 = vadd.f32 %v132, %v680
  %v682 = vpop.f32.mrf.mxu0
  %683 = vmatprep.mubr.bf16.mxu0 0
  %684 = vmatmul.mubr.bf16.gmra.mxu0 %v401
  %v685 = vpop.f32.mrf.mxu0
  %v686 = vadd.f32 %v132, %v685
  %v687 = vpop.f32.mrf.mxu0
  %v688 = vpop.f32.mrf.mxu0
  %v689 = vadd.f32 %v132, %v688
  %v690 = vpop.f32.mrf.mxu0
  %691 = vdwg.mxu0
  %v692 = vmul.f32 %v438, 0.2
  %v693 = vmul.f32 %v441, 0.2
  %v694 = vmul.f32 %v446, 0.2
  %v695 = vmul.f32 %v449, 0.2
  %v696 = vmul.f32 %v454, 0.2
  %v697 = vmul.f32 %v457, 0.2
  %v698 = vmul.f32 %v462, 0.2
  %v699 = vmul.f32 %v465, 0.2
  %v700 = vmul.f32 %v470, 0.2
  %v701 = vmul.f32 %v473, 0.2
  %v702 = vmul.f32 %v478, 0.2
  %v703 = vmul.f32 %v481, 0.2
  %v704 = vmul.f32 %v486, 0.2
  %v705 = vmul.f32 %v489, 0.2
  %v706 = vmul.f32 %v494, 0.2
  %v707 = vmul.f32 %v497, 0.2
  %v708 = vmul.f32 %v502, 0.2
  %v709 = vmul.f32 %v505, 0.2
  %v710 = vmul.f32 %v510, 0.2
  %v711 = vmul.f32 %v513, 0.2
  %v712 = vmul.f32 %v518, 0.2
  %v713 = vmul.f32 %v521, 0.2
  %v714 = vmul.f32 %v526, 0.2
  %v715 = vmul.f32 %v529, 0.2
  %v716 = vmul.f32 %v534, 0.2
  %v717 = vmul.f32 %v537, 0.2
  %v718 = vmul.f32 %v542, 0.2
  %v719 = vmul.f32 %v545, 0.2
  %v720 = vmul.f32 %v550, 0.2
  %v721 = vmul.f32 %v553, 0.2
  %v722 = vmul.f32 %v558, 0.2
  %v723 = vmul.f32 %v561, 0.2
  %v724 = vmul.f32 %v566, 0.2
  %v725 = vmul.f32 %v569, 0.2
  %v726 = vmul.f32 %v574, 0.2
  %v727 = vmul.f32 %v577, 0.2
  %v728 = vmul.f32 %v582, 0.2
  %v729 = vmul.f32 %v585, 0.2
  %v730 = vmul.f32 %v590, 0.2
  %v731 = vmul.f32 %v593, 0.2
  %v732 = vmul.f32 %v598, 0.2
  %v733 = vmul.f32 %v601, 0.2
  %v734 = vmul.f32 %v606, 0.2
  %v735 = vmul.f32 %v609, 0.2
  %v736 = vmul.f32 %v614, 0.2
  %v737 = vmul.f32 %v617, 0.2
  %v738 = vmul.f32 %v622, 0.2
  %v739 = vmul.f32 %v625, 0.2
  %v740 = vmul.f32 %v630, 0.2
  %v741 = vmul.f32 %v633, 0.2
  %v742 = vmul.f32 %v638, 0.2
  %v743 = vmul.f32 %v641, 0.2
  %v744 = vmul.f32 %v646, 0.2
  %v745 = vmul.f32 %v649, 0.2
  %v746 = vmul.f32 %v654, 0.2
  %v747 = vmul.f32 %v657, 0.2
  %v748 = vmul.f32 %v662, 0.2
  %v749 = vmul.f32 %v665, 0.2
  %v750 = vmul.f32 %v670, 0.2
  %v751 = vmul.f32 %v673, 0.2
  %v752 = vmul.f32 %v678, 0.2
  %v753 = vmul.f32 %v681, 0.2
  %v754 = vmul.f32 %v686, 0.2
  %v755 = vmul.f32 %v689, 0.2
  %v756 = vmax.f32 %v438, %v692
  %v757 = vmax.f32 %v441, %v693
  %v758 = vmax.f32 %v446, %v694
  %v759 = vmax.f32 %v449, %v695
  %v760 = vmax.f32 %v454, %v696
  %v761 = vmax.f32 %v457, %v697
  %v762 = vmax.f32 %v462, %v698
  %v763 = vmax.f32 %v465, %v699
  %v764 = vmax.f32 %v470, %v700
  %v765 = vmax.f32 %v473, %v701
  %v766 = vmax.f32 %v478, %v702
  %v767 = vmax.f32 %v481, %v703
  %v768 = vmax.f32 %v486, %v704
  %v769 = vmax.f32 %v489, %v705
  %v770 = vmax.f32 %v494, %v706
  %v771 = vmax.f32 %v497, %v707
  %v772 = vmax.f32 %v502, %v708
  %v773 = vmax.f32 %v505, %v709
  %v774 = vmax.f32 %v510, %v710
  %v775 = vmax.f32 %v513, %v711
  %v776 = vmax.f32 %v518, %v712
  %v777 = vmax.f32 %v521, %v713
  %v778 = vmax.f32 %v526, %v714
  %v779 = vmax.f32 %v529, %v715
  %v780 = vmax.f32 %v534, %v716
  %v781 = vmax.f32 %v537, %v717
  %v782 = vmax.f32 %v542, %v718
  %v783 = vmax.f32 %v545, %v719
  %v784 = vmax.f32 %v550, %v720
  %v785 = vmax.f32 %v553, %v721
  %v786 = vmax.f32 %v558, %v722
  %v787 = vmax.f32 %v561, %v723
  %v788 = vmax.f32 %v566, %v724
  %v789 = vmax.f32 %v569, %v725
  %v790 = vmax.f32 %v574, %v726
  %v791 = vmax.f32 %v577, %v727
  %v792 = vmax.f32 %v582, %v728
  %v793 = vmax.f32 %v585, %v729
  %v794 = vmax.f32 %v590, %v730
  %v795 = vmax.f32 %v593, %v731
  %v796 = vmax.f32 %v598, %v732
  %v797 = vmax.f32 %v601, %v733
  %v798 = vmax.f32 %v606, %v734
  %v799 = vmax.f32 %v609, %v735
  %v800 = vmax.f32 %v614, %v736
  %v801 = vmax.f32 %v617, %v737
  %v802 = vmax.f32 %v622, %v738
  %v803 = vmax.f32 %v625, %v739
  %v804 = vmax.f32 %v630, %v740
  %v805 = vmax.f32 %v633, %v741
  %v806 = vmax.f32 %v638, %v742
  %v807 = vmax.f32 %v641, %v743
  %v808 = vmax.f32 %v646, %v744
  %v809 = vmax.f32 %v649, %v745
  %v810 = vmax.f32 %v654, %v746
  %v811 = vmax.f32 %v657, %v747
  %v812 = vmax.f32 %v662, %v748
  %v813 = vmax.f32 %v665, %v749
  %v814 = vmax.f32 %v670, %v750
  %v815 = vmax.f32 %v673, %v751
  %v816 = vmax.f32 %v678, %v752
  %v817 = vmax.f32 %v681, %v753
  %v818 = vmax.f32 %v686, %v754
  %v819 = vmax.f32 %v689, %v755
  %v824 = vcombine.high %v756, %v756
  %v825 = vcombine.high %v757, %v757
  %v826 = vcombine.high %v758, %v758
  %v827 = vcombine.high %v759, %v759
  %v829 = vrot.slane %v756, 7
  %v830 = vrot.slane %v824, 7
  %v831 = vrot.slane %v757, 7
  %v832 = vrot.slane %v825, 7
  %v833 = vrot.slane 0.0, 7
  %v834 = vrot.slane %v758, 7
  %v835 = vrot.slane %v826, 7
  %v836 = vrot.slane %v759, 7
  %v837 = vrot.slane %v827, 7
  %vm847 = vcmask 1040384
  %v848 = vsel %vm847, 0.0, %v829
  %v849 = vsel %vm847, 0.0, %v830
  %v850 = vsel %vm847, 0.0, %v831
  %v851 = vsel %vm847, 0.0, %v832
  %v852 = vsel %vm847, 0.0, %v833
  %v853 = vsel %vm847, 0.0, %v834
  %v854 = vsel %vm847, 0.0, %v835
  %v855 = vsel %vm847, 0.0, %v836
  %v856 = vsel %vm847, 0.0, %v837
  %vm857 = vcmask 1044480
  %v858 = vsel %vm857, %v848, 0.0
  %v859 = vsel %vm857, %v849, 0.0
  %v860 = vsel %vm857, %v850, 0.0
  %v861 = vsel %vm857, %v851, 0.0
  %v862 = vsel %vm857, %v852, 0.0
  %v863 = vsel %vm857, %v853, 0.0
  %v864 = vsel %vm857, %v854, 0.0
  %v865 = vsel %vm857, %v855, 0.0
  %v866 = vsel %vm857, %v856, 0.0
  %v871 = vcombine.high %v760, %v760
  %v872 = vcombine.high %v761, %v761
  %v873 = vcombine.high %v762, %v762
  %v874 = vcombine.high %v763, %v763
  %v875 = vrot.slane %v760, 7
  %v876 = vrot.slane %v871, 7
  %v877 = vrot.slane %v761, 7
  %v878 = vrot.slane %v872, 7
  %v879 = vrot.slane %v762, 7
  %v880 = vrot.slane %v873, 7
  %v881 = vrot.slane %v763, 7
  %v882 = vrot.slane %v874, 7
  %v891 = vsel %vm847, 0.0, %v875
  %v892 = vsel %vm847, 0.0, %v876
  %v893 = vsel %vm847, 0.0, %v877
  %v894 = vsel %vm847, 0.0, %v878
  %v895 = vsel %vm847, 0.0, %v879
  %v896 = vsel %vm847, 0.0, %v880
  %v897 = vsel %vm847, 0.0, %v881
  %v898 = vsel %vm847, 0.0, %v882
  %v899 = vsel %vm857, %v891, 0.0
  %v900 = vsel %vm857, %v892, 0.0
  %v901 = vsel %vm857, %v893, 0.0
  %v902 = vsel %vm857, %v894, 0.0
  %v903 = vsel %vm857, %v895, 0.0
  %v904 = vsel %vm857, %v896, 0.0
  %v905 = vsel %vm857, %v897, 0.0
  %v906 = vsel %vm857, %v898, 0.0
  %v911 = vcombine.high %v764, %v764
  %v912 = vcombine.high %v765, %v765
  %v913 = vcombine.high %v766, %v766
  %v914 = vcombine.high %v767, %v767
  %v915 = vrot.slane %v764, 7
  %v916 = vrot.slane %v911, 7
  %v917 = vrot.slane %v765, 7
  %v918 = vrot.slane %v912, 7
  %v919 = vrot.slane %v766, 7
  %v920 = vrot.slane %v913, 7
  %v921 = vrot.slane %v767, 7
  %v922 = vrot.slane %v914, 7
  %v931 = vsel %vm847, 0.0, %v915
  %v932 = vsel %vm847, 0.0, %v916
  %v933 = vsel %vm847, 0.0, %v917
  %v934 = vsel %vm847, 0.0, %v918
  %v935 = vsel %vm847, 0.0, %v919
  %v936 = vsel %vm847, 0.0, %v920
  %v937 = vsel %vm847, 0.0, %v921
  %v938 = vsel %vm847, 0.0, %v922
  %v939 = vsel %vm857, %v931, 0.0
  %v940 = vsel %vm857, %v932, 0.0
  %v941 = vsel %vm857, %v933, 0.0
  %v942 = vsel %vm857, %v934, 0.0
  %v943 = vsel %vm857, %v935, 0.0
  %v944 = vsel %vm857, %v936, 0.0
  %v945 = vsel %vm857, %v937, 0.0
  %v946 = vsel %vm857, %v938, 0.0
  %v951 = vcombine.high %v768, %v768
  %v952 = vcombine.high %v769, %v769
  %v953 = vcombine.high %v770, %v770
  %v954 = vcombine.high %v771, %v771
  %v955 = vrot.slane %v768, 7
  %v956 = vrot.slane %v951, 7
  %v957 = vrot.slane %v769, 7
  %v958 = vrot.slane %v952, 7
  %v959 = vrot.slane %v770, 7
  %v960 = vrot.slane %v953, 7
  %v961 = vrot.slane %v771, 7
  %v962 = vrot.slane %v954, 7
  %v971 = vsel %vm847, 0.0, %v955
  %v972 = vsel %vm847, 0.0, %v956
  %v973 = vsel %vm847, 0.0, %v957
  %v974 = vsel %vm847, 0.0, %v958
  %v975 = vsel %vm847, 0.0, %v959
  %v976 = vsel %vm847, 0.0, %v960
  %v977 = vsel %vm847, 0.0, %v961
  %v978 = vsel %vm847, 0.0, %v962
  %v979 = vsel %vm857, %v971, 0.0
  %v980 = vsel %vm857, %v972, 0.0
  %v981 = vsel %vm857, %v973, 0.0
  %v982 = vsel %vm857, %v974, 0.0
  %v983 = vsel %vm857, %v975, 0.0
  %v984 = vsel %vm857, %v976, 0.0
  %v985 = vsel %vm857, %v977, 0.0
  %v986 = vsel %vm857, %v978, 0.0
  %v991 = vcombine.high %v772, %v772
  %v992 = vcombine.high %v773, %v773
  %v993 = vcombine.high %v774, %v774
  %v994 = vcombine.high %v775, %v775
  %v995 = vrot.slane %v772, 7
  %v996 = vrot.slane %v991, 7
  %v997 = vrot.slane %v773, 7
  %v998 = vrot.slane %v992, 7
  %v999 = vrot.slane %v774, 7
  %v1000 = vrot.slane %v993, 7
  %v1001 = vrot.slane %v775, 7
  %v1002 = vrot.slane %v994, 7
  %v1011 = vsel %vm847, 0.0, %v995
  %v1012 = vsel %vm847, 0.0, %v996
  %v1013 = vsel %vm847, 0.0, %v997
  %v1014 = vsel %vm847, 0.0, %v998
  %v1015 = vsel %vm847, 0.0, %v999
  %v1016 = vsel %vm847, 0.0, %v1000
  %v1017 = vsel %vm847, 0.0, %v1001
  %v1018 = vsel %vm847, 0.0, %v1002
  %v1019 = vsel %vm857, %v1011, 0.0
  %v1020 = vsel %vm857, %v1012, 0.0
  %v1021 = vsel %vm857, %v1013, 0.0
  %v1022 = vsel %vm857, %v1014, 0.0
  %v1023 = vsel %vm857, %v1015, 0.0
  %v1024 = vsel %vm857, %v1016, 0.0
  %v1025 = vsel %vm857, %v1017, 0.0
  %v1026 = vsel %vm857, %v1018, 0.0
  %v1031 = vcombine.high %v776, %v776
  %v1032 = vcombine.high %v777, %v777
  %v1033 = vcombine.high %v778, %v778
  %v1034 = vcombine.high %v779, %v779
  %v1035 = vrot.slane %v776, 7
  %v1036 = vrot.slane %v1031, 7
  %v1037 = vrot.slane %v777, 7
  %v1038 = vrot.slane %v1032, 7
  %v1039 = vrot.slane %v778, 7
  %v1040 = vrot.slane %v1033, 7
  %v1041 = vrot.slane %v779, 7
  %v1042 = vrot.slane %v1034, 7
  %v1051 = vsel %vm847, 0.0, %v1035
  %v1052 = vsel %vm847, 0.0, %v1036
  %v1053 = vsel %vm847, 0.0, %v1037
  %v1054 = vsel %vm847, 0.0, %v1038
  %v1055 = vsel %vm847, 0.0, %v1039
  %v1056 = vsel %vm847, 0.0, %v1040
  %v1057 = vsel %vm847, 0.0, %v1041
  %v1058 = vsel %vm847, 0.0, %v1042
  %v1059 = vsel %vm857, %v1051, 0.0
  %v1060 = vsel %vm857, %v1052, 0.0
  %v1061 = vsel %vm857, %v1053, 0.0
  %v1062 = vsel %vm857, %v1054, 0.0
  %v1063 = vsel %vm857, %v1055, 0.0
  %v1064 = vsel %vm857, %v1056, 0.0
  %v1065 = vsel %vm857, %v1057, 0.0
  %v1066 = vsel %vm857, %v1058, 0.0
  %v1071 = vcombine.high %v780, %v780
  %v1072 = vcombine.high %v781, %v781
  %v1073 = vcombine.high %v782, %v782
  %v1074 = vcombine.high %v783, %v783
  %v1075 = vrot.slane %v780, 7
  %v1076 = vrot.slane %v1071, 7
  %v1077 = vrot.slane %v781, 7
  %v1078 = vrot.slane %v1072, 7
  %v1079 = vrot.slane %v782, 7
  %v1080 = vrot.slane %v1073, 7
  %v1081 = vrot.slane %v783, 7
  %v1082 = vrot.slane %v1074, 7
  %v1091 = vsel %vm847, 0.0, %v1075
  %v1092 = vsel %vm847, 0.0, %v1076
  %v1093 = vsel %vm847, 0.0, %v1077
  %v1094 = vsel %vm847, 0.0, %v1078
  %v1095 = vsel %vm847, 0.0, %v1079
  %v1096 = vsel %vm847, 0.0, %v1080
  %v1097 = vsel %vm847, 0.0, %v1081
  %v1098 = vsel %vm847, 0.0, %v1082
  %v1099 = vsel %vm857, %v1091, 0.0
  %v1100 = vsel %vm857, %v1092, 0.0
  %v1101 = vsel %vm857, %v1093, 0.0
  %v1102 = vsel %vm857, %v1094, 0.0
  %v1103 = vsel %vm857, %v1095, 0.0
  %v1104 = vsel %vm857, %v1096, 0.0
  %v1105 = vsel %vm857, %v1097, 0.0
  %v1106 = vsel %vm857, %v1098, 0.0
  %v1111 = vcombine.high %v784, %v784
  %v1112 = vcombine.high %v785, %v785
  %v1113 = vcombine.high %v786, %v786
  %v1114 = vcombine.high %v787, %v787
  %v1115 = vrot.slane %v784, 7
  %v1116 = vrot.slane %v1111, 7
  %v1117 = vrot.slane %v785, 7
  %v1118 = vrot.slane %v1112, 7
  %v1119 = vrot.slane %v786, 7
  %v1120 = vrot.slane %v1113, 7
  %v1121 = vrot.slane %v787, 7
  %v1122 = vrot.slane %v1114, 7
  %v1131 = vsel %vm847, 0.0, %v1115
  %v1132 = vsel %vm847, 0.0, %v1116
  %v1133 = vsel %vm847, 0.0, %v1117
  %v1134 = vsel %vm847, 0.0, %v1118
  %v1135 = vsel %vm847, 0.0, %v1119
  %v1136 = vsel %vm847, 0.0, %v1120
  %v1137 = vsel %vm847, 0.0, %v1121
  %v1138 = vsel %vm847, 0.0, %v1122
  %v1139 = vsel %vm857, %v1131, 0.0
  %v1140 = vsel %vm857, %v1132, 0.0
  %v1141 = vsel %vm857, %v1133, 0.0
  %v1142 = vsel %vm857, %v1134, 0.0
  %v1143 = vsel %vm857, %v1135, 0.0
  %v1144 = vsel %vm857, %v1136, 0.0
  %v1145 = vsel %vm857, %v1137, 0.0
  %v1146 = vsel %vm857, %v1138, 0.0
  %v1151 = vcombine.high %v788, %v788
  %v1152 = vcombine.high %v789, %v789
  %v1153 = vcombine.high %v790, %v790
  %v1154 = vcombine.high %v791, %v791
  %v1155 = vrot.slane %v788, 7
  %v1156 = vrot.slane %v1151, 7
  %v1157 = vrot.slane %v789, 7
  %v1158 = vrot.slane %v1152, 7
  %v1159 = vrot.slane %v790, 7
  %v1160 = vrot.slane %v1153, 7
  %v1161 = vrot.slane %v791, 7
  %v1162 = vrot.slane %v1154, 7
  %v1171 = vsel %vm847, 0.0, %v1155
  %v1172 = vsel %vm847, 0.0, %v1156
  %v1173 = vsel %vm847, 0.0, %v1157
  %v1174 = vsel %vm847, 0.0, %v1158
  %v1175 = vsel %vm847, 0.0, %v1159
  %v1176 = vsel %vm847, 0.0, %v1160
  %v1177 = vsel %vm847, 0.0, %v1161
  %v1178 = vsel %vm847, 0.0, %v1162
  %v1179 = vsel %vm857, %v1171, 0.0
  %v1180 = vsel %vm857, %v1172, 0.0
  %v1181 = vsel %vm857, %v1173, 0.0
  %v1182 = vsel %vm857, %v1174, 0.0
  %v1183 = vsel %vm857, %v1175, 0.0
  %v1184 = vsel %vm857, %v1176, 0.0
  %v1185 = vsel %vm857, %v1177, 0.0
  %v1186 = vsel %vm857, %v1178, 0.0
  %v1191 = vcombine.high %v792, %v792
  %v1192 = vcombine.high %v793, %v793
  %v1193 = vcombine.high %v794, %v794
  %v1194 = vcombine.high %v795, %v795
  %v1195 = vrot.slane %v792, 7
  %v1196 = vrot.slane %v1191, 7
  %v1197 = vrot.slane %v793, 7
  %v1198 = vrot.slane %v1192, 7
  %v1199 = vrot.slane %v794, 7
  %v1200 = vrot.slane %v1193, 7
  %v1201 = vrot.slane %v795, 7
  %v1202 = vrot.slane %v1194, 7
  %v1211 = vsel %vm847, 0.0, %v1195
  %v1212 = vsel %vm847, 0.0, %v1196
  %v1213 = vsel %vm847, 0.0, %v1197
  %v1214 = vsel %vm847, 0.0, %v1198
  %v1215 = vsel %vm847, 0.0, %v1199
  %v1216 = vsel %vm847, 0.0, %v1200
  %v1217 = vsel %vm847, 0.0, %v1201
  %v1218 = vsel %vm847, 0.0, %v1202
  %v1219 = vsel %vm857, %v1211, 0.0
  %v1220 = vsel %vm857, %v1212, 0.0
  %v1221 = vsel %vm857, %v1213, 0.0
  %v1222 = vsel %vm857, %v1214, 0.0
  %v1223 = vsel %vm857, %v1215, 0.0
  %v1224 = vsel %vm857, %v1216, 0.0
  %v1225 = vsel %vm857, %v1217, 0.0
  %v1226 = vsel %vm857, %v1218, 0.0
  %v1231 = vcombine.high %v796, %v796
  %v1232 = vcombine.high %v797, %v797
  %v1233 = vcombine.high %v798, %v798
  %v1234 = vcombine.high %v799, %v799
  %v1235 = vrot.slane %v796, 7
  %v1236 = vrot.slane %v1231, 7
  %v1237 = vrot.slane %v797, 7
  %v1238 = vrot.slane %v1232, 7
  %v1239 = vrot.slane %v798, 7
  %v1240 = vrot.slane %v1233, 7
  %v1241 = vrot.slane %v799, 7
  %v1242 = vrot.slane %v1234, 7
  %v1251 = vsel %vm847, 0.0, %v1235
  %v1252 = vsel %vm847, 0.0, %v1236
  %v1253 = vsel %vm847, 0.0, %v1237
  %v1254 = vsel %vm847, 0.0, %v1238
  %v1255 = vsel %vm847, 0.0, %v1239
  %v1256 = vsel %vm847, 0.0, %v1240
  %v1257 = vsel %vm847, 0.0, %v1241
  %v1258 = vsel %vm847, 0.0, %v1242
  %v1259 = vsel %vm857, %v1251, 0.0
  %v1260 = vsel %vm857, %v1252, 0.0
  %v1261 = vsel %vm857, %v1253, 0.0
  %v1262 = vsel %vm857, %v1254, 0.0
  %v1263 = vsel %vm857, %v1255, 0.0
  %v1264 = vsel %vm857, %v1256, 0.0
  %v1265 = vsel %vm857, %v1257, 0.0
  %v1266 = vsel %vm857, %v1258, 0.0
  %v1271 = vcombine.high %v800, %v800
  %v1272 = vcombine.high %v801, %v801
  %v1273 = vcombine.high %v802, %v802
  %v1274 = vcombine.high %v803, %v803
  %v1275 = vrot.slane %v800, 7
  %v1276 = vrot.slane %v1271, 7
  %v1277 = vrot.slane %v801, 7
  %v1278 = vrot.slane %v1272, 7
  %v1279 = vrot.slane %v802, 7
  %v1280 = vrot.slane %v1273, 7
  %v1281 = vrot.slane %v803, 7
  %v1282 = vrot.slane %v1274, 7
  %v1291 = vsel %vm847, 0.0, %v1275
  %v1292 = vsel %vm847, 0.0, %v1276
  %v1293 = vsel %vm847, 0.0, %v1277
  %v1294 = vsel %vm847, 0.0, %v1278
  %v1295 = vsel %vm847, 0.0, %v1279
  %v1296 = vsel %vm847, 0.0, %v1280
  %v1297 = vsel %vm847, 0.0, %v1281
  %v1298 = vsel %vm847, 0.0, %v1282
  %v1299 = vsel %vm857, %v1291, 0.0
  %v1300 = vsel %vm857, %v1292, 0.0
  %v1301 = vsel %vm857, %v1293, 0.0
  %v1302 = vsel %vm857, %v1294, 0.0
  %v1303 = vsel %vm857, %v1295, 0.0
  %v1304 = vsel %vm857, %v1296, 0.0
  %v1305 = vsel %vm857, %v1297, 0.0
  %v1306 = vsel %vm857, %v1298, 0.0
  %v1311 = vcombine.high %v804, %v804
  %v1312 = vcombine.high %v805, %v805
  %v1313 = vcombine.high %v806, %v806
  %v1314 = vcombine.high %v807, %v807
  %v1315 = vrot.slane %v804, 7
  %v1316 = vrot.slane %v1311, 7
  %v1317 = vrot.slane %v805, 7
  %v1318 = vrot.slane %v1312, 7
  %v1319 = vrot.slane %v806, 7
  %v1320 = vrot.slane %v1313, 7
  %v1321 = vrot.slane %v807, 7
  %v1322 = vrot.slane %v1314, 7
  %v1331 = vsel %vm847, 0.0, %v1315
  %v1332 = vsel %vm847, 0.0, %v1316
  %v1333 = vsel %vm847, 0.0, %v1317
  %v1334 = vsel %vm847, 0.0, %v1318
  %v1335 = vsel %vm847, 0.0, %v1319
  %v1336 = vsel %vm847, 0.0, %v1320
  %v1337 = vsel %vm847, 0.0, %v1321
  %v1338 = vsel %vm847, 0.0, %v1322
  %v1339 = vsel %vm857, %v1331, 0.0
  %v1340 = vsel %vm857, %v1332, 0.0
  %v1341 = vsel %vm857, %v1333, 0.0
  %v1342 = vsel %vm857, %v1334, 0.0
  %v1343 = vsel %vm857, %v1335, 0.0
  %v1344 = vsel %vm857, %v1336, 0.0
  %v1345 = vsel %vm857, %v1337, 0.0
  %v1346 = vsel %vm857, %v1338, 0.0
  %v1351 = vcombine.high %v808, %v808
  %v1352 = vcombine.high %v809, %v809
  %v1353 = vcombine.high %v810, %v810
  %v1354 = vcombine.high %v811, %v811
  %v1355 = vrot.slane %v808, 7
  %v1356 = vrot.slane %v1351, 7
  %v1357 = vrot.slane %v809, 7
  %v1358 = vrot.slane %v1352, 7
  %v1359 = vrot.slane %v810, 7
  %v1360 = vrot.slane %v1353, 7
  %v1361 = vrot.slane %v811, 7
  %v1362 = vrot.slane %v1354, 7
  %v1371 = vsel %vm847, 0.0, %v1355
  %v1372 = vsel %vm847, 0.0, %v1356
  %v1373 = vsel %vm847, 0.0, %v1357
  %v1374 = vsel %vm847, 0.0, %v1358
  %v1375 = vsel %vm847, 0.0, %v1359
  %v1376 = vsel %vm847, 0.0, %v1360
  %v1377 = vsel %vm847, 0.0, %v1361
  %v1378 = vsel %vm847, 0.0, %v1362
  %v1379 = vsel %vm857, %v1371, 0.0
  %v1380 = vsel %vm857, %v1372, 0.0
  %v1381 = vsel %vm857, %v1373, 0.0
  %v1382 = vsel %vm857, %v1374, 0.0
  %v1383 = vsel %vm857, %v1375, 0.0
  %v1384 = vsel %vm857, %v1376, 0.0
  %v1385 = vsel %vm857, %v1377, 0.0
  %v1386 = vsel %vm857, %v1378, 0.0
  %v1391 = vcombine.high %v812, %v812
  %v1392 = vcombine.high %v813, %v813
  %v1393 = vcombine.high %v814, %v814
  %v1394 = vcombine.high %v815, %v815
  %v1395 = vrot.slane %v812, 7
  %v1396 = vrot.slane %v1391, 7
  %v1397 = vrot.slane %v813, 7
  %v1398 = vrot.slane %v1392, 7
  %v1399 = vrot.slane %v814, 7
  %v1400 = vrot.slane %v1393, 7
  %v1401 = vrot.slane %v815, 7
  %v1402 = vrot.slane %v1394, 7
  %v1411 = vsel %vm847, 0.0, %v1395
  %v1412 = vsel %vm847, 0.0, %v1396
  %v1413 = vsel %vm847, 0.0, %v1397
  %v1414 = vsel %vm847, 0.0, %v1398
  %v1415 = vsel %vm847, 0.0, %v1399
  %v1416 = vsel %vm847, 0.0, %v1400
  %v1417 = vsel %vm847, 0.0, %v1401
  %v1418 = vsel %vm847, 0.0, %v1402
  %v1419 = vsel %vm857, %v1411, 0.0
  %v1420 = vsel %vm857, %v1412, 0.0
  %v1421 = vsel %vm857, %v1413, 0.0
  %v1422 = vsel %vm857, %v1414, 0.0
  %v1423 = vsel %vm857, %v1415, 0.0
  %v1424 = vsel %vm857, %v1416, 0.0
  %v1425 = vsel %vm857, %v1417, 0.0
  %v1426 = vsel %vm857, %v1418, 0.0
  %v1431 = vcombine.high %v816, %v816
  %v1432 = vcombine.high %v817, %v817
  %v1433 = vcombine.high %v818, %v818
  %v1434 = vcombine.high %v819, %v819
  %v1435 = vrot.slane %v816, 7
  %v1436 = vrot.slane %v1431, 7
  %v1437 = vrot.slane %v817, 7
  %v1438 = vrot.slane %v1432, 7
  %v1439 = vrot.slane %v818, 7
  %v1440 = vrot.slane %v1433, 7
  %v1441 = vrot.slane %v819, 7
  %v1442 = vrot.slane %v1434, 7
  %v1451 = vsel %vm847, 0.0, %v1435
  %v1452 = vsel %vm847, 0.0, %v1436
  %v1453 = vsel %vm847, 0.0, %v1437
  %v1454 = vsel %vm847, 0.0, %v1438
  %v1455 = vsel %vm847, 0.0, %v1439
  %v1456 = vsel %vm847, 0.0, %v1440
  %v1457 = vsel %vm847, 0.0, %v1441
  %v1458 = vsel %vm847, 0.0, %v1442
  %v1459 = vsel %vm857, %v1451, 0.0
  %v1460 = vsel %vm857, %v1452, 0.0
  %v1461 = vsel %vm857, %v1453, 0.0
  %v1462 = vsel %vm857, %v1454, 0.0
  %v1463 = vsel %vm857, %v1455, 0.0
  %v1464 = vsel %vm857, %v1456, 0.0
  %v1465 = vsel %vm857, %v1457, 0.0
  %v1466 = vsel %vm857, %v1458, 0.0
  %v1474 = vrot.slane %v862, 1
  %v1475 = vrot.slane %v1339, 1
  %v1476 = vrot.slane %v1340, 1
  %v1477 = vrot.slane %v1341, 1
  %v1478 = vrot.slane %v1343, 1
  %v1479 = vrot.slane %v1344, 1
  %v1480 = vrot.slane %v1345, 1
  %1481 = vrot.lane.b32.xlu0 %v1474, 16
  %v1482 = vpop.permute.xlu0 %1481
  %1483 = vrot.lane.b32.xlu0 %v1475, 16
  %v1484 = vpop.permute.xlu0 %1483
  %1485 = vrot.lane.b32.xlu0 %v1476, 16
  %v1486 = vpop.permute.xlu0 %1485
  %1487 = vrot.lane.b32.xlu0 %v1477, 16
  %v1488 = vpop.permute.xlu0 %1487
  %1489 = vrot.lane.b32.xlu0 %v1478, 16
  %v1490 = vpop.permute.xlu0 %1489
  %1491 = vrot.lane.b32.xlu0 %v1479, 16
  %v1492 = vpop.permute.xlu0 %1491
  %1493 = vrot.lane.b32.xlu0 %v1480, 16
  %v1494 = vpop.permute.xlu0 %1493
  %v1508 = vrot.slane %v1379, 1
  %v1509 = vrot.slane %v1380, 1
  %v1510 = vrot.slane %v1381, 1
  %v1511 = vrot.slane %v1383, 1
  %v1512 = vrot.slane %v1384, 1
  %v1513 = vrot.slane %v1385, 1
  %1514 = vrot.lane.b32.xlu0 %v1474, 32
  %v1515 = vpop.permute.xlu0 %1514
  %1516 = vrot.lane.b32.xlu0 %v1508, 32
  %v1517 = vpop.permute.xlu0 %1516
  %1518 = vrot.lane.b32.xlu0 %v1509, 32
  %v1519 = vpop.permute.xlu0 %1518
  %1520 = vrot.lane.b32.xlu0 %v1510, 32
  %v1521 = vpop.permute.xlu0 %1520
  %1522 = vrot.lane.b32.xlu0 %v1511, 32
  %v1523 = vpop.permute.xlu0 %1522
  %1524 = vrot.lane.b32.xlu0 %v1512, 32
  %v1525 = vpop.permute.xlu0 %1524
  %1526 = vrot.lane.b32.xlu0 %v1513, 32
  %v1527 = vpop.permute.xlu0 %1526
  %v1541 = vrot.slane %v1419, 1
  %v1542 = vrot.slane %v1420, 1
  %v1543 = vrot.slane %v1421, 1
  %v1544 = vrot.slane %v1423, 1
  %v1545 = vrot.slane %v1424, 1
  %v1546 = vrot.slane %v1425, 1
  %1547 = vrot.lane.b32.xlu0 %v1474, 48
  %v1548 = vpop.permute.xlu0 %1547
  %1549 = vrot.lane.b32.xlu0 %v1541, 48
  %v1550 = vpop.permute.xlu0 %1549
  %1551 = vrot.lane.b32.xlu0 %v1542, 48
  %v1552 = vpop.permute.xlu0 %1551
  %1553 = vrot.lane.b32.xlu0 %v1543, 48
  %v1554 = vpop.permute.xlu0 %1553
  %1555 = vrot.lane.b32.xlu0 %v1544, 48
  %v1556 = vpop.permute.xlu0 %1555
  %1557 = vrot.lane.b32.xlu0 %v1545, 48
  %v1558 = vpop.permute.xlu0 %1557
  %1559 = vrot.lane.b32.xlu0 %v1546, 48
  %v1560 = vpop.permute.xlu0 %1559
  %1576 = vrot.lane.b32.xlu0 %v979, 64
  %v1577 = vpop.permute.xlu0 %1576
  %1578 = vrot.lane.b32.xlu0 %v980, 64
  %v1579 = vpop.permute.xlu0 %1578
  %1580 = vrot.lane.b32.xlu0 %v981, 64
  %v1581 = vpop.permute.xlu0 %1580
  %1582 = vrot.lane.b32.xlu0 %v982, 64
  %v1583 = vpop.permute.xlu0 %1582
  %1584 = vrot.lane.b32.xlu0 %v983, 64
  %v1585 = vpop.permute.xlu0 %1584
  %1586 = vrot.lane.b32.xlu0 %v984, 64
  %v1587 = vpop.permute.xlu0 %1586
  %1588 = vrot.lane.b32.xlu0 %v985, 64
  %v1589 = vpop.permute.xlu0 %1588
  %1590 = vrot.lane.b32.xlu0 %v986, 64
  %v1591 = vpop.permute.xlu0 %1590
  %v1608 = vrot.slane %v858, 1
  %v1609 = vrot.slane %v859, 1
  %v1610 = vrot.slane %v860, 1
  %v1611 = vrot.slane %v861, 1
  %v1612 = vrot.slane %v863, 1
  %v1613 = vrot.slane %v864, 1
  %v1614 = vrot.slane %v865, 1
  %v1615 = vrot.slane %v866, 1
  %1616 = vrot.lane.b32.xlu0 %v1608, 80
  %v1617 = vpop.permute.xlu0 %1616
  %1618 = vrot.lane.b32.xlu0 %v1609, 80
  %v1619 = vpop.permute.xlu0 %1618
  %1620 = vrot.lane.b32.xlu0 %v1610, 80
  %v1621 = vpop.permute.xlu0 %1620
  %1622 = vrot.lane.b32.xlu0 %v1611, 80
  %v1623 = vpop.permute.xlu0 %1622
  %1624 = vrot.lane.b32.xlu0 %v1612, 80
  %v1625 = vpop.permute.xlu0 %1624
  %1626 = vrot.lane.b32.xlu0 %v1613, 80
  %v1627 = vpop.permute.xlu0 %1626
  %1628 = vrot.lane.b32.xlu0 %v1614, 80
  %v1629 = vpop.permute.xlu0 %1628
  %1630 = vrot.lane.b32.xlu0 %v1615, 80
  %v1631 = vpop.permute.xlu0 %1630
  %v1648 = vrot.slane %v899, 1
  %v1649 = vrot.slane %v900, 1
  %v1650 = vrot.slane %v901, 1
  %v1651 = vrot.slane %v902, 1
  %v1652 = vrot.slane %v903, 1
  %v1653 = vrot.slane %v904, 1
  %v1654 = vrot.slane %v905, 1
  %v1655 = vrot.slane %v906, 1
  %1656 = vrot.lane.b32.xlu0 %v1648, 96
  %v1657 = vpop.permute.xlu0 %1656
  %1658 = vrot.lane.b32.xlu0 %v1649, 96
  %v1659 = vpop.permute.xlu0 %1658
  %1660 = vrot.lane.b32.xlu0 %v1650, 96
  %v1661 = vpop.permute.xlu0 %1660
  %1662 = vrot.lane.b32.xlu0 %v1651, 96
  %v1663 = vpop.permute.xlu0 %1662
  %1664 = vrot.lane.b32.xlu0 %v1652, 96
  %v1665 = vpop.permute.xlu0 %1664
  %1666 = vrot.lane.b32.xlu0 %v1653, 96
  %v1667 = vpop.permute.xlu0 %1666
  %1668 = vrot.lane.b32.xlu0 %v1654, 96
  %v1669 = vpop.permute.xlu0 %1668
  %1670 = vrot.lane.b32.xlu0 %v1655, 96
  %v1671 = vpop.permute.xlu0 %1670
  %v1688 = vrot.slane %v939, 1
  %v1689 = vrot.slane %v940, 1
  %v1690 = vrot.slane %v941, 1
  %v1691 = vrot.slane %v942, 1
  %v1692 = vrot.slane %v943, 1
  %v1693 = vrot.slane %v944, 1
  %v1694 = vrot.slane %v945, 1
  %v1695 = vrot.slane %v946, 1
  %1696 = vrot.lane.b32.xlu0 %v1688, 112
  %v1697 = vpop.permute.xlu0 %1696
  %1698 = vrot.lane.b32.xlu0 %v1689, 112
  %v1699 = vpop.permute.xlu0 %1698
  %1700 = vrot.lane.b32.xlu0 %v1690, 112
  %v1701 = vpop.permute.xlu0 %1700
  %1702 = vrot.lane.b32.xlu0 %v1691, 112
  %v1703 = vpop.permute.xlu0 %1702
  %1704 = vrot.lane.b32.xlu0 %v1692, 112
  %v1705 = vpop.permute.xlu0 %1704
  %1706 = vrot.lane.b32.xlu0 %v1693, 112
  %v1707 = vpop.permute.xlu0 %1706
  %1708 = vrot.lane.b32.xlu0 %v1694, 112
  %v1709 = vpop.permute.xlu0 %1708
  %1710 = vrot.lane.b32.xlu0 %v1695, 112
  %v1711 = vpop.permute.xlu0 %1710
  %v1728 = vrot.slane %v1019, 1
  %v1729 = vrot.slane %v1020, 1
  %v1730 = vrot.slane %v1021, 1
  %v1731 = vrot.slane %v1022, 1
  %v1732 = vrot.slane %v1023, 1
  %v1733 = vrot.slane %v1024, 1
  %v1734 = vrot.slane %v1025, 1
  %v1735 = vrot.slane %v1026, 1
  %1736 = vrot.lane.b32.xlu0 %v1728, 16
  %v1737 = vpop.permute.xlu0 %1736
  %1738 = vrot.lane.b32.xlu0 %v1729, 16
  %v1739 = vpop.permute.xlu0 %1738
  %1740 = vrot.lane.b32.xlu0 %v1730, 16
  %v1741 = vpop.permute.xlu0 %1740
  %1742 = vrot.lane.b32.xlu0 %v1731, 16
  %v1743 = vpop.permute.xlu0 %1742
  %1744 = vrot.lane.b32.xlu0 %v1732, 16
  %v1745 = vpop.permute.xlu0 %1744
  %1746 = vrot.lane.b32.xlu0 %v1733, 16
  %v1747 = vpop.permute.xlu0 %1746
  %1748 = vrot.lane.b32.xlu0 %v1734, 16
  %v1749 = vpop.permute.xlu0 %1748
  %1750 = vrot.lane.b32.xlu0 %v1735, 16
  %v1751 = vpop.permute.xlu0 %1750
  %v1768 = vrot.slane %v1059, 1
  %v1769 = vrot.slane %v1060, 1
  %v1770 = vrot.slane %v1061, 1
  %v1771 = vrot.slane %v1062, 1
  %v1772 = vrot.slane %v1063, 1
  %v1773 = vrot.slane %v1064, 1
  %v1774 = vrot.slane %v1065, 1
  %v1775 = vrot.slane %v1066, 1
  %1776 = vrot.lane.b32.xlu0 %v1768, 32
  %v1777 = vpop.permute.xlu0 %1776
  %1778 = vrot.lane.b32.xlu0 %v1769, 32
  %v1779 = vpop.permute.xlu0 %1778
  %1780 = vrot.lane.b32.xlu0 %v1770, 32
  %v1781 = vpop.permute.xlu0 %1780
  %1782 = vrot.lane.b32.xlu0 %v1771, 32
  %v1783 = vpop.permute.xlu0 %1782
  %1784 = vrot.lane.b32.xlu0 %v1772, 32
  %v1785 = vpop.permute.xlu0 %1784
  %1786 = vrot.lane.b32.xlu0 %v1773, 32
  %v1787 = vpop.permute.xlu0 %1786
  %1788 = vrot.lane.b32.xlu0 %v1774, 32
  %v1789 = vpop.permute.xlu0 %1788
  %1790 = vrot.lane.b32.xlu0 %v1775, 32
  %v1791 = vpop.permute.xlu0 %1790
  %v1808 = vrot.slane %v1099, 1
  %v1809 = vrot.slane %v1100, 1
  %v1810 = vrot.slane %v1101, 1
  %v1811 = vrot.slane %v1102, 1
  %v1812 = vrot.slane %v1103, 1
  %v1813 = vrot.slane %v1104, 1
  %v1814 = vrot.slane %v1105, 1
  %v1815 = vrot.slane %v1106, 1
  %1816 = vrot.lane.b32.xlu0 %v1808, 48
  %v1817 = vpop.permute.xlu0 %1816
  %1818 = vrot.lane.b32.xlu0 %v1809, 48
  %v1819 = vpop.permute.xlu0 %1818
  %1820 = vrot.lane.b32.xlu0 %v1810, 48
  %v1821 = vpop.permute.xlu0 %1820
  %1822 = vrot.lane.b32.xlu0 %v1811, 48
  %v1823 = vpop.permute.xlu0 %1822
  %1824 = vrot.lane.b32.xlu0 %v1812, 48
  %v1825 = vpop.permute.xlu0 %1824
  %1826 = vrot.lane.b32.xlu0 %v1813, 48
  %v1827 = vpop.permute.xlu0 %1826
  %1828 = vrot.lane.b32.xlu0 %v1814, 48
  %v1829 = vpop.permute.xlu0 %1828
  %1830 = vrot.lane.b32.xlu0 %v1815, 48
  %v1831 = vpop.permute.xlu0 %1830
  %1848 = vrot.lane.b32.xlu0 %v1299, 64
  %v1849 = vpop.permute.xlu0 %1848
  %1850 = vrot.lane.b32.xlu0 %v1300, 64
  %v1851 = vpop.permute.xlu0 %1850
  %1852 = vrot.lane.b32.xlu0 %v1301, 64
  %v1853 = vpop.permute.xlu0 %1852
  %1854 = vrot.lane.b32.xlu0 %v1302, 64
  %v1855 = vpop.permute.xlu0 %1854
  %1856 = vrot.lane.b32.xlu0 %v1303, 64
  %v1857 = vpop.permute.xlu0 %1856
  %1858 = vrot.lane.b32.xlu0 %v1304, 64
  %v1859 = vpop.permute.xlu0 %1858
  %1860 = vrot.lane.b32.xlu0 %v1305, 64
  %v1861 = vpop.permute.xlu0 %1860
  %1862 = vrot.lane.b32.xlu0 %v1306, 64
  %v1863 = vpop.permute.xlu0 %1862
  %v1880 = vrot.slane %v1179, 1
  %v1881 = vrot.slane %v1180, 1
  %v1882 = vrot.slane %v1181, 1
  %v1883 = vrot.slane %v1182, 1
  %v1884 = vrot.slane %v1183, 1
  %v1885 = vrot.slane %v1184, 1
  %v1886 = vrot.slane %v1185, 1
  %v1887 = vrot.slane %v1186, 1
  %1888 = vrot.lane.b32.xlu0 %v1880, 80
  %v1889 = vpop.permute.xlu0 %1888
  %1890 = vrot.lane.b32.xlu0 %v1881, 80
  %v1891 = vpop.permute.xlu0 %1890
  %1892 = vrot.lane.b32.xlu0 %v1882, 80
  %v1893 = vpop.permute.xlu0 %1892
  %1894 = vrot.lane.b32.xlu0 %v1883, 80
  %v1895 = vpop.permute.xlu0 %1894
  %1896 = vrot.lane.b32.xlu0 %v1884, 80
  %v1897 = vpop.permute.xlu0 %1896
  %1898 = vrot.lane.b32.xlu0 %v1885, 80
  %v1899 = vpop.permute.xlu0 %1898
  %1900 = vrot.lane.b32.xlu0 %v1886, 80
  %v1901 = vpop.permute.xlu0 %1900
  %1902 = vrot.lane.b32.xlu0 %v1887, 80
  %v1903 = vpop.permute.xlu0 %1902
  %v1920 = vrot.slane %v1219, 1
  %v1921 = vrot.slane %v1220, 1
  %v1922 = vrot.slane %v1221, 1
  %v1923 = vrot.slane %v1222, 1
  %v1924 = vrot.slane %v1223, 1
  %v1925 = vrot.slane %v1224, 1
  %v1926 = vrot.slane %v1225, 1
  %v1927 = vrot.slane %v1226, 1
  %1928 = vrot.lane.b32.xlu0 %v1920, 96
  %v1929 = vpop.permute.xlu0 %1928
  %1930 = vrot.lane.b32.xlu0 %v1921, 96
  %v1931 = vpop.permute.xlu0 %1930
  %1932 = vrot.lane.b32.xlu0 %v1922, 96
  %v1933 = vpop.permute.xlu0 %1932
  %1934 = vrot.lane.b32.xlu0 %v1923, 96
  %v1935 = vpop.permute.xlu0 %1934
  %1936 = vrot.lane.b32.xlu0 %v1924, 96
  %v1937 = vpop.permute.xlu0 %1936
  %1938 = vrot.lane.b32.xlu0 %v1925, 96
  %v1939 = vpop.permute.xlu0 %1938
  %1940 = vrot.lane.b32.xlu0 %v1926, 96
  %v1941 = vpop.permute.xlu0 %1940
  %1942 = vrot.lane.b32.xlu0 %v1927, 96
  %v1943 = vpop.permute.xlu0 %1942
  %v1960 = vrot.slane %v1259, 1
  %v1961 = vrot.slane %v1260, 1
  %v1962 = vrot.slane %v1261, 1
  %v1963 = vrot.slane %v1262, 1
  %v1964 = vrot.slane %v1263, 1
  %v1965 = vrot.slane %v1264, 1
  %v1966 = vrot.slane %v1265, 1
  %v1967 = vrot.slane %v1266, 1
  %1968 = vrot.lane.b32.xlu0 %v1960, 112
  %v1969 = vpop.permute.xlu0 %1968
  %1970 = vrot.lane.b32.xlu0 %v1961, 112
  %v1971 = vpop.permute.xlu0 %1970
  %1972 = vrot.lane.b32.xlu0 %v1962, 112
  %v1973 = vpop.permute.xlu0 %1972
  %1974 = vrot.lane.b32.xlu0 %v1963, 112
  %v1975 = vpop.permute.xlu0 %1974
  %1976 = vrot.lane.b32.xlu0 %v1964, 112
  %v1977 = vpop.permute.xlu0 %1976
  %1978 = vrot.lane.b32.xlu0 %v1965, 112
  %v1979 = vpop.permute.xlu0 %1978
  %1980 = vrot.lane.b32.xlu0 %v1966, 112
  %v1981 = vpop.permute.xlu0 %1980
  %1982 = vrot.lane.b32.xlu0 %v1967, 112
  %v1983 = vpop.permute.xlu0 %1982
  %vm1992 = vcmask 130048
  %v1993 = vsel %vm1992, %v862, %v1482
  %v1994 = vsel %vm1992, %v1459, %v1484
  %v1995 = vsel %vm1992, %v1460, %v1486
  %v1996 = vsel %vm1992, %v1461, %v1488
  %v1997 = vsel %vm1992, %v1463, %v1490
  %v1998 = vsel %vm1992, %v1464, %v1492
  %v1999 = vsel %vm1992, %v1465, %v1494
  %v2000 = vsel %vm306, %v1993, %v1515
  %v2001 = vsel %vm306, %v1994, %v1517
  %v2002 = vsel %vm306, %v1995, %v1519
  %v2003 = vsel %vm306, %v1996, %v1521
  %v2004 = vsel %vm306, %v1997, %v1523
  %v2005 = vsel %vm306, %v1998, %v1525
  %v2006 = vsel %vm306, %v1999, %v1527
  %vm2007 = vcmask 392192
  %v2008 = vsel %vm2007, %v2000, %v1548
  %v2009 = vsel %vm2007, %v2001, %v1550
  %v2010 = vsel %vm2007, %v2002, %v1552
  %v2011 = vsel %vm2007, %v2003, %v1554
  %v2012 = vsel %vm2007, %v2004, %v1556
  %v2013 = vsel %vm2007, %v2005, %v1558
  %v2014 = vsel %vm2007, %v2006, %v1560
  %vm2015 = vcmask 523264
  %v2016 = vsel %vm2015, %v2008, %v1577
  %v2017 = vsel %vm2015, %v2009, %v1579
  %v2018 = vsel %vm2015, %v2010, %v1581
  %v2019 = vsel %vm2015, %v2011, %v1583
  %v2020 = vsel %vm2015, %v2008, %v1585
  %v2021 = vsel %vm2015, %v2012, %v1587
  %v2022 = vsel %vm2015, %v2013, %v1589
  %v2023 = vsel %vm2015, %v2014, %v1591
  %vm2024 = vcmask 654336
  %v2025 = vsel %vm2024, %v2016, %v1617
  %v2026 = vsel %vm2024, %v2017, %v1619
  %v2027 = vsel %vm2024, %v2018, %v1621
  %v2028 = vsel %vm2024, %v2019, %v1623
  %v2029 = vsel %vm2024, %v2020, %v1625
  %v2030 = vsel %vm2024, %v2021, %v1627
  %v2031 = vsel %vm2024, %v2022, %v1629
  %v2032 = vsel %vm2024, %v2023, %v1631
  %vm2033 = vcmask 785408
  %v2034 = vsel %vm2033, %v2025, %v1657
  %v2035 = vsel %vm2033, %v2026, %v1659
  %v2036 = vsel %vm2033, %v2027, %v1661
  %v2037 = vsel %vm2033, %v2028, %v1663
  %v2038 = vsel %vm2033, %v2029, %v1665
  %v2039 = vsel %vm2033, %v2030, %v1667
  %v2040 = vsel %vm2033, %v2031, %v1669
  %v2041 = vsel %vm2033, %v2032, %v1671
  %vm2042 = vcmask 916480
  %v2043 = vsel %vm2042, %v2034, %v1697
  %v2044 = vsel %vm2042, %v2035, %v1699
  %v2045 = vsel %vm2042, %v2036, %v1701
  %v2046 = vsel %vm2042, %v2037, %v1703
  %v2047 = vsel %vm2042, %v2038, %v1705
  %v2048 = vsel %vm2042, %v2039, %v1707
  %v2049 = vsel %vm2042, %v2040, %v1709
  %v2050 = vsel %vm2042, %v2041, %v1711
  %v2051 = vsel %vm1992, %v1139, %v1737
  %v2052 = vsel %vm1992, %v1140, %v1739
  %v2053 = vsel %vm1992, %v1141, %v1741
  %v2054 = vsel %vm1992, %v1142, %v1743
  %v2055 = vsel %vm1992, %v1143, %v1745
  %v2056 = vsel %vm1992, %v1144, %v1747
  %v2057 = vsel %vm1992, %v1145, %v1749
  %v2058 = vsel %vm1992, %v1146, %v1751
  %v2059 = vsel %vm306, %v2051, %v1777
  %v2060 = vsel %vm306, %v2052, %v1779
  %v2061 = vsel %vm306, %v2053, %v1781
  %v2062 = vsel %vm306, %v2054, %v1783
  %v2063 = vsel %vm306, %v2055, %v1785
  %v2064 = vsel %vm306, %v2056, %v1787
  %v2065 = vsel %vm306, %v2057, %v1789
  %v2066 = vsel %vm306, %v2058, %v1791
  %v2067 = vsel %vm2007, %v2059, %v1817
  %v2068 = vsel %vm2007, %v2060, %v1819
  %v2069 = vsel %vm2007, %v2061, %v1821
  %v2070 = vsel %vm2007, %v2062, %v1823
  %v2071 = vsel %vm2007, %v2063, %v1825
  %v2072 = vsel %vm2007, %v2064, %v1827
  %v2073 = vsel %vm2007, %v2065, %v1829
  %v2074 = vsel %vm2007, %v2066, %v1831
  %v2075 = vsel %vm2015, %v2067, %v1849
  %v2076 = vsel %vm2015, %v2068, %v1851
  %v2077 = vsel %vm2015, %v2069, %v1853
  %v2078 = vsel %vm2015, %v2070, %v1855
  %v2079 = vsel %vm2015, %v2071, %v1857
  %v2080 = vsel %vm2015, %v2072, %v1859
  %v2081 = vsel %vm2015, %v2073, %v1861
  %v2082 = vsel %vm2015, %v2074, %v1863
  %v2083 = vsel %vm2024, %v2075, %v1889
  %v2084 = vsel %vm2024, %v2076, %v1891
  %v2085 = vsel %vm2024, %v2077, %v1893
  %v2086 = vsel %vm2024, %v2078, %v1895
  %v2087 = vsel %vm2024, %v2079, %v1897
  %v2088 = vsel %vm2024, %v2080, %v1899
  %v2089 = vsel %vm2024, %v2081, %v1901
  %v2090 = vsel %vm2024, %v2082, %v1903
  %v2091 = vsel %vm2033, %v2083, %v1929
  %v2092 = vsel %vm2033, %v2084, %v1931
  %v2093 = vsel %vm2033, %v2085, %v1933
  %v2094 = vsel %vm2033, %v2086, %v1935
  %v2095 = vsel %vm2033, %v2087, %v1937
  %v2096 = vsel %vm2033, %v2088, %v1939
  %v2097 = vsel %vm2033, %v2089, %v1941
  %v2098 = vsel %vm2033, %v2090, %v1943
  %v2099 = vsel %vm2042, %v2091, %v1969
  %v2100 = vsel %vm2042, %v2092, %v1971
  %v2101 = vsel %vm2042, %v2093, %v1973
  %v2102 = vsel %vm2042, %v2094, %v1975
  %v2103 = vsel %vm2042, %v2095, %v1977
  %v2104 = vsel %vm2042, %v2096, %v1979
  %v2105 = vsel %vm2042, %v2097, %v1981
  %v2106 = vsel %vm2042, %v2098, %v1983
  %v2123 = vcombine.low %v2043, %v2099
  %v2124 = vcombine.low %v2044, %v2100
  %v2125 = vcombine.low %v2045, %v2101
  %v2126 = vcombine.low %v2046, %v2102
  %v2127 = vcombine.low %v2047, %v2103
  %v2128 = vcombine.low %v2048, %v2104
  %v2129 = vcombine.low %v2049, %v2105
  %v2130 = vcombine.low %v2050, %v2106
  %2131 = vrot.lane.b32.xlu0 %v862, 16
  %v2132 = vpop.permute.xlu0 %2131
  %2133 = vrot.lane.b32.xlu0 %v1419, 16
  %v2134 = vpop.permute.xlu0 %2133
  %2135 = vrot.lane.b32.xlu0 %v1420, 16
  %v2136 = vpop.permute.xlu0 %2135
  %2137 = vrot.lane.b32.xlu0 %v1421, 16
  %v2138 = vpop.permute.xlu0 %2137
  %2139 = vrot.lane.b32.xlu0 %v1423, 16
  %v2140 = vpop.permute.xlu0 %2139
  %2141 = vrot.lane.b32.xlu0 %v1424, 16
  %v2142 = vpop.permute.xlu0 %2141
  %2143 = vrot.lane.b32.xlu0 %v1425, 16
  %v2144 = vpop.permute.xlu0 %2143
  %2158 = vrot.lane.b32.xlu0 %v862, 32
  %v2159 = vpop.permute.xlu0 %2158
  %2160 = vrot.lane.b32.xlu0 %v1459, 32
  %v2161 = vpop.permute.xlu0 %2160
  %2162 = vrot.lane.b32.xlu0 %v1460, 32
  %v2163 = vpop.permute.xlu0 %2162
  %2164 = vrot.lane.b32.xlu0 %v1461, 32
  %v2165 = vpop.permute.xlu0 %2164
  %2166 = vrot.lane.b32.xlu0 %v1463, 32
  %v2167 = vpop.permute.xlu0 %2166
  %2168 = vrot.lane.b32.xlu0 %v1464, 32
  %v2169 = vpop.permute.xlu0 %2168
  %2170 = vrot.lane.b32.xlu0 %v1465, 32
  %v2171 = vpop.permute.xlu0 %2170
  %2179 = vrot.lane.b32.xlu0 %v1475, 48
  %v2180 = vpop.permute.xlu0 %2179
  %2181 = vrot.lane.b32.xlu0 %v1476, 48
  %v2182 = vpop.permute.xlu0 %2181
  %2183 = vrot.lane.b32.xlu0 %v1477, 48
  %v2184 = vpop.permute.xlu0 %2183
  %2185 = vrot.lane.b32.xlu0 %v1478, 48
  %v2186 = vpop.permute.xlu0 %2185
  %2187 = vrot.lane.b32.xlu0 %v1479, 48
  %v2188 = vpop.permute.xlu0 %2187
  %2189 = vrot.lane.b32.xlu0 %v1480, 48
  %v2190 = vpop.permute.xlu0 %2189
  %2197 = vrot.lane.b32.xlu0 %v899, 64
  %v2198 = vpop.permute.xlu0 %2197
  %2199 = vrot.lane.b32.xlu0 %v900, 64
  %v2200 = vpop.permute.xlu0 %2199
  %2201 = vrot.lane.b32.xlu0 %v901, 64
  %v2202 = vpop.permute.xlu0 %2201
  %2203 = vrot.lane.b32.xlu0 %v902, 64
  %v2204 = vpop.permute.xlu0 %2203
  %2205 = vrot.lane.b32.xlu0 %v903, 64
  %v2206 = vpop.permute.xlu0 %2205
  %2207 = vrot.lane.b32.xlu0 %v904, 64
  %v2208 = vpop.permute.xlu0 %2207
  %2209 = vrot.lane.b32.xlu0 %v905, 64
  %v2210 = vpop.permute.xlu0 %2209
  %2211 = vrot.lane.b32.xlu0 %v906, 64
  %v2212 = vpop.permute.xlu0 %2211
  %2221 = vrot.lane.b32.xlu0 %v939, 80
  %v2222 = vpop.permute.xlu0 %2221
  %2223 = vrot.lane.b32.xlu0 %v940, 80
  %v2224 = vpop.permute.xlu0 %2223
  %2225 = vrot.lane.b32.xlu0 %v941, 80
  %v2226 = vpop.permute.xlu0 %2225
  %2227 = vrot.lane.b32.xlu0 %v942, 80
  %v2228 = vpop.permute.xlu0 %2227
  %2229 = vrot.lane.b32.xlu0 %v943, 80
  %v2230 = vpop.permute.xlu0 %2229
  %2231 = vrot.lane.b32.xlu0 %v944, 80
  %v2232 = vpop.permute.xlu0 %2231
  %2233 = vrot.lane.b32.xlu0 %v945, 80
  %v2234 = vpop.permute.xlu0 %2233
  %2235 = vrot.lane.b32.xlu0 %v946, 80
  %v2236 = vpop.permute.xlu0 %2235
  %2245 = vrot.lane.b32.xlu0 %v979, 96
  %v2246 = vpop.permute.xlu0 %2245
  %2247 = vrot.lane.b32.xlu0 %v980, 96
  %v2248 = vpop.permute.xlu0 %2247
  %2249 = vrot.lane.b32.xlu0 %v981, 96
  %v2250 = vpop.permute.xlu0 %2249
  %2251 = vrot.lane.b32.xlu0 %v982, 96
  %v2252 = vpop.permute.xlu0 %2251
  %2253 = vrot.lane.b32.xlu0 %v983, 96
  %v2254 = vpop.permute.xlu0 %2253
  %2255 = vrot.lane.b32.xlu0 %v984, 96
  %v2256 = vpop.permute.xlu0 %2255
  %2257 = vrot.lane.b32.xlu0 %v985, 96
  %v2258 = vpop.permute.xlu0 %2257
  %2259 = vrot.lane.b32.xlu0 %v986, 96
  %v2260 = vpop.permute.xlu0 %2259
  %2269 = vrot.lane.b32.xlu0 %v1608, 112
  %v2270 = vpop.permute.xlu0 %2269
  %2271 = vrot.lane.b32.xlu0 %v1609, 112
  %v2272 = vpop.permute.xlu0 %2271
  %2273 = vrot.lane.b32.xlu0 %v1610, 112
  %v2274 = vpop.permute.xlu0 %2273
  %2275 = vrot.lane.b32.xlu0 %v1611, 112
  %v2276 = vpop.permute.xlu0 %2275
  %2277 = vrot.lane.b32.xlu0 %v1612, 112
  %v2278 = vpop.permute.xlu0 %2277
  %2279 = vrot.lane.b32.xlu0 %v1613, 112
  %v2280 = vpop.permute.xlu0 %2279
  %2281 = vrot.lane.b32.xlu0 %v1614, 112
  %v2282 = vpop.permute.xlu0 %2281
  %2283 = vrot.lane.b32.xlu0 %v1615, 112
  %v2284 = vpop.permute.xlu0 %2283
  %2293 = vrot.lane.b32.xlu0 %v1099, 16
  %v2294 = vpop.permute.xlu0 %2293
  %2295 = vrot.lane.b32.xlu0 %v1100, 16
  %v2296 = vpop.permute.xlu0 %2295
  %2297 = vrot.lane.b32.xlu0 %v1101, 16
  %v2298 = vpop.permute.xlu0 %2297
  %2299 = vrot.lane.b32.xlu0 %v1102, 16
  %v2300 = vpop.permute.xlu0 %2299
  %2301 = vrot.lane.b32.xlu0 %v1103, 16
  %v2302 = vpop.permute.xlu0 %2301
  %2303 = vrot.lane.b32.xlu0 %v1104, 16
  %v2304 = vpop.permute.xlu0 %2303
  %2305 = vrot.lane.b32.xlu0 %v1105, 16
  %v2306 = vpop.permute.xlu0 %2305
  %2307 = vrot.lane.b32.xlu0 %v1106, 16
  %v2308 = vpop.permute.xlu0 %2307
  %2325 = vrot.lane.b32.xlu0 %v1139, 32
  %v2326 = vpop.permute.xlu0 %2325
  %2327 = vrot.lane.b32.xlu0 %v1140, 32
  %v2328 = vpop.permute.xlu0 %2327
  %2329 = vrot.lane.b32.xlu0 %v1141, 32
  %v2330 = vpop.permute.xlu0 %2329
  %2331 = vrot.lane.b32.xlu0 %v1142, 32
  %v2332 = vpop.permute.xlu0 %2331
  %2333 = vrot.lane.b32.xlu0 %v1143, 32
  %v2334 = vpop.permute.xlu0 %2333
  %2335 = vrot.lane.b32.xlu0 %v1144, 32
  %v2336 = vpop.permute.xlu0 %2335
  %2337 = vrot.lane.b32.xlu0 %v1145, 32
  %v2338 = vpop.permute.xlu0 %2337
  %2339 = vrot.lane.b32.xlu0 %v1146, 32
  %v2340 = vpop.permute.xlu0 %2339
  %2349 = vrot.lane.b32.xlu0 %v1728, 48
  %v2350 = vpop.permute.xlu0 %2349
  %2351 = vrot.lane.b32.xlu0 %v1729, 48
  %v2352 = vpop.permute.xlu0 %2351
  %2353 = vrot.lane.b32.xlu0 %v1730, 48
  %v2354 = vpop.permute.xlu0 %2353
  %2355 = vrot.lane.b32.xlu0 %v1731, 48
  %v2356 = vpop.permute.xlu0 %2355
  %2357 = vrot.lane.b32.xlu0 %v1732, 48
  %v2358 = vpop.permute.xlu0 %2357
  %2359 = vrot.lane.b32.xlu0 %v1733, 48
  %v2360 = vpop.permute.xlu0 %2359
  %2361 = vrot.lane.b32.xlu0 %v1734, 48
  %v2362 = vpop.permute.xlu0 %2361
  %2363 = vrot.lane.b32.xlu0 %v1735, 48
  %v2364 = vpop.permute.xlu0 %2363
  %2373 = vrot.lane.b32.xlu0 %v1219, 64
  %v2374 = vpop.permute.xlu0 %2373
  %2375 = vrot.lane.b32.xlu0 %v1220, 64
  %v2376 = vpop.permute.xlu0 %2375
  %2377 = vrot.lane.b32.xlu0 %v1221, 64
  %v2378 = vpop.permute.xlu0 %2377
  %2379 = vrot.lane.b32.xlu0 %v1222, 64
  %v2380 = vpop.permute.xlu0 %2379
  %2381 = vrot.lane.b32.xlu0 %v1223, 64
  %v2382 = vpop.permute.xlu0 %2381
  %2383 = vrot.lane.b32.xlu0 %v1224, 64
  %v2384 = vpop.permute.xlu0 %2383
  %2385 = vrot.lane.b32.xlu0 %v1225, 64
  %v2386 = vpop.permute.xlu0 %2385
  %2387 = vrot.lane.b32.xlu0 %v1226, 64
  %v2388 = vpop.permute.xlu0 %2387
  %2397 = vrot.lane.b32.xlu0 %v1259, 80
  %v2398 = vpop.permute.xlu0 %2397
  %2399 = vrot.lane.b32.xlu0 %v1260, 80
  %v2400 = vpop.permute.xlu0 %2399
  %2401 = vrot.lane.b32.xlu0 %v1261, 80
  %v2402 = vpop.permute.xlu0 %2401
  %2403 = vrot.lane.b32.xlu0 %v1262, 80
  %v2404 = vpop.permute.xlu0 %2403
  %2405 = vrot.lane.b32.xlu0 %v1263, 80
  %v2406 = vpop.permute.xlu0 %2405
  %2407 = vrot.lane.b32.xlu0 %v1264, 80
  %v2408 = vpop.permute.xlu0 %2407
  %2409 = vrot.lane.b32.xlu0 %v1265, 80
  %v2410 = vpop.permute.xlu0 %2409
  %2411 = vrot.lane.b32.xlu0 %v1266, 80
  %v2412 = vpop.permute.xlu0 %2411
  %2421 = vrot.lane.b32.xlu0 %v1299, 96
  %v2422 = vpop.permute.xlu0 %2421
  %2423 = vrot.lane.b32.xlu0 %v1300, 96
  %v2424 = vpop.permute.xlu0 %2423
  %2425 = vrot.lane.b32.xlu0 %v1301, 96
  %v2426 = vpop.permute.xlu0 %2425
  %2427 = vrot.lane.b32.xlu0 %v1302, 96
  %v2428 = vpop.permute.xlu0 %2427
  %2429 = vrot.lane.b32.xlu0 %v1303, 96
  %v2430 = vpop.permute.xlu0 %2429
  %2431 = vrot.lane.b32.xlu0 %v1304, 96
  %v2432 = vpop.permute.xlu0 %2431
  %2433 = vrot.lane.b32.xlu0 %v1305, 96
  %v2434 = vpop.permute.xlu0 %2433
  %2435 = vrot.lane.b32.xlu0 %v1306, 96
  %v2436 = vpop.permute.xlu0 %2435
  %2445 = vrot.lane.b32.xlu0 %v1880, 112
  %v2446 = vpop.permute.xlu0 %2445
  %2447 = vrot.lane.b32.xlu0 %v1881, 112
  %v2448 = vpop.permute.xlu0 %2447
  %2449 = vrot.lane.b32.xlu0 %v1882, 112
  %v2450 = vpop.permute.xlu0 %2449
  %2451 = vrot.lane.b32.xlu0 %v1883, 112
  %v2452 = vpop.permute.xlu0 %2451
  %2453 = vrot.lane.b32.xlu0 %v1884, 112
  %v2454 = vpop.permute.xlu0 %2453
  %2455 = vrot.lane.b32.xlu0 %v1885, 112
  %v2456 = vpop.permute.xlu0 %2455
  %2457 = vrot.lane.b32.xlu0 %v1886, 112
  %v2458 = vpop.permute.xlu0 %2457
  %2459 = vrot.lane.b32.xlu0 %v1887, 112
  %v2460 = vpop.permute.xlu0 %2459
  %v2469 = vsel %vm1992, %v862, %v2132
  %v2470 = vsel %vm1992, %v1379, %v2134
  %v2471 = vsel %vm1992, %v1380, %v2136
  %v2472 = vsel %vm1992, %v1381, %v2138
  %v2473 = vsel %vm1992, %v1383, %v2140
  %v2474 = vsel %vm1992, %v1384, %v2142
  %v2475 = vsel %vm1992, %v1385, %v2144
  %v2476 = vsel %vm306, %v2469, %v2159
  %v2477 = vsel %vm306, %v2470, %v2161
  %v2478 = vsel %vm306, %v2471, %v2163
  %v2479 = vsel %vm306, %v2472, %v2165
  %v2480 = vsel %vm306, %v2473, %v2167
  %v2481 = vsel %vm306, %v2474, %v2169
  %v2482 = vsel %vm306, %v2475, %v2171
  %v2483 = vsel %vm2007, %v2476, %v1548
  %v2484 = vsel %vm2007, %v2477, %v2180
  %v2485 = vsel %vm2007, %v2478, %v2182
  %v2486 = vsel %vm2007, %v2479, %v2184
  %v2487 = vsel %vm2007, %v2480, %v2186
  %v2488 = vsel %vm2007, %v2481, %v2188
  %v2489 = vsel %vm2007, %v2482, %v2190
  %v2490 = vsel %vm2015, %v2483, %v2198
  %v2491 = vsel %vm2015, %v2484, %v2200
  %v2492 = vsel %vm2015, %v2485, %v2202
  %v2493 = vsel %vm2015, %v2486, %v2204
  %v2494 = vsel %vm2015, %v2483, %v2206
  %v2495 = vsel %vm2015, %v2487, %v2208
  %v2496 = vsel %vm2015, %v2488, %v2210
  %v2497 = vsel %vm2015, %v2489, %v2212
  %v2498 = vsel %vm2024, %v2490, %v2222
  %v2499 = vsel %vm2024, %v2491, %v2224
  %v2500 = vsel %vm2024, %v2492, %v2226
  %v2501 = vsel %vm2024, %v2493, %v2228
  %v2502 = vsel %vm2024, %v2494, %v2230
  %v2503 = vsel %vm2024, %v2495, %v2232
  %v2504 = vsel %vm2024, %v2496, %v2234
  %v2505 = vsel %vm2024, %v2497, %v2236
  %v2506 = vsel %vm2033, %v2498, %v2246
  %v2507 = vsel %vm2033, %v2499, %v2248
  %v2508 = vsel %vm2033, %v2500, %v2250
  %v2509 = vsel %vm2033, %v2501, %v2252
  %v2510 = vsel %vm2033, %v2502, %v2254
  %v2511 = vsel %vm2033, %v2503, %v2256
  %v2512 = vsel %vm2033, %v2504, %v2258
  %v2513 = vsel %vm2033, %v2505, %v2260
  %v2514 = vsel %vm2042, %v2506, %v2270
  %v2515 = vsel %vm2042, %v2507, %v2272
  %v2516 = vsel %vm2042, %v2508, %v2274
  %v2517 = vsel %vm2042, %v2509, %v2276
  %v2518 = vsel %vm2042, %v2510, %v2278
  %v2519 = vsel %vm2042, %v2511, %v2280
  %v2520 = vsel %vm2042, %v2512, %v2282
  %v2521 = vsel %vm2042, %v2513, %v2284
  %v2522 = vsel %vm1992, %v1059, %v2294
  %v2523 = vsel %vm1992, %v1060, %v2296
  %v2524 = vsel %vm1992, %v1061, %v2298
  %v2525 = vsel %vm1992, %v1062, %v2300
  %v2526 = vsel %vm1992, %v1063, %v2302
  %v2527 = vsel %vm1992, %v1064, %v2304
  %v2528 = vsel %vm1992, %v1065, %v2306
  %v2529 = vsel %vm1992, %v1066, %v2308
  %v2530 = vsel %vm306, %v2522, %v2326
  %v2531 = vsel %vm306, %v2523, %v2328
  %v2532 = vsel %vm306, %v2524, %v2330
  %v2533 = vsel %vm306, %v2525, %v2332
  %v2534 = vsel %vm306, %v2526, %v2334
  %v2535 = vsel %vm306, %v2527, %v2336
  %v2536 = vsel %vm306, %v2528, %v2338
  %v2537 = vsel %vm306, %v2529, %v2340
  %v2538 = vsel %vm2007, %v2530, %v2350
  %v2539 = vsel %vm2007, %v2531, %v2352
  %v2540 = vsel %vm2007, %v2532, %v2354
  %v2541 = vsel %vm2007, %v2533, %v2356
  %v2542 = vsel %vm2007, %v2534, %v2358
  %v2543 = vsel %vm2007, %v2535, %v2360
  %v2544 = vsel %vm2007, %v2536, %v2362
  %v2545 = vsel %vm2007, %v2537, %v2364
  %v2546 = vsel %vm2015, %v2538, %v2374
  %v2547 = vsel %vm2015, %v2539, %v2376
  %v2548 = vsel %vm2015, %v2540, %v2378
  %v2549 = vsel %vm2015, %v2541, %v2380
  %v2550 = vsel %vm2015, %v2542, %v2382
  %v2551 = vsel %vm2015, %v2543, %v2384
  %v2552 = vsel %vm2015, %v2544, %v2386
  %v2553 = vsel %vm2015, %v2545, %v2388
  %v2554 = vsel %vm2024, %v2546, %v2398
  %v2555 = vsel %vm2024, %v2547, %v2400
  %v2556 = vsel %vm2024, %v2548, %v2402
  %v2557 = vsel %vm2024, %v2549, %v2404
  %v2558 = vsel %vm2024, %v2550, %v2406
  %v2559 = vsel %vm2024, %v2551, %v2408
  %v2560 = vsel %vm2024, %v2552, %v2410
  %v2561 = vsel %vm2024, %v2553, %v2412
  %v2562 = vsel %vm2033, %v2554, %v2422
  %v2563 = vsel %vm2033, %v2555, %v2424
  %v2564 = vsel %vm2033, %v2556, %v2426
  %v2565 = vsel %vm2033, %v2557, %v2428
  %v2566 = vsel %vm2033, %v2558, %v2430
  %v2567 = vsel %vm2033, %v2559, %v2432
  %v2568 = vsel %vm2033, %v2560, %v2434
  %v2569 = vsel %vm2033, %v2561, %v2436
  %v2570 = vsel %vm2042, %v2562, %v2446
  %v2571 = vsel %vm2042, %v2563, %v2448
  %v2572 = vsel %vm2042, %v2564, %v2450
  %v2573 = vsel %vm2042, %v2565, %v2452
  %v2574 = vsel %vm2042, %v2566, %v2454
  %v2575 = vsel %vm2042, %v2567, %v2456
  %v2576 = vsel %vm2042, %v2568, %v2458
  %v2577 = vsel %vm2042, %v2569, %v2460
  %v2594 = vcombine.low %v2514, %v2570
  %v2595 = vcombine.high %v2514, %v2570
  %v2596 = vcombine.low %v2515, %v2571
  %v2597 = vcombine.high %v2515, %v2571
  %v2598 = vcombine.low %v2516, %v2572
  %v2599 = vcombine.high %v2516, %v2572
  %v2600 = vcombine.low %v2517, %v2573
  %v2601 = vcombine.high %v2517, %v2573
  %v2602 = vcombine.low %v2518, %v2574
  %v2603 = vcombine.high %v2518, %v2574
  %v2604 = vcombine.low %v2519, %v2575
  %v2605 = vcombine.high %v2519, %v2575
  %v2606 = vcombine.low %v2520, %v2576
  %v2607 = vcombine.high %v2520, %v2576
  %v2608 = vcombine.low %v2521, %v2577
  %v2609 = vcombine.high %v2521, %v2577
  %vm2610 = vcmask 1042432
  %vm2611 = vcmask 1046532
  %vm2612 = vmor %vm2610, %vm2611
  %v2613 = vrot.slane %v2594, 5
  %v2614 = vrot.slane %v2613, 4
  %v2615 = vrot.slane %v2595, 5
  %v2616 = vsel %vm2612, %v2614, %v2615
  %v2617 = vrot.slane %v2596, 5
  %v2618 = vrot.slane %v2617, 4
  %v2619 = vrot.slane %v2597, 5
  %v2620 = vsel %vm2612, %v2618, %v2619
  %v2621 = vrot.slane %v2598, 5
  %v2622 = vrot.slane %v2621, 4
  %v2623 = vrot.slane %v2599, 5
  %v2624 = vsel %vm2612, %v2622, %v2623
  %v2625 = vrot.slane %v2600, 5
  %v2626 = vrot.slane %v2625, 4
  %v2627 = vrot.slane %v2601, 5
  %v2628 = vsel %vm2612, %v2626, %v2627
  %v2629 = vrot.slane %v2602, 5
  %v2630 = vrot.slane %v2629, 4
  %v2631 = vrot.slane %v2603, 5
  %v2632 = vsel %vm2612, %v2630, %v2631
  %v2633 = vrot.slane %v2604, 5
  %v2634 = vrot.slane %v2633, 4
  %v2635 = vrot.slane %v2605, 5
  %v2636 = vsel %vm2612, %v2634, %v2635
  %v2637 = vrot.slane %v2606, 5
  %v2638 = vrot.slane %v2637, 4
  %v2639 = vrot.slane %v2607, 5
  %v2640 = vsel %vm2612, %v2638, %v2639
  %v2641 = vrot.slane %v2608, 5
  %v2642 = vrot.slane %v2641, 4
  %v2643 = vrot.slane %v2609, 5
  %v2644 = vsel %vm2612, %v2642, %v2643
  %v2647 = vrot.slane %v1342, 1
  %v2648 = vrot.slane %v1346, 1
  %2649 = vrot.lane.b32.xlu0 %v2647, 16
  %v2650 = vpop.permute.xlu0 %2649
  %2651 = vrot.lane.b32.xlu0 %v2648, 16
  %v2652 = vpop.permute.xlu0 %2651
  %v2657 = vrot.slane %v1382, 1
  %v2658 = vrot.slane %v1386, 1
  %2659 = vrot.lane.b32.xlu0 %v2657, 32
  %v2660 = vpop.permute.xlu0 %2659
  %2661 = vrot.lane.b32.xlu0 %v2658, 32
  %v2662 = vpop.permute.xlu0 %2661
  %v2667 = vrot.slane %v1422, 1
  %v2668 = vrot.slane %v1426, 1
  %2669 = vrot.lane.b32.xlu0 %v2667, 48
  %v2670 = vpop.permute.xlu0 %2669
  %2671 = vrot.lane.b32.xlu0 %v2668, 48
  %v2672 = vpop.permute.xlu0 %2671
  %2675 = vrot.lane.b32.xlu0 %v862, 64
  %v2676 = vpop.permute.xlu0 %2675
  %2678 = vrot.lane.b32.xlu0 %v1474, 80
  %v2679 = vpop.permute.xlu0 %2678
  %2681 = vrot.lane.b32.xlu0 %v1474, 96
  %v2682 = vpop.permute.xlu0 %2681
  %2684 = vrot.lane.b32.xlu0 %v1474, 112
  %v2685 = vpop.permute.xlu0 %2684
  %v2687 = vsel %vm1992, %v1462, %v2650
  %v2688 = vsel %vm1992, %v1466, %v2652
  %v2689 = vsel %vm306, %v2687, %v2660
  %v2690 = vsel %vm306, %v2688, %v2662
  %v2691 = vsel %vm2007, %v2689, %v2670
  %v2692 = vsel %vm2007, %v2690, %v2672
  %v2693 = vsel %vm2015, %v2691, %v2676
  %v2694 = vsel %vm2015, %v2692, %v2676
  %v2695 = vsel %vm2024, %v2693, %v2679
  %v2696 = vsel %vm2024, %v2694, %v2679
  %v2697 = vsel %vm2033, %v2695, %v2682
  %v2698 = vsel %vm2033, %v2696, %v2682
  %v2699 = vsel %vm2042, %v2697, %v2685
  %v2700 = vsel %vm2042, %v2698, %v2685
  %v2703 = vcombine.low %v2099, %v2044
  %v2704 = vcombine.low %v2100, %v2045
  %v2705 = vcombine.low %v2101, %v2046
  %v2706 = vcombine.low %v2102, %v2699
  %v2707 = vcombine.low %v2103, %v2048
  %v2708 = vcombine.low %v2104, %v2049
  %v2709 = vcombine.low %v2105, %v2050
  %v2710 = vcombine.low %v2106, %v2700
  %2711 = vrot.lane.b32.xlu0 %v1422, 16
  %v2712 = vpop.permute.xlu0 %2711
  %2713 = vrot.lane.b32.xlu0 %v1426, 16
  %v2714 = vpop.permute.xlu0 %2713
  %2719 = vrot.lane.b32.xlu0 %v1462, 32
  %v2720 = vpop.permute.xlu0 %2719
  %2721 = vrot.lane.b32.xlu0 %v1466, 32
  %v2722 = vpop.permute.xlu0 %2721
  %2725 = vrot.lane.b32.xlu0 %v2647, 48
  %v2726 = vpop.permute.xlu0 %2725
  %2727 = vrot.lane.b32.xlu0 %v2648, 48
  %v2728 = vpop.permute.xlu0 %2727
  %2731 = vrot.lane.b32.xlu0 %v862, 80
  %v2732 = vpop.permute.xlu0 %2731
  %2734 = vrot.lane.b32.xlu0 %v862, 96
  %v2735 = vpop.permute.xlu0 %2734
  %v2737 = vsel %vm1992, %v1382, %v2712
  %v2738 = vsel %vm1992, %v1386, %v2714
  %v2739 = vsel %vm306, %v2737, %v2720
  %v2740 = vsel %vm306, %v2738, %v2722
  %v2741 = vsel %vm2007, %v2739, %v2726
  %v2742 = vsel %vm2007, %v2740, %v2728
  %v2743 = vsel %vm2015, %v2741, %v2676
  %v2744 = vsel %vm2015, %v2742, %v2676
  %v2745 = vsel %vm2024, %v2743, %v2732
  %v2746 = vsel %vm2024, %v2744, %v2732
  %v2747 = vsel %vm2033, %v2745, %v2735
  %v2748 = vsel %vm2033, %v2746, %v2735
  %v2749 = vsel %vm2042, %v2747, %v2685
  %v2750 = vsel %vm2042, %v2748, %v2685
  %v2753 = vcombine.low %v2570, %v2515
  %v2754 = vcombine.high %v2570, %v2515
  %v2755 = vcombine.low %v2571, %v2516
  %v2756 = vcombine.high %v2571, %v2516
  %v2757 = vcombine.low %v2572, %v2517
  %v2758 = vcombine.high %v2572, %v2517
  %v2759 = vcombine.low %v2573, %v2749
  %v2760 = vcombine.high %v2573, %v2749
  %v2761 = vcombine.low %v2574, %v2519
  %v2762 = vcombine.high %v2574, %v2519
  %v2763 = vcombine.low %v2575, %v2520
  %v2764 = vcombine.high %v2575, %v2520
  %v2765 = vcombine.low %v2576, %v2521
  %v2766 = vcombine.high %v2576, %v2521
  %v2767 = vcombine.low %v2577, %v2750
  %v2768 = vcombine.high %v2577, %v2750
  %v2769 = vrot.slane %v2753, 5
  %v2770 = vrot.slane %v2769, 4
  %v2771 = vrot.slane %v2754, 5
  %v2772 = vsel %vm2612, %v2770, %v2771
  %v2773 = vrot.slane %v2755, 5
  %v2774 = vrot.slane %v2773, 4
  %v2775 = vrot.slane %v2756, 5
  %v2776 = vsel %vm2612, %v2774, %v2775
  %v2777 = vrot.slane %v2757, 5
  %v2778 = vrot.slane %v2777, 4
  %v2779 = vrot.slane %v2758, 5
  %v2780 = vsel %vm2612, %v2778, %v2779
  %v2781 = vrot.slane %v2759, 5
  %v2782 = vrot.slane %v2781, 4
  %v2783 = vrot.slane %v2760, 5
  %v2784 = vsel %vm2612, %v2782, %v2783
  %v2785 = vrot.slane %v2761, 5
  %v2786 = vrot.slane %v2785, 4
  %v2787 = vrot.slane %v2762, 5
  %v2788 = vsel %vm2612, %v2786, %v2787
  %v2789 = vrot.slane %v2763, 5
  %v2790 = vrot.slane %v2789, 4
  %v2791 = vrot.slane %v2764, 5
  %v2792 = vsel %vm2612, %v2790, %v2791
  %v2793 = vrot.slane %v2765, 5
  %v2794 = vrot.slane %v2793, 4
  %v2795 = vrot.slane %v2766, 5
  %v2796 = vsel %vm2612, %v2794, %v2795
  %v2797 = vrot.slane %v2767, 5
  %v2798 = vrot.slane %v2797, 4
  %v2799 = vrot.slane %v2768, 5
  %v2800 = vsel %vm2612, %v2798, %v2799
  %v2801 = vcombine.low %v2123, %v2124
  %v2802 = vcombine.high %v2123, %v2124
  %v2803 = vcombine.low %v2125, %v2126
  %v2804 = vcombine.high %v2125, %v2126
  %v2805 = vcombine.low %v2127, %v2128
  %v2806 = vcombine.high %v2127, %v2128
  %v2807 = vcombine.low %v2129, %v2130
  %v2808 = vcombine.high %v2129, %v2130
  %v2817 = vcombine.low %v2616, %v2620
  %v2818 = vcombine.high %v2616, %v2620
  %v2819 = vcombine.low %v2624, %v2628
  %v2820 = vcombine.high %v2624, %v2628
  %v2821 = vcombine.low %v2632, %v2636
  %v2822 = vcombine.high %v2632, %v2636
  %v2823 = vcombine.low %v2640, %v2644
  %v2824 = vcombine.high %v2640, %v2644
  %v2833 = vcombine.low %v2703, %v2704
  %v2834 = vcombine.high %v2703, %v2704
  %v2835 = vcombine.low %v2705, %v2706
  %v2836 = vcombine.high %v2705, %v2706
  %v2837 = vcombine.low %v2707, %v2708
  %v2838 = vcombine.high %v2707, %v2708
  %v2839 = vcombine.low %v2709, %v2710
  %v2840 = vcombine.high %v2709, %v2710
  %v2849 = vcombine.low %v2772, %v2776
  %v2850 = vcombine.high %v2772, %v2776
  %v2851 = vcombine.low %v2780, %v2784
  %v2852 = vcombine.high %v2780, %v2784
  %v2853 = vcombine.low %v2788, %v2792
  %v2854 = vcombine.high %v2788, %v2792
  %v2855 = vcombine.low %v2796, %v2800
  %v2856 = vcombine.high %v2796, %v2800
  %v2865 = vpack.c.bf16 %v2803, %v2801
  %v2866 = vpack.c.bf16 %v2804, %v2802
  %v2867 = vpack.c.bf16 %v2807, %v2805
  %v2868 = vpack.c.bf16 %v2808, %v2806
  %v2869 = vpack.c.bf16 %v2819, %v2817
  %v2870 = vpack.c.bf16 %v2820, %v2818
  %v2871 = vpack.c.bf16 %v2823, %v2821
  %v2872 = vpack.c.bf16 %v2824, %v2822
  %v2873 = vpack.c.bf16 %v2835, %v2833
  %v2874 = vpack.c.bf16 %v2836, %v2834
  %v2875 = vpack.c.bf16 %v2839, %v2837
  %v2876 = vpack.c.bf16 %v2840, %v2838
  %v2877 = vpack.c.bf16 %v2851, %v2849
  %v2878 = vpack.c.bf16 %v2852, %v2850
  %v2879 = vpack.c.bf16 %v2855, %v2853
  %v2880 = vpack.c.bf16 %v2856, %v2854
  %v2881 = vld [vmem:[%s3] sm:$0xf]
  %v2882 = vld [vmem:[%s3 + $0x4] sm:$0xf]
  %v2883 = vld [vmem:[%s3 + $0x8] sm:$0xf]
  %v2884 = vld [vmem:[%s3 + $0xc] sm:$0xf]
  %v2885 = vld [vmem:[%s3 + $0x10] sm:$0xf]
  %v2886 = vld [vmem:[%s3 + $0x14] sm:$0xf]
  %v2887 = vld [vmem:[%s3 + $0x18] sm:$0xf]
  %v2888 = vld [vmem:[%s3 + $0x1c] sm:$0xf]
  %v2889 = vld [vmem:[%s3 + $0x20] sm:$0xf]
  %v2890 = vld [vmem:[%s3 + $0x24] sm:$0xf]
  %v2891 = vld [vmem:[%s3 + $0x28] sm:$0xf]
  %v2892 = vld [vmem:[%s3 + $0x2c] sm:$0xf]
  %v2893 = vld [vmem:[%s3 + $0x30] sm:$0xf]
  %v2894 = vld [vmem:[%s3 + $0x34] sm:$0xf]
  %v2895 = vld [vmem:[%s3 + $0x38] sm:$0xf]
  %v2896 = vld [vmem:[%s3 + $0x3c] sm:$0xf]
  %v2897 = vld [vmem:[%s3 + $0x40] sm:$0xf]
  %v2898 = vld [vmem:[%s3 + $0x44] sm:$0xf]
  %v2899 = vld [vmem:[%s3 + $0x48] sm:$0xf]
  %v2900 = vld [vmem:[%s3 + $0x4c] sm:$0xf]
  %v2901 = vld [vmem:[%s3 + $0x50] sm:$0xf]
  %v2902 = vld [vmem:[%s3 + $0x54] sm:$0xf]
  %v2903 = vld [vmem:[%s3 + $0x58] sm:$0xf]
  %v2904 = vld [vmem:[%s3 + $0x5c] sm:$0xf]
  %v2905 = vld [vmem:[%s3 + $0x60] sm:$0xf]
  %v2906 = vld [vmem:[%s3 + $0x64] sm:$0xf]
  %v2907 = vld [vmem:[%s3 + $0x68] sm:$0xf]
  %v2908 = vld [vmem:[%s3 + $0x6c] sm:$0xf]
  %v2909 = vld [vmem:[%s3 + $0x70] sm:$0xf]
  %v2910 = vld [vmem:[%s3 + $0x74] sm:$0xf]
  %v2911 = vld [vmem:[%s3 + $0x78] sm:$0xf]
  %v2912 = vld [vmem:[%s3 + $0x7c] sm:$0xf]
  %v2913 = vld [vmem:[%s4] sm:$0x1]
  %v2915 = vlaneseq
  %v2916 = vshrl.u32 %v2915, 7
  %v2917 = vsub.s32 0, %v2916
  %v2918 = vrot.slane %v2913, %v2917
  %v2952 = vunpack.c.l.b16 %v2881
  %v2953 = vunpack.c.l.b16 %v2882
  %v2954 = vunpack.c.l.b16 %v2883
  %v2955 = vunpack.c.l.b16 %v2884
  %v2956 = vunpack.c.l.b16 %v2885
  %v2957 = vunpack.c.l.b16 %v2886
  %v2958 = vunpack.c.l.b16 %v2887
  %v2959 = vunpack.c.l.b16 %v2888
  %v2960 = vunpack.c.l.b16 %v2889
  %v2961 = vunpack.c.l.b16 %v2890
  %v2962 = vunpack.c.l.b16 %v2891
  %v2963 = vunpack.c.l.b16 %v2892
  %v2964 = vunpack.c.l.b16 %v2893
  %v2965 = vunpack.c.l.b16 %v2894
  %v2966 = vunpack.c.l.b16 %v2895
  %v2967 = vunpack.c.l.b16 %v2896
  %v2968 = vunpack.c.l.b16 %v2897
  %v2969 = vunpack.c.l.b16 %v2898
  %v2970 = vunpack.c.l.b16 %v2899
  %v2971 = vunpack.c.l.b16 %v2900
  %v2972 = vunpack.c.l.b16 %v2901
  %v2973 = vunpack.c.l.b16 %v2902
  %v2974 = vunpack.c.l.b16 %v2903
  %v2975 = vunpack.c.l.b16 %v2904
  %v2976 = vunpack.c.l.b16 %v2905
  %v2977 = vunpack.c.l.b16 %v2906
  %v2978 = vunpack.c.l.b16 %v2907
  %v2979 = vunpack.c.l.b16 %v2908
  %v2980 = vunpack.c.l.b16 %v2909
  %v2981 = vunpack.c.l.b16 %v2910
  %v2982 = vunpack.c.l.b16 %v2911
  %v2983 = vunpack.c.l.b16 %v2912
  %v2984 = vpack.c.b16 %v2953, %v2952
  %v2985 = vpack.c.b16 %v2955, %v2954
  %v2986 = vpack.c.b16 %v2957, %v2956
  %v2987 = vpack.c.b16 %v2959, %v2958
  %v2988 = vpack.c.b16 %v2961, %v2960
  %v2989 = vpack.c.b16 %v2963, %v2962
  %v2990 = vpack.c.b16 %v2965, %v2964
  %v2991 = vpack.c.b16 %v2967, %v2966
  %v2992 = vpack.c.b16 %v2969, %v2968
  %v2993 = vpack.c.b16 %v2971, %v2970
  %v2994 = vpack.c.b16 %v2973, %v2972
  %v2995 = vpack.c.b16 %v2975, %v2974
  %v2996 = vpack.c.b16 %v2977, %v2976
  %v2997 = vpack.c.b16 %v2979, %v2978
  %v2998 = vpack.c.b16 %v2981, %v2980
  %v2999 = vpack.c.b16 %v2983, %v2982
  %3016 = vmatprep.subr.bf16.mxu0 0
  %3017 = vmatpush1.bf16.msra.mxu0 %v2991
  %3018 = vmatprep.subr.bf16.mxu0 0
  %3019 = vmatpush1.bf16.msra.mxu0 %v2990
  %3020 = vmatprep.subr.bf16.mxu0 0
  %3021 = vmatpush1.bf16.msra.mxu0 %v2989
  %3022 = vmatprep.subr.bf16.mxu0 0
  %3023 = vmatpush1.bf16.msra.mxu0 %v2988
  %3024 = vmatprep.subr.bf16.mxu0 0
  %3025 = vmatpush1.bf16.msra.mxu0 %v2987
  %3026 = vmatprep.subr.bf16.mxu0 0
  %3027 = vmatpush1.bf16.msra.mxu0 %v2986
  %3028 = vmatprep.subr.bf16.mxu0 0
  %3029 = vmatpush1.bf16.msra.mxu0 %v2985
  %3030 = vmatprep.subr.bf16.mxu0 0
  %3031 = vmatpush1.bf16.msra.mxu0 %v2984
  %3032 = vmatprep.subr.bf16.mxu0 0
  %3033 = vmatpush2.bf16.msra.mxu0 %v2999
  %3034 = vmatprep.subr.bf16.mxu0 0
  %3035 = vmatpush2.bf16.msra.mxu0 %v2998
  %3036 = vmatprep.subr.bf16.mxu0 0
  %3037 = vmatpush2.bf16.msra.mxu0 %v2997
  %3038 = vmatprep.subr.bf16.mxu0 0
  %3039 = vmatpush2.bf16.msra.mxu0 %v2996
  %3040 = vmatprep.subr.bf16.mxu0 0
  %3041 = vmatpush2.bf16.msra.mxu0 %v2995
  %3042 = vmatprep.subr.bf16.mxu0 0
  %3043 = vmatpush2.bf16.msra.mxu0 %v2994
  %3044 = vmatprep.subr.bf16.mxu0 0
  %3045 = vmatpush2.bf16.msra.mxu0 %v2993
  %3046 = vmatprep.subr.bf16.mxu0 0
  %3047 = vmatpush2.bf16.msra.mxu0 %v2992
  %3048 = vmatprep.mubr.bf16.mxu0 %v2866
  %3049 = vmatmul.mubr.bf16.gmra.mxu0 %v2865
  %v3050 = vpop.f32.mrf.mxu0
  %v3051 = vadd.f32 %v2918, %v3050
  %v3052 = vpop.f32.mrf.mxu0
  %v3053 = vpop.f32.mrf.mxu0
  %v3054 = vadd.f32 %v2918, %v3053
  %v3055 = vpop.f32.mrf.mxu0
  %3056 = vmatprep.mubr.bf16.mxu0 %v2868
  %3057 = vmatmul.mubr.bf16.gmra.mxu0 %v2867
  %v3058 = vpop.f32.mrf.mxu0
  %v3059 = vadd.f32 %v2918, %v3058
  %v3060 = vpop.f32.mrf.mxu0
  %v3061 = vpop.f32.mrf.mxu0
  %v3062 = vadd.f32 %v2918, %v3061
  %v3063 = vpop.f32.mrf.mxu0
  %3064 = vmatprep.mubr.bf16.mxu0 %v2870
  %3065 = vmatmul.mubr.bf16.gmra.mxu0 %v2869
  %v3066 = vpop.f32.mrf.mxu0
  %v3067 = vadd.f32 %v2918, %v3066
  %v3068 = vpop.f32.mrf.mxu0
  %v3069 = vpop.f32.mrf.mxu0
  %v3070 = vadd.f32 %v2918, %v3069
  %v3071 = vpop.f32.mrf.mxu0
  %3072 = vmatprep.mubr.bf16.mxu0 %v2872
  %3073 = vmatmul.mubr.bf16.gmra.mxu0 %v2871
  %v3074 = vpop.f32.mrf.mxu0
  %v3075 = vadd.f32 %v2918, %v3074
  %v3076 = vpop.f32.mrf.mxu0
  %v3077 = vpop.f32.mrf.mxu0
  %v3078 = vadd.f32 %v2918, %v3077
  %v3079 = vpop.f32.mrf.mxu0
  %3080 = vmatprep.mubr.bf16.mxu0 %v2874
  %3081 = vmatmul.mubr.bf16.gmra.mxu0 %v2873
  %v3082 = vpop.f32.mrf.mxu0
  %v3083 = vadd.f32 %v2918, %v3082
  %v3084 = vpop.f32.mrf.mxu0
  %v3085 = vpop.f32.mrf.mxu0
  %v3086 = vadd.f32 %v2918, %v3085
  %v3087 = vpop.f32.mrf.mxu0
  %3088 = vmatprep.mubr.bf16.mxu0 %v2876
  %3089 = vmatmul.mubr.bf16.gmra.mxu0 %v2875
  %v3090 = vpop.f32.mrf.mxu0
  %v3091 = vadd.f32 %v2918, %v3090
  %v3092 = vpop.f32.mrf.mxu0
  %v3093 = vpop.f32.mrf.mxu0
  %v3094 = vadd.f32 %v2918, %v3093
  %v3095 = vpop.f32.mrf.mxu0
  %3096 = vmatprep.mubr.bf16.mxu0 %v2878
  %3097 = vmatmul.mubr.bf16.gmra.mxu0 %v2877
  %v3098 = vpop.f32.mrf.mxu0
  %v3099 = vadd.f32 %v2918, %v3098
  %v3100 = vpop.f32.mrf.mxu0
  %v3101 = vpop.f32.mrf.mxu0
  %v3102 = vadd.f32 %v2918, %v3101
  %v3103 = vpop.f32.mrf.mxu0
  %3104 = vmatprep.mubr.bf16.mxu0 %v2880
  %3105 = vmatmul.mubr.bf16.gmra.mxu0 %v2879
  %v3106 = vpop.f32.mrf.mxu0
  %v3107 = vadd.f32 %v2918, %v3106
  %v3108 = vpop.f32.mrf.mxu0
  %v3109 = vpop.f32.mrf.mxu0
  %v3110 = vadd.f32 %v2918, %v3109
  %v3111 = vpop.f32.mrf.mxu0
  %3112 = vdwg.mxu0
  %v3113 = vsel %vm306, %v3051, 0.0
  %v3114 = vsel %vm306, %v3054, 0.0
  %v3115 = vadd.f32 %v3113, %v3114
  %v3116 = vsel %vm306, %v3059, 0.0
  %v3117 = vadd.f32 %v3115, %v3116
  %v3118 = vsel %vm306, %v3062, 0.0
  %v3119 = vadd.f32 %v3117, %v3118
  %v3120 = vsel %vm306, %v3067, 0.0
  %v3121 = vadd.f32 %v3119, %v3120
  %v3122 = vsel %vm306, %v3070, 0.0
  %v3123 = vadd.f32 %v3121, %v3122
  %v3124 = vsel %vm306, %v3075, 0.0
  %v3125 = vadd.f32 %v3123, %v3124
  %v3126 = vsel %vm306, %v3078, 0.0
  %v3127 = vadd.f32 %v3125, %v3126
  %v3128 = vsel %vm306, %v3083, 0.0
  %v3129 = vadd.f32 %v3127, %v3128
  %v3130 = vsel %vm306, %v3086, 0.0
  %v3131 = vadd.f32 %v3129, %v3130
  %v3132 = vsel %vm306, %v3091, 0.0
  %v3133 = vadd.f32 %v3131, %v3132
  %v3134 = vsel %vm306, %v3094, 0.0
  %v3135 = vadd.f32 %v3133, %v3134
  %v3136 = vsel %vm306, %v3099, 0.0
  %v3137 = vadd.f32 %v3135, %v3136
  %v3138 = vsel %vm306, %v3102, 0.0
  %v3139 = vadd.f32 %v3137, %v3138
  %v3140 = vsel %vm306, %v3107, 0.0
  %v3141 = vadd.f32 %v3139, %v3140
  %v3142 = vsel %vm306, %v3110, 0.0
  %v3143 = vadd.f32 %v3141, %v3142
  %v3144 = vrot.slane %v3143, 4
  %v3145 = vadd.f32 %v3143, %v3144
  %v3146 = vrot.slane %v3145, 2
  %v3147 = vadd.f32 %v3145, %v3146
  %v3148 = vrot.slane %v3147, 1
  %v3149 = vadd.f32 %v3147, %v3148
  %v3150 = vrcp.pop 128.0
  %v3151 = vmul.f32 %v3149, %v3150
  %v3152 = vsub.f32 %v3051, %v3151
  %v3153 = vsub.f32 %v3054, %v3151
  %v3154 = vsub.f32 %v3059, %v3151
  %v3155 = vsub.f32 %v3062, %v3151
  %v3156 = vsub.f32 %v3067, %v3151
  %v3157 = vsub.f32 %v3070, %v3151
  %v3158 = vsub.f32 %v3075, %v3151
  %v3159 = vsub.f32 %v3078, %v3151
  %v3160 = vsub.f32 %v3083, %v3151
  %v3161 = vsub.f32 %v3086, %v3151
  %v3162 = vsub.f32 %v3091, %v3151
  %v3163 = vsub.f32 %v3094, %v3151
  %v3164 = vsub.f32 %v3099, %v3151
  %v3165 = vsub.f32 %v3102, %v3151
  %v3166 = vsub.f32 %v3107, %v3151
  %v3167 = vsub.f32 %v3110, %v3151
  %v3168 = vmul.f32 %v3152, %v3152
  %v3169 = vmul.f32 %v3153, %v3153
  %v3170 = vmul.f32 %v3154, %v3154
  %v3171 = vmul.f32 %v3155, %v3155
  %v3172 = vmul.f32 %v3156, %v3156
  %v3173 = vmul.f32 %v3157, %v3157
  %v3174 = vmul.f32 %v3158, %v3158
  %v3175 = vmul.f32 %v3159, %v3159
  %v3176 = vmul.f32 %v3160, %v3160
  %v3177 = vmul.f32 %v3161, %v3161
  %v3178 = vmul.f32 %v3162, %v3162
  %v3179 = vmul.f32 %v3163, %v3163
  %v3180 = vmul.f32 %v3164, %v3164
  %v3181 = vmul.f32 %v3165, %v3165
  %v3182 = vmul.f32 %v3166, %v3166
  %v3183 = vmul.f32 %v3167, %v3167
  %v3184 = vsel %vm306, %v3168, 0.0
  %v3185 = vsel %vm306, %v3169, 0.0
  %v3186 = vadd.f32 %v3184, %v3185
  %v3187 = vsel %vm306, %v3170, 0.0
  %v3188 = vadd.f32 %v3186, %v3187
  %v3189 = vsel %vm306, %v3171, 0.0
  %v3190 = vadd.f32 %v3188, %v3189
  %v3191 = vsel %vm306, %v3172, 0.0
  %v3192 = vadd.f32 %v3190, %v3191
  %v3193 = vsel %vm306, %v3173, 0.0
  %v3194 = vadd.f32 %v3192, %v3193
  %v3195 = vsel %vm306, %v3174, 0.0
  %v3196 = vadd.f32 %v3194, %v3195
  %v3197 = vsel %vm306, %v3175, 0.0
  %v3198 = vadd.f32 %v3196, %v3197
  %v3199 = vsel %vm306, %v3176, 0.0
  %v3200 = vadd.f32 %v3198, %v3199
  %v3201 = vsel %vm306, %v3177, 0.0
  %v3202 = vadd.f32 %v3200, %v3201
  %v3203 = vsel %vm306, %v3178, 0.0
  %v3204 = vadd.f32 %v3202, %v3203
  %v3205 = vsel %vm306, %v3179, 0.0
  %v3206 = vadd.f32 %v3204, %v3205
  %v3207 = vsel %vm306, %v3180, 0.0
  %v3208 = vadd.f32 %v3206, %v3207
  %v3209 = vsel %vm306, %v3181, 0.0
  %v3210 = vadd.f32 %v3208, %v3209
  %v3211 = vsel %vm306, %v3182, 0.0
  %v3212 = vadd.f32 %v3210, %v3211
  %v3213 = vsel %vm306, %v3183, 0.0
  %v3214 = vadd.f32 %v3212, %v3213
  %v3215 = vrot.slane %v3214, 4
  %v3216 = vadd.f32 %v3214, %v3215
  %v3217 = vrot.slane %v3216, 2
  %v3218 = vadd.f32 %v3216, %v3217
  %v3219 = vrot.slane %v3218, 1
  %v3220 = vadd.f32 %v3218, %v3219
  %v3221 = vmul.f32 %v3220, %v3150
  %v3222 = vld [vmem:[%s5] sm:$0x1]
  %v3223 = vadd.f32 %v3221, 1e-05
  %v3224 = vrsqrt.pop %v3223
  %v3225 = vmul.f32 %v3222, %v3224
  %v3227 = vlaneseq
  %v3228 = vshrl.u32 %v3227, 7
  %v3229 = vsub.s32 0, %v3228
  %v3230 = vrot.slane %v3225, %v3229
  %v3232 = vmul.f32 %v3051, %v3230
  %v3233 = vmul.f32 %v3054, %v3230
  %v3234 = vmul.f32 %v3059, %v3230
  %v3235 = vmul.f32 %v3062, %v3230
  %v3236 = vmul.f32 %v3067, %v3230
  %v3237 = vmul.f32 %v3070, %v3230
  %v3238 = vmul.f32 %v3075, %v3230
  %v3239 = vmul.f32 %v3078, %v3230
  %v3240 = vmul.f32 %v3083, %v3230
  %v3241 = vmul.f32 %v3086, %v3230
  %v3242 = vmul.f32 %v3091, %v3230
  %v3243 = vmul.f32 %v3094, %v3230
  %v3244 = vmul.f32 %v3099, %v3230
  %v3245 = vmul.f32 %v3102, %v3230
  %v3246 = vmul.f32 %v3107, %v3230
  %v3247 = vmul.f32 %v3110, %v3230
  %v3248 = vld [vmem:[%s6] sm:$0x1]
  %v3249 = vmul.f32 %v3151, %v3225
  %v3250 = vsub.f32 %v3248, %v3249
  %v3252 = vlaneseq
  %v3253 = vshrl.u32 %v3252, 7
  %v3254 = vsub.s32 0, %v3253
  %v3255 = vrot.slane %v3250, %v3254
  %v3257 = vadd.f32 %v3232, %v3255
  %v3258 = vadd.f32 %v3233, %v3255
  %v3259 = vadd.f32 %v3234, %v3255
  %v3260 = vadd.f32 %v3235, %v3255
  %v3261 = vadd.f32 %v3236, %v3255
  %v3262 = vadd.f32 %v3237, %v3255
  %v3263 = vadd.f32 %v3238, %v3255
  %v3264 = vadd.f32 %v3239, %v3255
  %v3265 = vadd.f32 %v3240, %v3255
  %v3266 = vadd.f32 %v3241, %v3255
  %v3267 = vadd.f32 %v3242, %v3255
  %v3268 = vadd.f32 %v3243, %v3255
  %v3269 = vadd.f32 %v3244, %v3255
  %v3270 = vadd.f32 %v3245, %v3255
  %v3271 = vadd.f32 %v3246, %v3255
  %v3272 = vadd.f32 %v3247, %v3255
  %v3273 = vmul.f32 %v3257, 0.2
  %v3274 = vmul.f32 %v3258, 0.2
  %v3275 = vmul.f32 %v3259, 0.2
  %v3276 = vmul.f32 %v3260, 0.2
  %v3277 = vmul.f32 %v3261, 0.2
  %v3278 = vmul.f32 %v3262, 0.2
  %v3279 = vmul.f32 %v3263, 0.2
  %v3280 = vmul.f32 %v3264, 0.2
  %v3281 = vmul.f32 %v3265, 0.2
  %v3282 = vmul.f32 %v3266, 0.2
  %v3283 = vmul.f32 %v3267, 0.2
  %v3284 = vmul.f32 %v3268, 0.2
  %v3285 = vmul.f32 %v3269, 0.2
  %v3286 = vmul.f32 %v3270, 0.2
  %v3287 = vmul.f32 %v3271, 0.2
  %v3288 = vmul.f32 %v3272, 0.2
  %v3289 = vmax.f32 %v3257, %v3273
  %v3290 = vmax.f32 %v3258, %v3274
  %v3291 = vmax.f32 %v3259, %v3275
  %v3292 = vmax.f32 %v3260, %v3276
  %v3293 = vmax.f32 %v3261, %v3277
  %v3294 = vmax.f32 %v3262, %v3278
  %v3295 = vmax.f32 %v3263, %v3279
  %v3296 = vmax.f32 %v3264, %v3280
  %v3297 = vmax.f32 %v3265, %v3281
  %v3298 = vmax.f32 %v3266, %v3282
  %v3299 = vmax.f32 %v3267, %v3283
  %v3300 = vmax.f32 %v3268, %v3284
  %v3301 = vmax.f32 %v3269, %v3285
  %v3302 = vmax.f32 %v3270, %v3286
  %v3303 = vmax.f32 %v3271, %v3287
  %v3304 = vmax.f32 %v3272, %v3288
  %v3309 = vcombine.high %v3289, %v3289
  %v3310 = vcombine.high %v3290, %v3290
  %v3311 = vcombine.high %v3291, %v3291
  %v3312 = vcombine.high %v3292, %v3292
  %vm3317 = vcmask 1043456
  %v3318 = vsel %vm3317, %v3289, 0.0
  %v3319 = vsel %vm3317, %v3309, 0.0
  %v3320 = vsel %vm3317, %v3290, 0.0
  %v3321 = vsel %vm3317, %v3310, 0.0
  %v3322 = vsel %vm3317, %v3291, 0.0
  %v3323 = vsel %vm3317, %v3311, 0.0
  %v3324 = vsel %vm3317, %v3292, 0.0
  %v3325 = vsel %vm3317, %v3312, 0.0
  %v3330 = vcombine.high %v3293, %v3293
  %v3331 = vcombine.high %v3294, %v3294
  %v3332 = vcombine.high %v3295, %v3295
  %v3333 = vcombine.high %v3296, %v3296
  %v3334 = vrot.slane %v3293, 7
  %v3335 = vrot.slane %v3330, 7
  %v3336 = vrot.slane %v3294, 7
  %v3337 = vrot.slane %v3331, 7
  %v3338 = vrot.slane %v3295, 7
  %v3339 = vrot.slane %v3332, 7
  %v3340 = vrot.slane %v3296, 7
  %v3341 = vrot.slane %v3333, 7
  %v3350 = vsel %vm847, 0.0, %v3334
  %v3351 = vsel %vm847, 0.0, %v3335
  %v3352 = vsel %vm847, 0.0, %v3336
  %v3353 = vsel %vm847, 0.0, %v3337
  %v3354 = vsel %vm847, 0.0, %v3338
  %v3355 = vsel %vm847, 0.0, %v3339
  %v3356 = vsel %vm847, 0.0, %v3340
  %v3357 = vsel %vm847, 0.0, %v3341
  %v3362 = vcombine.high %v3297, %v3297
  %v3363 = vcombine.high %v3298, %v3298
  %v3364 = vcombine.high %v3299, %v3299
  %v3365 = vcombine.high %v3300, %v3300
  %v3370 = vsel %vm3317, %v3297, 0.0
  %v3371 = vsel %vm3317, %v3362, 0.0
  %v3372 = vsel %vm3317, %v3298, 0.0
  %v3373 = vsel %vm3317, %v3363, 0.0
  %v3374 = vsel %vm3317, %v3299, 0.0
  %v3375 = vsel %vm3317, %v3364, 0.0
  %v3376 = vsel %vm3317, %v3300, 0.0
  %v3377 = vsel %vm3317, %v3365, 0.0
  %v3382 = vcombine.high %v3301, %v3301
  %v3383 = vcombine.high %v3302, %v3302
  %v3384 = vcombine.high %v3303, %v3303
  %v3385 = vcombine.high %v3304, %v3304
  %v3386 = vrot.slane %v3301, 7
  %v3387 = vrot.slane %v3382, 7
  %v3388 = vrot.slane %v3302, 7
  %v3389 = vrot.slane %v3383, 7
  %v3390 = vrot.slane %v3303, 7
  %v3391 = vrot.slane %v3384, 7
  %v3392 = vrot.slane %v3304, 7
  %v3393 = vrot.slane %v3385, 7
  %v3402 = vsel %vm847, 0.0, %v3386
  %v3403 = vsel %vm847, 0.0, %v3387
  %v3404 = vsel %vm847, 0.0, %v3388
  %v3405 = vsel %vm847, 0.0, %v3389
  %v3406 = vsel %vm847, 0.0, %v3390
  %v3407 = vsel %vm847, 0.0, %v3391
  %v3408 = vsel %vm847, 0.0, %v3392
  %v3409 = vsel %vm847, 0.0, %v3393
  %3416 = vrot.lane.b32.xlu0 0.0, 32
  %v3417 = vpop.permute.xlu0 %3416
  %3418 = vrot.lane.b32.xlu0 %v3370, 32
  %v3419 = vpop.permute.xlu0 %3418
  %3420 = vrot.lane.b32.xlu0 %v3371, 32
  %v3421 = vpop.permute.xlu0 %3420
  %3422 = vrot.lane.b32.xlu0 %v3372, 32
  %v3423 = vpop.permute.xlu0 %3422
  %3424 = vrot.lane.b32.xlu0 %v3374, 32
  %v3425 = vpop.permute.xlu0 %3424
  %3426 = vrot.lane.b32.xlu0 %v3375, 32
  %v3427 = vpop.permute.xlu0 %3426
  %3428 = vrot.lane.b32.xlu0 %v3376, 32
  %v3429 = vpop.permute.xlu0 %3428
  %v3444 = vrot.slane %v852, 1
  %v3445 = vrot.slane %v3402, 1
  %v3446 = vrot.slane %v3403, 1
  %v3447 = vrot.slane %v3404, 1
  %v3448 = vrot.slane %v3406, 1
  %v3449 = vrot.slane %v3407, 1
  %v3450 = vrot.slane %v3408, 1
  %3451 = vrot.lane.b32.xlu0 %v3444, 64
  %v3452 = vpop.permute.xlu0 %3451
  %3453 = vrot.lane.b32.xlu0 %v3445, 64
  %v3454 = vpop.permute.xlu0 %3453
  %3455 = vrot.lane.b32.xlu0 %v3446, 64
  %v3456 = vpop.permute.xlu0 %3455
  %3457 = vrot.lane.b32.xlu0 %v3447, 64
  %v3458 = vpop.permute.xlu0 %3457
  %3459 = vrot.lane.b32.xlu0 %v3448, 64
  %v3460 = vpop.permute.xlu0 %3459
  %3461 = vrot.lane.b32.xlu0 %v3449, 64
  %v3462 = vpop.permute.xlu0 %3461
  %3463 = vrot.lane.b32.xlu0 %v3450, 64
  %v3464 = vpop.permute.xlu0 %3463
  %v3472 = vrot.slane 0.0, 1
  %v3473 = vrot.slane %v3370, 1
  %v3474 = vrot.slane %v3371, 1
  %v3475 = vrot.slane %v3372, 1
  %v3476 = vrot.slane %v3374, 1
  %v3477 = vrot.slane %v3375, 1
  %v3478 = vrot.slane %v3376, 1
  %3479 = vrot.lane.b32.xlu0 %v3472, 96
  %v3480 = vpop.permute.xlu0 %3479
  %3481 = vrot.lane.b32.xlu0 %v3473, 96
  %v3482 = vpop.permute.xlu0 %3481
  %3483 = vrot.lane.b32.xlu0 %v3474, 96
  %v3484 = vpop.permute.xlu0 %3483
  %3485 = vrot.lane.b32.xlu0 %v3475, 96
  %v3486 = vpop.permute.xlu0 %3485
  %3487 = vrot.lane.b32.xlu0 %v3476, 96
  %v3488 = vpop.permute.xlu0 %3487
  %3489 = vrot.lane.b32.xlu0 %v3477, 96
  %v3490 = vpop.permute.xlu0 %3489
  %3491 = vrot.lane.b32.xlu0 %v3478, 96
  %v3492 = vpop.permute.xlu0 %3491
  %3508 = vrot.lane.b32.xlu0 %v3318, 32
  %v3509 = vpop.permute.xlu0 %3508
  %3510 = vrot.lane.b32.xlu0 %v3319, 32
  %v3511 = vpop.permute.xlu0 %3510
  %3512 = vrot.lane.b32.xlu0 %v3320, 32
  %v3513 = vpop.permute.xlu0 %3512
  %3514 = vrot.lane.b32.xlu0 %v3321, 32
  %v3515 = vpop.permute.xlu0 %3514
  %3516 = vrot.lane.b32.xlu0 %v3322, 32
  %v3517 = vpop.permute.xlu0 %3516
  %3518 = vrot.lane.b32.xlu0 %v3323, 32
  %v3519 = vpop.permute.xlu0 %3518
  %3520 = vrot.lane.b32.xlu0 %v3324, 32
  %v3521 = vpop.permute.xlu0 %3520
  %3522 = vrot.lane.b32.xlu0 %v3325, 32
  %v3523 = vpop.permute.xlu0 %3522
  %v3540 = vrot.slane %v3350, 1
  %v3541 = vrot.slane %v3351, 1
  %v3542 = vrot.slane %v3352, 1
  %v3543 = vrot.slane %v3353, 1
  %v3544 = vrot.slane %v3354, 1
  %v3545 = vrot.slane %v3355, 1
  %v3546 = vrot.slane %v3356, 1
  %v3547 = vrot.slane %v3357, 1
  %3548 = vrot.lane.b32.xlu0 %v3540, 64
  %v3549 = vpop.permute.xlu0 %3548
  %3550 = vrot.lane.b32.xlu0 %v3541, 64
  %v3551 = vpop.permute.xlu0 %3550
  %3552 = vrot.lane.b32.xlu0 %v3542, 64
  %v3553 = vpop.permute.xlu0 %3552
  %3554 = vrot.lane.b32.xlu0 %v3543, 64
  %v3555 = vpop.permute.xlu0 %3554
  %3556 = vrot.lane.b32.xlu0 %v3544, 64
  %v3557 = vpop.permute.xlu0 %3556
  %3558 = vrot.lane.b32.xlu0 %v3545, 64
  %v3559 = vpop.permute.xlu0 %3558
  %3560 = vrot.lane.b32.xlu0 %v3546, 64
  %v3561 = vpop.permute.xlu0 %3560
  %3562 = vrot.lane.b32.xlu0 %v3547, 64
  %v3563 = vpop.permute.xlu0 %3562
  %v3572 = vrot.slane %v3318, 1
  %v3573 = vrot.slane %v3319, 1
  %v3574 = vrot.slane %v3320, 1
  %v3575 = vrot.slane %v3321, 1
  %v3576 = vrot.slane %v3322, 1
  %v3577 = vrot.slane %v3323, 1
  %v3578 = vrot.slane %v3324, 1
  %v3579 = vrot.slane %v3325, 1
  %3580 = vrot.lane.b32.xlu0 %v3572, 96
  %v3581 = vpop.permute.xlu0 %3580
  %3582 = vrot.lane.b32.xlu0 %v3573, 96
  %v3583 = vpop.permute.xlu0 %3582
  %3584 = vrot.lane.b32.xlu0 %v3574, 96
  %v3585 = vpop.permute.xlu0 %3584
  %3586 = vrot.lane.b32.xlu0 %v3575, 96
  %v3587 = vpop.permute.xlu0 %3586
  %3588 = vrot.lane.b32.xlu0 %v3576, 96
  %v3589 = vpop.permute.xlu0 %3588
  %3590 = vrot.lane.b32.xlu0 %v3577, 96
  %v3591 = vpop.permute.xlu0 %3590
  %3592 = vrot.lane.b32.xlu0 %v3578, 96
  %v3593 = vpop.permute.xlu0 %3592
  %3594 = vrot.lane.b32.xlu0 %v3579, 96
  %v3595 = vpop.permute.xlu0 %3594
  %3606 = vrot.lane.b32.xlu0 %v3373, 32
  %v3607 = vpop.permute.xlu0 %3606
  %3608 = vrot.lane.b32.xlu0 %v3377, 32
  %v3609 = vpop.permute.xlu0 %3608
  %v3614 = vrot.slane %v3405, 1
  %v3615 = vrot.slane %v3409, 1
  %3616 = vrot.lane.b32.xlu0 %v3614, 64
  %v3617 = vpop.permute.xlu0 %3616
  %3618 = vrot.lane.b32.xlu0 %v3615, 64
  %v3619 = vpop.permute.xlu0 %3618
  %v3622 = vrot.slane %v3373, 1
  %v3623 = vrot.slane %v3377, 1
  %3624 = vrot.lane.b32.xlu0 %v3622, 96
  %v3625 = vpop.permute.xlu0 %3624
  %3626 = vrot.lane.b32.xlu0 %v3623, 96
  %v3627 = vpop.permute.xlu0 %3626
  %v3630 = vsel %vm306, %v852, %v3417
  %v3631 = vsel %vm306, %v3402, %v3419
  %v3632 = vsel %vm306, %v3403, %v3421
  %v3633 = vsel %vm306, %v3404, %v3423
  %v3634 = vsel %vm306, %v3406, %v3425
  %v3635 = vsel %vm306, %v3407, %v3427
  %v3636 = vsel %vm306, %v3408, %v3429
  %v3637 = vsel %vm2015, %v3630, %v3452
  %v3638 = vsel %vm2015, %v3631, %v3454
  %v3639 = vsel %vm2015, %v3632, %v3456
  %v3640 = vsel %vm2015, %v3633, %v3458
  %v3641 = vsel %vm2015, %v3634, %v3460
  %v3642 = vsel %vm2015, %v3635, %v3462
  %v3643 = vsel %vm2015, %v3636, %v3464
  %v3644 = vsel %vm2033, %v3637, %v3480
  %v3645 = vsel %vm2033, %v3638, %v3482
  %v3646 = vsel %vm2033, %v3639, %v3484
  %v3647 = vsel %vm2033, %v3640, %v3486
  %v3648 = vsel %vm2033, %v3641, %v3488
  %v3649 = vsel %vm2033, %v3642, %v3490
  %v3650 = vsel %vm2033, %v3643, %v3492
  %v3651 = vsel %vm306, %v3350, %v3509
  %v3652 = vsel %vm306, %v3351, %v3511
  %v3653 = vsel %vm306, %v3352, %v3513
  %v3654 = vsel %vm306, %v3353, %v3515
  %v3655 = vsel %vm306, %v3354, %v3517
  %v3656 = vsel %vm306, %v3355, %v3519
  %v3657 = vsel %vm306, %v3356, %v3521
  %v3658 = vsel %vm306, %v3357, %v3523
  %v3659 = vsel %vm2015, %v3651, %v3549
  %v3660 = vsel %vm2015, %v3652, %v3551
  %v3661 = vsel %vm2015, %v3653, %v3553
  %v3662 = vsel %vm2015, %v3654, %v3555
  %v3663 = vsel %vm2015, %v3655, %v3557
  %v3664 = vsel %vm2015, %v3656, %v3559
  %v3665 = vsel %vm2015, %v3657, %v3561
  %v3666 = vsel %vm2015, %v3658, %v3563
  %v3667 = vsel %vm2033, %v3659, %v3581
  %v3668 = vsel %vm2033, %v3660, %v3583
  %v3669 = vsel %vm2033, %v3661, %v3585
  %v3670 = vsel %vm2033, %v3662, %v3587
  %v3671 = vsel %vm2033, %v3663, %v3589
  %v3672 = vsel %vm2033, %v3664, %v3591
  %v3673 = vsel %vm2033, %v3665, %v3593
  %v3674 = vsel %vm2033, %v3666, %v3595
  %v3675 = vsel %vm306, %v3405, %v3607
  %v3676 = vsel %vm306, %v3409, %v3609
  %v3677 = vsel %vm2015, %v3675, %v3617
  %v3678 = vsel %vm2015, %v3676, %v3619
  %v3679 = vsel %vm2033, %v3677, %v3625
  %v3680 = vsel %vm2033, %v3678, %v3627
  %v3698 = vcombine.low %v3644, %v3667
  %v3699 = vcombine.low %v3645, %v3668
  %v3700 = vcombine.low %v3646, %v3669
  %v3701 = vcombine.low %v3647, %v3670
  %v3702 = vcombine.low %v3679, %v3644
  %v3703 = vcombine.low %v3644, %v3671
  %v3704 = vcombine.low %v3648, %v3672
  %v3705 = vcombine.low %v3649, %v3673
  %v3706 = vcombine.low %v3650, %v3674
  %v3707 = vcombine.low %v3680, %v3644
  %v3708 = vcombine.low %v3698, %v3699
  %v3709 = vcombine.high %v3698, %v3699
  %v3710 = vcombine.low %v3699, %v3700
  %v3711 = vcombine.high %v3699, %v3700
  %v3712 = vcombine.low %v3700, %v3701
  %v3713 = vcombine.high %v3700, %v3701
  %v3714 = vcombine.low %v3701, %v3702
  %v3715 = vcombine.high %v3701, %v3702
  %v3716 = vcombine.low %v3703, %v3704
  %v3717 = vcombine.high %v3703, %v3704
  %v3718 = vcombine.low %v3704, %v3705
  %v3719 = vcombine.high %v3704, %v3705
  %v3720 = vcombine.low %v3705, %v3706
  %v3721 = vcombine.high %v3705, %v3706
  %v3722 = vcombine.low %v3706, %v3707
  %v3723 = vcombine.high %v3706, %v3707
  %v3740 = vpack.c.bf16 %v3712, %v3708
  %v3741 = vpack.c.bf16 %v3713, %v3709
  %v3742 = vpack.c.bf16 %v3714, %v3710
  %v3743 = vpack.c.bf16 %v3715, %v3711
  %v3744 = vpack.c.bf16 %v3720, %v3716
  %v3745 = vpack.c.bf16 %v3721, %v3717
  %v3746 = vpack.c.bf16 %v3722, %v3718
  %v3747 = vpack.c.bf16 %v3723, %v3719
  %v3748 = vld [vmem:[%s7] sm:$0xf]
  %v3749 = vld [vmem:[%s7 + $0x4] sm:$0xf]
  %v3750 = vld [vmem:[%s7 + $0x8] sm:$0xf]
  %v3751 = vld [vmem:[%s7 + $0xc] sm:$0xf]
  %v3752 = vld [vmem:[%s7 + $0x10] sm:$0xf]
  %v3753 = vld [vmem:[%s7 + $0x14] sm:$0xf]
  %v3754 = vld [vmem:[%s7 + $0x18] sm:$0xf]
  %v3755 = vld [vmem:[%s7 + $0x1c] sm:$0xf]
  %v3756 = vld [vmem:[%s7 + $0x20] sm:$0xf]
  %v3757 = vld [vmem:[%s7 + $0x24] sm:$0xf]
  %v3758 = vld [vmem:[%s7 + $0x28] sm:$0xf]
  %v3759 = vld [vmem:[%s7 + $0x2c] sm:$0xf]
  %v3760 = vld [vmem:[%s7 + $0x30] sm:$0xf]
  %v3761 = vld [vmem:[%s7 + $0x34] sm:$0xf]
  %v3762 = vld [vmem:[%s7 + $0x38] sm:$0xf]
  %v3763 = vld [vmem:[%s7 + $0x3c] sm:$0xf]
  %v3764 = vld [vmem:[%s7 + $0x40] sm:$0xf]
  %v3765 = vld [vmem:[%s7 + $0x44] sm:$0xf]
  %v3766 = vld [vmem:[%s7 + $0x48] sm:$0xf]
  %v3767 = vld [vmem:[%s7 + $0x4c] sm:$0xf]
  %v3768 = vld [vmem:[%s7 + $0x50] sm:$0xf]
  %v3769 = vld [vmem:[%s7 + $0x54] sm:$0xf]
  %v3770 = vld [vmem:[%s7 + $0x58] sm:$0xf]
  %v3771 = vld [vmem:[%s7 + $0x5c] sm:$0xf]
  %v3772 = vld [vmem:[%s7 + $0x60] sm:$0xf]
  %v3773 = vld [vmem:[%s7 + $0x64] sm:$0xf]
  %v3774 = vld [vmem:[%s7 + $0x68] sm:$0xf]
  %v3775 = vld [vmem:[%s7 + $0x6c] sm:$0xf]
  %v3776 = vld [vmem:[%s7 + $0x70] sm:$0xf]
  %v3777 = vld [vmem:[%s7 + $0x74] sm:$0xf]
  %v3778 = vld [vmem:[%s7 + $0x78] sm:$0xf]
  %v3779 = vld [vmem:[%s7 + $0x7c] sm:$0xf]
  %v3780 = vld [vmem:[%s7 + $0x80] sm:$0xf]
  %v3781 = vld [vmem:[%s7 + $0x84] sm:$0xf]
  %v3782 = vld [vmem:[%s7 + $0x88] sm:$0xf]
  %v3783 = vld [vmem:[%s7 + $0x8c] sm:$0xf]
  %v3784 = vld [vmem:[%s7 + $0x90] sm:$0xf]
  %v3785 = vld [vmem:[%s7 + $0x94] sm:$0xf]
  %v3786 = vld [vmem:[%s7 + $0x98] sm:$0xf]
  %v3787 = vld [vmem:[%s7 + $0x9c] sm:$0xf]
  %v3788 = vld [vmem:[%s7 + $0xa0] sm:$0xf]
  %v3789 = vld [vmem:[%s7 + $0xa4] sm:$0xf]
  %v3790 = vld [vmem:[%s7 + $0xa8] sm:$0xf]
  %v3791 = vld [vmem:[%s7 + $0xac] sm:$0xf]
  %v3792 = vld [vmem:[%s7 + $0xb0] sm:$0xf]
  %v3793 = vld [vmem:[%s7 + $0xb4] sm:$0xf]
  %v3794 = vld [vmem:[%s7 + $0xb8] sm:$0xf]
  %v3795 = vld [vmem:[%s7 + $0xbc] sm:$0xf]
  %v3796 = vld [vmem:[%s7 + $0xc0] sm:$0xf]
  %v3797 = vld [vmem:[%s7 + $0xc4] sm:$0xf]
  %v3798 = vld [vmem:[%s7 + $0xc8] sm:$0xf]
  %v3799 = vld [vmem:[%s7 + $0xcc] sm:$0xf]
  %v3800 = vld [vmem:[%s7 + $0xd0] sm:$0xf]
  %v3801 = vld [vmem:[%s7 + $0xd4] sm:$0xf]
  %v3802 = vld [vmem:[%s7 + $0xd8] sm:$0xf]
  %v3803 = vld [vmem:[%s7 + $0xdc] sm:$0xf]
  %v3804 = vld [vmem:[%s7 + $0xe0] sm:$0xf]
  %v3805 = vld [vmem:[%s7 + $0xe4] sm:$0xf]
  %v3806 = vld [vmem:[%s7 + $0xe8] sm:$0xf]
  %v3807 = vld [vmem:[%s7 + $0xec] sm:$0xf]
  %v3808 = vld [vmem:[%s7 + $0xf0] sm:$0xf]
  %v3809 = vld [vmem:[%s7 + $0xf4] sm:$0xf]
  %v3810 = vld [vmem:[%s7 + $0xf8] sm:$0xf]
  %v3811 = vld [vmem:[%s7 + $0xfc] sm:$0xf]
  %v3812 = vld [vmem:[%s8] sm:$0x1]
  %v3814 = vlaneseq
  %v3815 = vshrl.u32 %v3814, 7
  %v3816 = vsub.s32 0, %v3815
  %v3817 = vrot.slane %v3812, %v3816
  %v3883 = vunpack.c.l.b16 %v3748
  %v3884 = vunpack.c.l.b16 %v3749
  %v3885 = vunpack.c.l.b16 %v3750
  %v3886 = vunpack.c.l.b16 %v3751
  %v3887 = vunpack.c.l.b16 %v3752
  %v3888 = vunpack.c.l.b16 %v3753
  %v3889 = vunpack.c.l.b16 %v3754
  %v3890 = vunpack.c.l.b16 %v3755
  %v3891 = vunpack.c.l.b16 %v3756
  %v3892 = vunpack.c.l.b16 %v3757
  %v3893 = vunpack.c.l.b16 %v3758
  %v3894 = vunpack.c.l.b16 %v3759
  %v3895 = vunpack.c.l.b16 %v3760
  %v3896 = vunpack.c.l.b16 %v3761
  %v3897 = vunpack.c.l.b16 %v3762
  %v3898 = vunpack.c.l.b16 %v3763
  %v3899 = vunpack.c.l.b16 %v3764
  %v3900 = vunpack.c.l.b16 %v3765
  %v3901 = vunpack.c.l.b16 %v3766
  %v3902 = vunpack.c.l.b16 %v3767
  %v3903 = vunpack.c.l.b16 %v3768
  %v3904 = vunpack.c.l.b16 %v3769
  %v3905 = vunpack.c.l.b16 %v3770
  %v3906 = vunpack.c.l.b16 %v3771
  %v3907 = vunpack.c.l.b16 %v3772
  %v3908 = vunpack.c.l.b16 %v3773
  %v3909 = vunpack.c.l.b16 %v3774
  %v3910 = vunpack.c.l.b16 %v3775
  %v3911 = vunpack.c.l.b16 %v3776
  %v3912 = vunpack.c.l.b16 %v3777
  %v3913 = vunpack.c.l.b16 %v3778
  %v3914 = vunpack.c.l.b16 %v3779
  %v3915 = vunpack.c.l.b16 %v3780
  %v3916 = vunpack.c.l.b16 %v3781
  %v3917 = vunpack.c.l.b16 %v3782
  %v3918 = vunpack.c.l.b16 %v3783
  %v3919 = vunpack.c.l.b16 %v3784
  %v3920 = vunpack.c.l.b16 %v3785
  %v3921 = vunpack.c.l.b16 %v3786
  %v3922 = vunpack.c.l.b16 %v3787
  %v3923 = vunpack.c.l.b16 %v3788
  %v3924 = vunpack.c.l.b16 %v3789
  %v3925 = vunpack.c.l.b16 %v3790
  %v3926 = vunpack.c.l.b16 %v3791
  %v3927 = vunpack.c.l.b16 %v3792
  %v3928 = vunpack.c.l.b16 %v3793
  %v3929 = vunpack.c.l.b16 %v3794
  %v3930 = vunpack.c.l.b16 %v3795
  %v3931 = vunpack.c.l.b16 %v3796
  %v3932 = vunpack.c.l.b16 %v3797
  %v3933 = vunpack.c.l.b16 %v3798
  %v3934 = vunpack.c.l.b16 %v3799
  %v3935 = vunpack.c.l.b16 %v3800
  %v3936 = vunpack.c.l.b16 %v3801
  %v3937 = vunpack.c.l.b16 %v3802
  %v3938 = vunpack.c.l.b16 %v3803
  %v3939 = vunpack.c.l.b16 %v3804
  %v3940 = vunpack.c.l.b16 %v3805
  %v3941 = vunpack.c.l.b16 %v3806
  %v3942 = vunpack.c.l.b16 %v3807
  %v3943 = vunpack.c.l.b16 %v3808
  %v3944 = vunpack.c.l.b16 %v3809
  %v3945 = vunpack.c.l.b16 %v3810
  %v3946 = vunpack.c.l.b16 %v3811
  %v3947 = vpack.c.b16 %v3884, %v3883
  %v3948 = vpack.c.b16 %v3886, %v3885
  %v3949 = vpack.c.b16 %v3888, %v3887
  %v3950 = vpack.c.b16 %v3890, %v3889
  %v3951 = vpack.c.b16 %v3892, %v3891
  %v3952 = vpack.c.b16 %v3894, %v3893
  %v3953 = vpack.c.b16 %v3896, %v3895
  %v3954 = vpack.c.b16 %v3898, %v3897
  %v3955 = vpack.c.b16 %v3900, %v3899
  %v3956 = vpack.c.b16 %v3902, %v3901
  %v3957 = vpack.c.b16 %v3904, %v3903
  %v3958 = vpack.c.b16 %v3906, %v3905
  %v3959 = vpack.c.b16 %v3908, %v3907
  %v3960 = vpack.c.b16 %v3910, %v3909
  %v3961 = vpack.c.b16 %v3912, %v3911
  %v3962 = vpack.c.b16 %v3914, %v3913
  %v3963 = vpack.c.b16 %v3916, %v3915
  %v3964 = vpack.c.b16 %v3918, %v3917
  %v3965 = vpack.c.b16 %v3920, %v3919
  %v3966 = vpack.c.b16 %v3922, %v3921
  %v3967 = vpack.c.b16 %v3924, %v3923
  %v3968 = vpack.c.b16 %v3926, %v3925
  %v3969 = vpack.c.b16 %v3928, %v3927
  %v3970 = vpack.c.b16 %v3930, %v3929
  %v3971 = vpack.c.b16 %v3932, %v3931
  %v3972 = vpack.c.b16 %v3934, %v3933
  %v3973 = vpack.c.b16 %v3936, %v3935
  %v3974 = vpack.c.b16 %v3938, %v3937
  %v3975 = vpack.c.b16 %v3940, %v3939
  %v3976 = vpack.c.b16 %v3942, %v3941
  %v3977 = vpack.c.b16 %v3944, %v3943
  %v3978 = vpack.c.b16 %v3946, %v3945
  %4011 = vmatprep.subr.bf16.mxu0 0
  %4012 = vmatpush1.bf16.msra.mxu0 %v3954
  %4013 = vmatprep.subr.bf16.mxu0 0
  %4014 = vmatpush1.bf16.msra.mxu0 %v3953
  %4015 = vmatprep.subr.bf16.mxu0 0
  %4016 = vmatpush1.bf16.msra.mxu0 %v3952
  %4017 = vmatprep.subr.bf16.mxu0 0
  %4018 = vmatpush1.bf16.msra.mxu0 %v3951
  %4019 = vmatprep.subr.bf16.mxu0 0
  %4020 = vmatpush1.bf16.msra.mxu0 %v3950
  %4021 = vmatprep.subr.bf16.mxu0 0
  %4022 = vmatpush1.bf16.msra.mxu0 %v3949
  %4023 = vmatprep.subr.bf16.mxu0 0
  %4024 = vmatpush1.bf16.msra.mxu0 %v3948
  %4025 = vmatprep.subr.bf16.mxu0 0
  %4026 = vmatpush1.bf16.msra.mxu0 %v3947
  %4027 = vmatprep.subr.bf16.mxu0 0
  %4028 = vmatpush2.bf16.msra.mxu0 %v3962
  %4029 = vmatprep.subr.bf16.mxu0 0
  %4030 = vmatpush2.bf16.msra.mxu0 %v3961
  %4031 = vmatprep.subr.bf16.mxu0 0
  %4032 = vmatpush2.bf16.msra.mxu0 %v3960
  %4033 = vmatprep.subr.bf16.mxu0 0
  %4034 = vmatpush2.bf16.msra.mxu0 %v3959
  %4035 = vmatprep.subr.bf16.mxu0 0
  %4036 = vmatpush2.bf16.msra.mxu0 %v3958
  %4037 = vmatprep.subr.bf16.mxu0 0
  %4038 = vmatpush2.bf16.msra.mxu0 %v3957
  %4039 = vmatprep.subr.bf16.mxu0 0
  %4040 = vmatpush2.bf16.msra.mxu0 %v3956
  %4041 = vmatprep.subr.bf16.mxu0 0
  %4042 = vmatpush2.bf16.msra.mxu0 %v3955
  %4043 = vmatprep.mubr.bf16.mxu0 %v3741
  %4044 = vmatmul.mubr.bf16.gmra.mxu0 %v3740
  %v4045 = vpop.f32.mrf.mxu0
  %v4046 = vadd.f32 %v3817, %v4045
  %v4047 = vpop.f32.mrf.mxu0
  %v4048 = vpop.f32.mrf.mxu0
  %v4049 = vadd.f32 %v3817, %v4048
  %v4050 = vpop.f32.mrf.mxu0
  %4051 = vmatprep.mubr.bf16.mxu0 %v3745
  %4052 = vmatmul.mubr.bf16.gmra.mxu0 %v3744
  %v4053 = vpop.f32.mrf.mxu0
  %v4054 = vadd.f32 %v3817, %v4053
  %v4055 = vpop.f32.mrf.mxu0
  %v4056 = vpop.f32.mrf.mxu0
  %v4057 = vadd.f32 %v3817, %v4056
  %v4058 = vpop.f32.mrf.mxu0
  %4059 = vdwg.mxu0
  %4060 = vmatprep.subr.bf16.mxu0 0
  %4061 = vmatpush1.bf16.msra.mxu0 %v3970
  %4062 = vmatprep.subr.bf16.mxu0 0
  %4063 = vmatpush1.bf16.msra.mxu0 %v3969
  %4064 = vmatprep.subr.bf16.mxu0 0
  %4065 = vmatpush1.bf16.msra.mxu0 %v3968
  %4066 = vmatprep.subr.bf16.mxu0 0
  %4067 = vmatpush1.bf16.msra.mxu0 %v3967
  %4068 = vmatprep.subr.bf16.mxu0 0
  %4069 = vmatpush1.bf16.msra.mxu0 %v3966
  %4070 = vmatprep.subr.bf16.mxu0 0
  %4071 = vmatpush1.bf16.msra.mxu0 %v3965
  %4072 = vmatprep.subr.bf16.mxu0 0
  %4073 = vmatpush1.bf16.msra.mxu0 %v3964
  %4074 = vmatprep.subr.bf16.mxu0 0
  %4075 = vmatpush1.bf16.msra.mxu0 %v3963
  %4076 = vmatprep.subr.bf16.mxu0 0
  %4077 = vmatpush2.bf16.msra.mxu0 %v3978
  %4078 = vmatprep.subr.bf16.mxu0 0
  %4079 = vmatpush2.bf16.msra.mxu0 %v3977
  %4080 = vmatprep.subr.bf16.mxu0 0
  %4081 = vmatpush2.bf16.msra.mxu0 %v3976
  %4082 = vmatprep.subr.bf16.mxu0 0
  %4083 = vmatpush2.bf16.msra.mxu0 %v3975
  %4084 = vmatprep.subr.bf16.mxu0 0
  %4085 = vmatpush2.bf16.msra.mxu0 %v3974
  %4086 = vmatprep.subr.bf16.mxu0 0
  %4087 = vmatpush2.bf16.msra.mxu0 %v3973
  %4088 = vmatprep.subr.bf16.mxu0 0
  %4089 = vmatpush2.bf16.msra.mxu0 %v3972
  %4090 = vmatprep.subr.bf16.mxu0 0
  %4091 = vmatpush2.bf16.msra.mxu0 %v3971
  %4092 = vmatprep.mubr.bf16.mxu0 %v3743
  %4093 = vmatmul.mubr.bf16.gmra.mxu0 %v3742
  %v4094 = vpop.f32.mrf.mxu0
  %v4095 = vadd.f32 %v4046, %v4094
  %v4096 = vpop.f32.mrf.mxu0
  %v4097 = vpop.f32.mrf.mxu0
  %v4098 = vadd.f32 %v4049, %v4097
  %v4099 = vpop.f32.mrf.mxu0
  %4100 = vmatprep.mubr.bf16.mxu0 %v3747
  %4101 = vmatmul.mubr.bf16.gmra.mxu0 %v3746
  %v4102 = vpop.f32.mrf.mxu0
  %v4103 = vadd.f32 %v4054, %v4102
  %v4104 = vpop.f32.mrf.mxu0
  %v4105 = vpop.f32.mrf.mxu0
  %v4106 = vadd.f32 %v4057, %v4105
  %v4107 = vpop.f32.mrf.mxu0
  %4108 = vdwg.mxu0
  %v4109 = vsel %vm2015, %v4095, 0.0
  %v4110 = vsel %vm2015, %v4098, 0.0
  %v4111 = vadd.f32 %v4109, %v4110
  %v4112 = vsel %vm2015, %v4103, 0.0
  %v4113 = vadd.f32 %v4111, %v4112
  %v4114 = vsel %vm2015, %v4106, 0.0
  %v4115 = vadd.f32 %v4113, %v4114
  %v4116 = vrot.slane %v4115, 4
  %v4117 = vadd.f32 %v4115, %v4116
  %v4118 = vrot.slane %v4117, 2
  %v4119 = vadd.f32 %v4117, %v4118
  %v4120 = vrot.slane %v4119, 1
  %v4121 = vadd.f32 %v4119, %v4120
  %v4122 = vrcp.pop 32.0
  %v4123 = vmul.f32 %v4121, %v4122
  %v4124 = vsub.f32 %v4095, %v4123
  %v4125 = vsub.f32 %v4098, %v4123
  %v4126 = vsub.f32 %v4103, %v4123
  %v4127 = vsub.f32 %v4106, %v4123
  %v4128 = vmul.f32 %v4124, %v4124
  %v4129 = vmul.f32 %v4125, %v4125
  %v4130 = vmul.f32 %v4126, %v4126
  %v4131 = vmul.f32 %v4127, %v4127
  %v4132 = vsel %vm2015, %v4128, 0.0
  %v4133 = vsel %vm2015, %v4129, 0.0
  %v4134 = vadd.f32 %v4132, %v4133
  %v4135 = vsel %vm2015, %v4130, 0.0
  %v4136 = vadd.f32 %v4134, %v4135
  %v4137 = vsel %vm2015, %v4131, 0.0
  %v4138 = vadd.f32 %v4136, %v4137
  %v4139 = vrot.slane %v4138, 4
  %v4140 = vadd.f32 %v4138, %v4139
  %v4141 = vrot.slane %v4140, 2
  %v4142 = vadd.f32 %v4140, %v4141
  %v4143 = vrot.slane %v4142, 1
  %v4144 = vadd.f32 %v4142, %v4143
  %v4145 = vmul.f32 %v4144, %v4122
  %v4146 = vld [vmem:[%s9] sm:$0x1]
  %v4147 = vadd.f32 %v4145, 1e-05
  %v4148 = vrsqrt.pop %v4147
  %v4149 = vmul.f32 %v4146, %v4148
  %v4151 = vlaneseq
  %v4152 = vshrl.u32 %v4151, 7
  %v4153 = vsub.s32 0, %v4152
  %v4154 = vrot.slane %v4149, %v4153
  %v4156 = vmul.f32 %v4095, %v4154
  %v4157 = vmul.f32 %v4098, %v4154
  %v4158 = vmul.f32 %v4103, %v4154
  %v4159 = vmul.f32 %v4106, %v4154
  %v4160 = vld [vmem:[%s10] sm:$0x1]
  %v4161 = vmul.f32 %v4123, %v4149
  %v4162 = vsub.f32 %v4160, %v4161
  %v4164 = vlaneseq
  %v4165 = vshrl.u32 %v4164, 7
  %v4166 = vsub.s32 0, %v4165
  %v4167 = vrot.slane %v4162, %v4166
  %v4169 = vadd.f32 %v4156, %v4167
  %v4170 = vadd.f32 %v4157, %v4167
  %v4171 = vadd.f32 %v4158, %v4167
  %v4172 = vadd.f32 %v4159, %v4167
  %v4173 = vmul.f32 %v4169, 0.2
  %v4174 = vmul.f32 %v4170, 0.2
  %v4175 = vmul.f32 %v4171, 0.2
  %v4176 = vmul.f32 %v4172, 0.2
  %v4177 = vmax.f32 %v4169, %v4173
  %v4178 = vmax.f32 %v4170, %v4174
  %v4179 = vmax.f32 %v4171, %v4175
  %v4180 = vmax.f32 %v4172, %v4176
  %v4185 = vcombine.high %v4177, %v4177
  %v4186 = vcombine.high %v4178, %v4178
  %v4187 = vcombine.high %v4179, %v4179
  %v4188 = vcombine.high %v4180, %v4180
  %v4189 = vrot.slane %v4177, 7
  %v4190 = vrot.slane %v4185, 7
  %v4191 = vrot.slane %v4178, 7
  %v4192 = vrot.slane %v4186, 7
  %v4193 = vrot.slane %v4179, 7
  %v4194 = vrot.slane %v4187, 7
  %v4195 = vrot.slane %v4180, 7
  %v4196 = vrot.slane %v4188, 7
  %v4205 = vsel %vm847, 0.0, %v4189
  %v4206 = vsel %vm847, 0.0, %v4190
  %v4207 = vsel %vm847, 0.0, %v4191
  %v4208 = vsel %vm847, 0.0, %v4192
  %v4209 = vsel %vm847, 0.0, %v4193
  %v4210 = vsel %vm847, 0.0, %v4194
  %v4211 = vsel %vm847, 0.0, %v4195
  %v4212 = vsel %vm847, 0.0, %v4196
  %v4213 = vsel %vm857, %v4205, 0.0
  %v4214 = vsel %vm857, %v4206, 0.0
  %v4215 = vsel %vm857, %v4207, 0.0
  %v4216 = vsel %vm857, %v4208, 0.0
  %v4217 = vsel %vm857, %v4209, 0.0
  %v4218 = vsel %vm857, %v4210, 0.0
  %v4219 = vsel %vm857, %v4211, 0.0
  %v4220 = vsel %vm857, %v4212, 0.0
  %v4225 = vrot.slane %v4213, 1
  %v4226 = vrot.slane %v4214, 1
  %v4227 = vrot.slane %v4217, 1
  %v4228 = vrot.slane %v4218, 1
  %4229 = vrot.lane.b32.xlu0 %v1474, 64
  %v4230 = vpop.permute.xlu0 %4229
  %4231 = vrot.lane.b32.xlu0 %v4225, 64
  %v4232 = vpop.permute.xlu0 %4231
  %4233 = vrot.lane.b32.xlu0 %v4226, 64
  %v4234 = vpop.permute.xlu0 %4233
  %4235 = vrot.lane.b32.xlu0 %v4227, 64
  %v4236 = vpop.permute.xlu0 %4235
  %4237 = vrot.lane.b32.xlu0 %v4228, 64
  %v4238 = vpop.permute.xlu0 %4237
  %v4244 = vrot.slane %v862, 2
  %v4245 = vrot.slane %v4213, 2
  %v4246 = vrot.slane %v4214, 2
  %v4247 = vrot.slane %v4217, 2
  %v4248 = vrot.slane %v4218, 2
  %v4254 = vrot.slane %v862, 3
  %v4255 = vrot.slane %v4213, 3
  %v4256 = vrot.slane %v4214, 3
  %v4257 = vrot.slane %v4217, 3
  %v4258 = vrot.slane %v4218, 3
  %4259 = vrot.lane.b32.xlu0 %v4254, 64
  %v4260 = vpop.permute.xlu0 %4259
  %4261 = vrot.lane.b32.xlu0 %v4255, 64
  %v4262 = vpop.permute.xlu0 %4261
  %4263 = vrot.lane.b32.xlu0 %v4256, 64
  %v4264 = vpop.permute.xlu0 %4263
  %4265 = vrot.lane.b32.xlu0 %v4257, 64
  %v4266 = vpop.permute.xlu0 %4265
  %4267 = vrot.lane.b32.xlu0 %v4258, 64
  %v4268 = vpop.permute.xlu0 %4267
  %v4276 = vrot.slane %v4215, 1
  %v4277 = vrot.slane %v4219, 1
  %4278 = vrot.lane.b32.xlu0 %v4276, 64
  %v4279 = vpop.permute.xlu0 %4278
  %4280 = vrot.lane.b32.xlu0 %v4277, 64
  %v4281 = vpop.permute.xlu0 %4280
  %v4284 = vrot.slane %v4215, 2
  %v4285 = vrot.slane %v4219, 2
  %v4288 = vrot.slane %v4215, 3
  %v4289 = vrot.slane %v4219, 3
  %4290 = vrot.lane.b32.xlu0 %v4288, 64
  %v4291 = vpop.permute.xlu0 %4290
  %4292 = vrot.lane.b32.xlu0 %v4289, 64
  %v4293 = vpop.permute.xlu0 %4292
  %v4298 = vrot.slane %v4216, 1
  %v4299 = vrot.slane %v4220, 1
  %4300 = vrot.lane.b32.xlu0 %v4298, 64
  %v4301 = vpop.permute.xlu0 %4300
  %4302 = vrot.lane.b32.xlu0 %v4299, 64
  %v4303 = vpop.permute.xlu0 %4302
  %v4306 = vrot.slane %v4216, 2
  %v4307 = vrot.slane %v4220, 2
  %v4310 = vrot.slane %v4216, 3
  %v4311 = vrot.slane %v4220, 3
  %4312 = vrot.lane.b32.xlu0 %v4310, 64
  %v4313 = vpop.permute.xlu0 %4312
  %4314 = vrot.lane.b32.xlu0 %v4311, 64
  %v4315 = vpop.permute.xlu0 %4314
  %v4318 = vsel %vm2015, %v862, %v4230
  %v4319 = vsel %vm2015, %v4213, %v4232
  %v4320 = vsel %vm2015, %v4214, %v4234
  %v4321 = vsel %vm2015, %v4217, %v4236
  %v4322 = vsel %vm2015, %v4218, %v4238
  %v4323 = vsel %vm2015, %v4244, %v4260
  %v4324 = vsel %vm2015, %v4245, %v4262
  %v4325 = vsel %vm2015, %v4246, %v4264
  %v4326 = vsel %vm2015, %v4247, %v4266
  %v4327 = vsel %vm2015, %v4248, %v4268
  %v4328 = vsel %vm2015, %v4215, %v4279
  %v4329 = vsel %vm2015, %v4219, %v4281
  %v4330 = vsel %vm2015, %v4284, %v4291
  %v4331 = vsel %vm2015, %v4285, %v4293
  %v4332 = vsel %vm2015, %v4216, %v4301
  %v4333 = vsel %vm2015, %v4220, %v4303
  %v4334 = vsel %vm2015, %v4306, %v4313
  %v4335 = vsel %vm2015, %v4307, %v4315
  %v4354 = vcombine.low %v4318, %v4323
  %v4355 = vcombine.low %v4319, %v4324
  %v4356 = vcombine.low %v4320, %v4325
  %v4357 = vcombine.low %v4328, %v4330
  %v4359 = vunpack.c.l.s4 1966171168
  %v4360 = vunpack.c.0.s8 %v4359
  %v4361 = vlaneseq
  %v4362 = vshrl.u32 %v4361, 7
  %v4363 = vsub.s32 %v4360, %v4362
  %v4364 = vrot.slane %v4354, %v4363
  %v4366 = vunpack.c.l.s4 1966171168
  %v4367 = vunpack.c.0.s8 %v4366
  %v4368 = vlaneseq
  %v4369 = vshrl.u32 %v4368, 7
  %v4370 = vsub.s32 %v4367, %v4369
  %v4371 = vrot.slane %v4355, %v4370
  %v4373 = vunpack.c.l.s4 1966171168
  %v4374 = vunpack.c.0.s8 %v4373
  %v4375 = vlaneseq
  %v4376 = vshrl.u32 %v4375, 7
  %v4377 = vsub.s32 %v4374, %v4376
  %v4378 = vrot.slane %v4356, %v4377
  %v4380 = vunpack.c.l.s4 1966171168
  %v4381 = vunpack.c.0.s8 %v4380
  %v4382 = vlaneseq
  %v4383 = vshrl.u32 %v4382, 7
  %v4384 = vsub.s32 %v4381, %v4383
  %v4385 = vrot.slane %v4357, %v4384
  %v4386 = vcombine.low %v4364, %v4371
  %v4387 = vcombine.high %v4364, %v4371
  %v4388 = vcombine.low %v4378, %v4385
  %v4389 = vcombine.high %v4378, %v4385
  %v4391 = vunpack.c.l.s4 1966171168
  %v4392 = vunpack.c.0.s8 %v4391
  %v4393 = vlaneseq
  %v4394 = vshrl.u32 %v4393, 7
  %v4395 = vsub.s32 %v4392, %v4394
  %v4396 = vrot.slane %v4386, %v4395
  %v4398 = vunpack.c.l.s4 1966171168
  %v4399 = vunpack.c.0.s8 %v4398
  %v4400 = vlaneseq
  %v4401 = vshrl.u32 %v4400, 7
  %v4402 = vsub.s32 %v4399, %v4401
  %v4403 = vrot.slane %v4387, %v4402
  %v4405 = vunpack.c.l.s4 1966171168
  %v4406 = vunpack.c.0.s8 %v4405
  %v4407 = vlaneseq
  %v4408 = vshrl.u32 %v4407, 7
  %v4409 = vsub.s32 %v4406, %v4408
  %v4410 = vrot.slane %v4388, %v4409
  %v4412 = vunpack.c.l.s4 1966171168
  %v4413 = vunpack.c.0.s8 %v4412
  %v4414 = vlaneseq
  %v4415 = vshrl.u32 %v4414, 7
  %v4416 = vsub.s32 %v4413, %v4415
  %v4417 = vrot.slane %v4389, %v4416
  %v4418 = vcombine.low %v4396, %v4410
  %v4419 = vcombine.high %v4396, %v4410
  %v4420 = vcombine.low %v4403, %v4417
  %v4421 = vcombine.low %v4332, %v4334
  %v4423 = vunpack.c.l.s4 1966171168
  %v4424 = vunpack.c.0.s8 %v4423
  %v4425 = vlaneseq
  %v4426 = vshrl.u32 %v4425, 7
  %v4427 = vsub.s32 %v4424, %v4426
  %v4428 = vrot.slane %v4421, %v4427
  %v4429 = vcombine.low %v4371, %v4378
  %v4430 = vcombine.high %v4371, %v4378
  %v4431 = vcombine.low %v4385, %v4428
  %v4432 = vcombine.high %v4385, %v4428
  %v4434 = vunpack.c.l.s4 1966171168
  %v4435 = vunpack.c.0.s8 %v4434
  %v4436 = vlaneseq
  %v4437 = vshrl.u32 %v4436, 7
  %v4438 = vsub.s32 %v4435, %v4437
  %v4439 = vrot.slane %v4429, %v4438
  %v4441 = vunpack.c.l.s4 1966171168
  %v4442 = vunpack.c.0.s8 %v4441
  %v4443 = vlaneseq
  %v4444 = vshrl.u32 %v4443, 7
  %v4445 = vsub.s32 %v4442, %v4444
  %v4446 = vrot.slane %v4430, %v4445
  %v4448 = vunpack.c.l.s4 1966171168
  %v4449 = vunpack.c.0.s8 %v4448
  %v4450 = vlaneseq
  %v4451 = vshrl.u32 %v4450, 7
  %v4452 = vsub.s32 %v4449, %v4451
  %v4453 = vrot.slane %v4431, %v4452
  %v4455 = vunpack.c.l.s4 1966171168
  %v4456 = vunpack.c.0.s8 %v4455
  %v4457 = vlaneseq
  %v4458 = vshrl.u32 %v4457, 7
  %v4459 = vsub.s32 %v4456, %v4458
  %v4460 = vrot.slane %v4432, %v4459
  %v4461 = vcombine.low %v4439, %v4453
  %v4462 = vcombine.high %v4439, %v4453
  %v4463 = vcombine.low %v4446, %v4460
  %v4464 = vcombine.low %v4428, %v4364
  %v4465 = vcombine.high %v4428, %v4364
  %v4467 = vunpack.c.l.s4 1966171168
  %v4468 = vunpack.c.0.s8 %v4467
  %v4469 = vlaneseq
  %v4470 = vshrl.u32 %v4469, 7
  %v4471 = vsub.s32 %v4468, %v4470
  %v4472 = vrot.slane %v4464, %v4471
  %v4474 = vunpack.c.l.s4 1966171168
  %v4475 = vunpack.c.0.s8 %v4474
  %v4476 = vlaneseq
  %v4477 = vshrl.u32 %v4476, 7
  %v4478 = vsub.s32 %v4475, %v4477
  %v4479 = vrot.slane %v4465, %v4478
  %v4480 = vcombine.low %v4410, %v4472
  %v4481 = vcombine.high %v4410, %v4472
  %v4482 = vcombine.low %v4417, %v4479
  %v4483 = vcombine.low %v4321, %v4326
  %v4484 = vcombine.low %v4322, %v4327
  %v4485 = vcombine.low %v4329, %v4331
  %v4487 = vunpack.c.l.s4 1966171168
  %v4488 = vunpack.c.0.s8 %v4487
  %v4489 = vlaneseq
  %v4490 = vshrl.u32 %v4489, 7
  %v4491 = vsub.s32 %v4488, %v4490
  %v4492 = vrot.slane %v4483, %v4491
  %v4494 = vunpack.c.l.s4 1966171168
  %v4495 = vunpack.c.0.s8 %v4494
  %v4496 = vlaneseq
  %v4497 = vshrl.u32 %v4496, 7
  %v4498 = vsub.s32 %v4495, %v4497
  %v4499 = vrot.slane %v4484, %v4498
  %v4501 = vunpack.c.l.s4 1966171168
  %v4502 = vunpack.c.0.s8 %v4501
  %v4503 = vlaneseq
  %v4504 = vshrl.u32 %v4503, 7
  %v4505 = vsub.s32 %v4502, %v4504
  %v4506 = vrot.slane %v4485, %v4505
  %v4507 = vcombine.low %v4364, %v4492
  %v4508 = vcombine.high %v4364, %v4492
  %v4509 = vcombine.low %v4499, %v4506
  %v4510 = vcombine.high %v4499, %v4506
  %v4512 = vunpack.c.l.s4 1966171168
  %v4513 = vunpack.c.0.s8 %v4512
  %v4514 = vlaneseq
  %v4515 = vshrl.u32 %v4514, 7
  %v4516 = vsub.s32 %v4513, %v4515
  %v4517 = vrot.slane %v4507, %v4516
  %v4519 = vunpack.c.l.s4 1966171168
  %v4520 = vunpack.c.0.s8 %v4519
  %v4521 = vlaneseq
  %v4522 = vshrl.u32 %v4521, 7
  %v4523 = vsub.s32 %v4520, %v4522
  %v4524 = vrot.slane %v4508, %v4523
  %v4526 = vunpack.c.l.s4 1966171168
  %v4527 = vunpack.c.0.s8 %v4526
  %v4528 = vlaneseq
  %v4529 = vshrl.u32 %v4528, 7
  %v4530 = vsub.s32 %v4527, %v4529
  %v4531 = vrot.slane %v4509, %v4530
  %v4533 = vunpack.c.l.s4 1966171168
  %v4534 = vunpack.c.0.s8 %v4533
  %v4535 = vlaneseq
  %v4536 = vshrl.u32 %v4535, 7
  %v4537 = vsub.s32 %v4534, %v4536
  %v4538 = vrot.slane %v4510, %v4537
  %v4539 = vcombine.low %v4517, %v4531
  %v4540 = vcombine.high %v4517, %v4531
  %v4541 = vcombine.low %v4524, %v4538
  %v4542 = vcombine.low %v4333, %v4335
  %v4544 = vunpack.c.l.s4 1966171168
  %v4545 = vunpack.c.0.s8 %v4544
  %v4546 = vlaneseq
  %v4547 = vshrl.u32 %v4546, 7
  %v4548 = vsub.s32 %v4545, %v4547
  %v4549 = vrot.slane %v4542, %v4548
  %v4550 = vcombine.low %v4492, %v4499
  %v4551 = vcombine.high %v4492, %v4499
  %v4552 = vcombine.low %v4506, %v4549
  %v4553 = vcombine.high %v4506, %v4549
  %v4555 = vunpack.c.l.s4 1966171168
  %v4556 = vunpack.c.0.s8 %v4555
  %v4557 = vlaneseq
  %v4558 = vshrl.u32 %v4557, 7
  %v4559 = vsub.s32 %v4556, %v4558
  %v4560 = vrot.slane %v4550, %v4559
  %v4562 = vunpack.c.l.s4 1966171168
  %v4563 = vunpack.c.0.s8 %v4562
  %v4564 = vlaneseq
  %v4565 = vshrl.u32 %v4564, 7
  %v4566 = vsub.s32 %v4563, %v4565
  %v4567 = vrot.slane %v4551, %v4566
  %v4569 = vunpack.c.l.s4 1966171168
  %v4570 = vunpack.c.0.s8 %v4569
  %v4571 = vlaneseq
  %v4572 = vshrl.u32 %v4571, 7
  %v4573 = vsub.s32 %v4570, %v4572
  %v4574 = vrot.slane %v4552, %v4573
  %v4576 = vunpack.c.l.s4 1966171168
  %v4577 = vunpack.c.0.s8 %v4576
  %v4578 = vlaneseq
  %v4579 = vshrl.u32 %v4578, 7
  %v4580 = vsub.s32 %v4577, %v4579
  %v4581 = vrot.slane %v4553, %v4580
  %v4582 = vcombine.low %v4560, %v4574
  %v4583 = vcombine.high %v4560, %v4574
  %v4584 = vcombine.low %v4567, %v4581
  %v4585 = vcombine.low %v4549, %v4364
  %v4586 = vcombine.high %v4549, %v4364
  %v4588 = vunpack.c.l.s4 1966171168
  %v4589 = vunpack.c.0.s8 %v4588
  %v4590 = vlaneseq
  %v4591 = vshrl.u32 %v4590, 7
  %v4592 = vsub.s32 %v4589, %v4591
  %v4593 = vrot.slane %v4585, %v4592
  %v4595 = vunpack.c.l.s4 1966171168
  %v4596 = vunpack.c.0.s8 %v4595
  %v4597 = vlaneseq
  %v4598 = vshrl.u32 %v4597, 7
  %v4599 = vsub.s32 %v4596, %v4598
  %v4600 = vrot.slane %v4586, %v4599
  %v4601 = vcombine.low %v4531, %v4593
  %v4602 = vcombine.high %v4531, %v4593
  %v4603 = vcombine.low %v4538, %v4600
  %v4604 = vcombine.low %v4418, %v4420
  %v4605 = vcombine.high %v4418, %v4420
  %v4606 = vcombine.low %v4419, %v4461
  %v4607 = vcombine.high %v4419, %v4461
  %v4608 = vcombine.low %v4463, %v4462
  %v4609 = vcombine.high %v4463, %v4462
  %v4610 = vcombine.low %v4480, %v4482
  %v4611 = vcombine.high %v4480, %v4482
  %v4613 = vunpack.c.l.s4 1966171168
  %v4614 = vunpack.c.0.s8 %v4613
  %v4615 = vlaneseq
  %v4616 = vshrl.u32 %v4615, 7
  %v4617 = vsub.s32 %v4614, %v4616
  %v4618 = vrot.slane %v4604, %v4617
  %v4620 = vunpack.c.l.s4 1966171168
  %v4621 = vunpack.c.0.s8 %v4620
  %v4622 = vlaneseq
  %v4623 = vshrl.u32 %v4622, 7
  %v4624 = vsub.s32 %v4621, %v4623
  %v4625 = vrot.slane %v4605, %v4624
  %v4627 = vunpack.c.l.s4 1966171168
  %v4628 = vunpack.c.0.s8 %v4627
  %v4629 = vlaneseq
  %v4630 = vshrl.u32 %v4629, 7
  %v4631 = vsub.s32 %v4628, %v4630
  %v4632 = vrot.slane %v4606, %v4631
  %v4634 = vunpack.c.l.s4 1966171168
  %v4635 = vunpack.c.0.s8 %v4634
  %v4636 = vlaneseq
  %v4637 = vshrl.u32 %v4636, 7
  %v4638 = vsub.s32 %v4635, %v4637
  %v4639 = vrot.slane %v4607, %v4638
  %v4641 = vunpack.c.l.s4 1966171168
  %v4642 = vunpack.c.0.s8 %v4641
  %v4643 = vlaneseq
  %v4644 = vshrl.u32 %v4643, 7
  %v4645 = vsub.s32 %v4642, %v4644
  %v4646 = vrot.slane %v4608, %v4645
  %v4648 = vunpack.c.l.s4 1966171168
  %v4649 = vunpack.c.0.s8 %v4648
  %v4650 = vlaneseq
  %v4651 = vshrl.u32 %v4650, 7
  %v4652 = vsub.s32 %v4649, %v4651
  %v4653 = vrot.slane %v4609, %v4652
  %v4655 = vunpack.c.l.s4 1966171168
  %v4656 = vunpack.c.0.s8 %v4655
  %v4657 = vlaneseq
  %v4658 = vshrl.u32 %v4657, 7
  %v4659 = vsub.s32 %v4656, %v4658
  %v4660 = vrot.slane %v4610, %v4659
  %v4662 = vunpack.c.l.s4 1966171168
  %v4663 = vunpack.c.0.s8 %v4662
  %v4664 = vlaneseq
  %v4665 = vshrl.u32 %v4664, 7
  %v4666 = vsub.s32 %v4663, %v4665
  %v4667 = vrot.slane %v4611, %v4666
  %v4668 = vcombine.low %v4618, %v4632
  %v4669 = vcombine.high %v4618, %v4632
  %v4670 = vcombine.low %v4625, %v4639
  %v4671 = vcombine.high %v4625, %v4639
  %v4672 = vcombine.low %v4646, %v4660
  %v4673 = vcombine.high %v4646, %v4660
  %v4674 = vcombine.low %v4653, %v4667
  %v4675 = vcombine.high %v4653, %v4667
  %v4677 = vunpack.c.l.s4 1966171168
  %v4678 = vunpack.c.0.s8 %v4677
  %v4679 = vlaneseq
  %v4680 = vshrl.u32 %v4679, 7
  %v4681 = vsub.s32 %v4678, %v4680
  %v4682 = vrot.slane %v4668, %v4681
  %v4684 = vunpack.c.l.s4 1966171168
  %v4685 = vunpack.c.0.s8 %v4684
  %v4686 = vlaneseq
  %v4687 = vshrl.u32 %v4686, 7
  %v4688 = vsub.s32 %v4685, %v4687
  %v4689 = vrot.slane %v4670, %v4688
  %v4691 = vunpack.c.l.s4 1966171168
  %v4692 = vunpack.c.0.s8 %v4691
  %v4693 = vlaneseq
  %v4694 = vshrl.u32 %v4693, 7
  %v4695 = vsub.s32 %v4692, %v4694
  %v4696 = vrot.slane %v4669, %v4695
  %v4698 = vunpack.c.l.s4 1966171168
  %v4699 = vunpack.c.0.s8 %v4698
  %v4700 = vlaneseq
  %v4701 = vshrl.u32 %v4700, 7
  %v4702 = vsub.s32 %v4699, %v4701
  %v4703 = vrot.slane %v4671, %v4702
  %v4705 = vunpack.c.l.s4 1966171168
  %v4706 = vunpack.c.0.s8 %v4705
  %v4707 = vlaneseq
  %v4708 = vshrl.u32 %v4707, 7
  %v4709 = vsub.s32 %v4706, %v4708
  %v4710 = vrot.slane %v4672, %v4709
  %v4712 = vunpack.c.l.s4 1966171168
  %v4713 = vunpack.c.0.s8 %v4712
  %v4714 = vlaneseq
  %v4715 = vshrl.u32 %v4714, 7
  %v4716 = vsub.s32 %v4713, %v4715
  %v4717 = vrot.slane %v4674, %v4716
  %v4719 = vunpack.c.l.s4 1966171168
  %v4720 = vunpack.c.0.s8 %v4719
  %v4721 = vlaneseq
  %v4722 = vshrl.u32 %v4721, 7
  %v4723 = vsub.s32 %v4720, %v4722
  %v4724 = vrot.slane %v4673, %v4723
  %v4726 = vunpack.c.l.s4 1966171168
  %v4727 = vunpack.c.0.s8 %v4726
  %v4728 = vlaneseq
  %v4729 = vshrl.u32 %v4728, 7
  %v4730 = vsub.s32 %v4727, %v4729
  %v4731 = vrot.slane %v4675, %v4730
  %v4732 = vcombine.low %v4682, %v4710
  %v4733 = vcombine.high %v4682, %v4710
  %v4734 = vcombine.low %v4689, %v4717
  %v4735 = vcombine.high %v4689, %v4717
  %v4736 = vcombine.low %v4696, %v4724
  %v4737 = vcombine.high %v4696, %v4724
  %v4738 = vcombine.low %v4703, %v4731
  %v4739 = vcombine.high %v4703, %v4731
  %v4740 = vcombine.low %v4481, %v4539
  %v4741 = vcombine.high %v4481, %v4539
  %v4742 = vcombine.low %v4541, %v4540
  %v4743 = vcombine.high %v4541, %v4540
  %v4744 = vcombine.low %v4582, %v4584
  %v4745 = vcombine.high %v4582, %v4584
  %v4746 = vcombine.low %v4583, %v4601
  %v4747 = vcombine.high %v4583, %v4601
  %v4749 = vunpack.c.l.s4 1966171168
  %v4750 = vunpack.c.0.s8 %v4749
  %v4751 = vlaneseq
  %v4752 = vshrl.u32 %v4751, 7
  %v4753 = vsub.s32 %v4750, %v4752
  %v4754 = vrot.slane %v4740, %v4753
  %v4756 = vunpack.c.l.s4 1966171168
  %v4757 = vunpack.c.0.s8 %v4756
  %v4758 = vlaneseq
  %v4759 = vshrl.u32 %v4758, 7
  %v4760 = vsub.s32 %v4757, %v4759
  %v4761 = vrot.slane %v4741, %v4760
  %v4763 = vunpack.c.l.s4 1966171168
  %v4764 = vunpack.c.0.s8 %v4763
  %v4765 = vlaneseq
  %v4766 = vshrl.u32 %v4765, 7
  %v4767 = vsub.s32 %v4764, %v4766
  %v4768 = vrot.slane %v4742, %v4767
  %v4770 = vunpack.c.l.s4 1966171168
  %v4771 = vunpack.c.0.s8 %v4770
  %v4772 = vlaneseq
  %v4773 = vshrl.u32 %v4772, 7
  %v4774 = vsub.s32 %v4771, %v4773
  %v4775 = vrot.slane %v4743, %v4774
  %v4777 = vunpack.c.l.s4 1966171168
  %v4778 = vunpack.c.0.s8 %v4777
  %v4779 = vlaneseq
  %v4780 = vshrl.u32 %v4779, 7
  %v4781 = vsub.s32 %v4778, %v4780
  %v4782 = vrot.slane %v4744, %v4781
  %v4784 = vunpack.c.l.s4 1966171168
  %v4785 = vunpack.c.0.s8 %v4784
  %v4786 = vlaneseq
  %v4787 = vshrl.u32 %v4786, 7
  %v4788 = vsub.s32 %v4785, %v4787
  %v4789 = vrot.slane %v4745, %v4788
  %v4791 = vunpack.c.l.s4 1966171168
  %v4792 = vunpack.c.0.s8 %v4791
  %v4793 = vlaneseq
  %v4794 = vshrl.u32 %v4793, 7
  %v4795 = vsub.s32 %v4792, %v4794
  %v4796 = vrot.slane %v4746, %v4795
  %v4798 = vunpack.c.l.s4 1966171168
  %v4799 = vunpack.c.0.s8 %v4798
  %v4800 = vlaneseq
  %v4801 = vshrl.u32 %v4800, 7
  %v4802 = vsub.s32 %v4799, %v4801
  %v4803 = vrot.slane %v4747, %v4802
  %v4804 = vcombine.low %v4754, %v4768
  %v4805 = vcombine.high %v4754, %v4768
  %v4806 = vcombine.low %v4761, %v4775
  %v4807 = vcombine.high %v4761, %v4775
  %v4808 = vcombine.low %v4782, %v4796
  %v4809 = vcombine.high %v4782, %v4796
  %v4810 = vcombine.low %v4789, %v4803
  %v4811 = vcombine.high %v4789, %v4803
  %v4813 = vunpack.c.l.s4 1966171168
  %v4814 = vunpack.c.0.s8 %v4813
  %v4815 = vlaneseq
  %v4816 = vshrl.u32 %v4815, 7
  %v4817 = vsub.s32 %v4814, %v4816
  %v4818 = vrot.slane %v4804, %v4817
  %v4820 = vunpack.c.l.s4 1966171168
  %v4821 = vunpack.c.0.s8 %v4820
  %v4822 = vlaneseq
  %v4823 = vshrl.u32 %v4822, 7
  %v4824 = vsub.s32 %v4821, %v4823
  %v4825 = vrot.slane %v4806, %v4824
  %v4827 = vunpack.c.l.s4 1966171168
  %v4828 = vunpack.c.0.s8 %v4827
  %v4829 = vlaneseq
  %v4830 = vshrl.u32 %v4829, 7
  %v4831 = vsub.s32 %v4828, %v4830
  %v4832 = vrot.slane %v4805, %v4831
  %v4834 = vunpack.c.l.s4 1966171168
  %v4835 = vunpack.c.0.s8 %v4834
  %v4836 = vlaneseq
  %v4837 = vshrl.u32 %v4836, 7
  %v4838 = vsub.s32 %v4835, %v4837
  %v4839 = vrot.slane %v4807, %v4838
  %v4841 = vunpack.c.l.s4 1966171168
  %v4842 = vunpack.c.0.s8 %v4841
  %v4843 = vlaneseq
  %v4844 = vshrl.u32 %v4843, 7
  %v4845 = vsub.s32 %v4842, %v4844
  %v4846 = vrot.slane %v4808, %v4845
  %v4848 = vunpack.c.l.s4 1966171168
  %v4849 = vunpack.c.0.s8 %v4848
  %v4850 = vlaneseq
  %v4851 = vshrl.u32 %v4850, 7
  %v4852 = vsub.s32 %v4849, %v4851
  %v4853 = vrot.slane %v4810, %v4852
  %v4855 = vunpack.c.l.s4 1966171168
  %v4856 = vunpack.c.0.s8 %v4855
  %v4857 = vlaneseq
  %v4858 = vshrl.u32 %v4857, 7
  %v4859 = vsub.s32 %v4856, %v4858
  %v4860 = vrot.slane %v4809, %v4859
  %v4862 = vunpack.c.l.s4 1966171168
  %v4863 = vunpack.c.0.s8 %v4862
  %v4864 = vlaneseq
  %v4865 = vshrl.u32 %v4864, 7
  %v4866 = vsub.s32 %v4863, %v4865
  %v4867 = vrot.slane %v4811, %v4866
  %v4868 = vcombine.low %v4818, %v4846
  %v4869 = vcombine.high %v4818, %v4846
  %v4870 = vcombine.low %v4825, %v4853
  %v4871 = vcombine.high %v4825, %v4853
  %v4872 = vcombine.low %v4832, %v4860
  %v4873 = vcombine.high %v4832, %v4860
  %v4874 = vcombine.low %v4839, %v4867
  %v4875 = vcombine.high %v4839, %v4867
  %v4876 = vcombine.low %v4603, %v4602
  %v4877 = vcombine.high %v4603, %v4602
  %v4879 = vunpack.c.l.s4 1966171168
  %v4880 = vunpack.c.0.s8 %v4879
  %v4881 = vlaneseq
  %v4882 = vshrl.u32 %v4881, 7
  %v4883 = vsub.s32 %v4880, %v4882
  %v4884 = vrot.slane %v4876, %v4883
  %v4886 = vunpack.c.l.s4 1966171168
  %v4887 = vunpack.c.0.s8 %v4886
  %v4888 = vlaneseq
  %v4889 = vshrl.u32 %v4888, 7
  %v4890 = vsub.s32 %v4887, %v4889
  %v4891 = vrot.slane %v4877, %v4890
  %v4892 = vcombine.high %v4884, %v4884
  %v4893 = vcombine.high %v4891, %v4891
  %v4895 = vunpack.c.l.s4 1966171168
  %v4896 = vunpack.c.0.s8 %v4895
  %v4897 = vlaneseq
  %v4898 = vshrl.u32 %v4897, 7
  %v4899 = vsub.s32 %v4896, %v4898
  %v4900 = vrot.slane %v4884, %v4899
  %v4902 = vunpack.c.l.s4 1966171168
  %v4903 = vunpack.c.0.s8 %v4902
  %v4904 = vlaneseq
  %v4905 = vshrl.u32 %v4904, 7
  %v4906 = vsub.s32 %v4903, %v4905
  %v4907 = vrot.slane %v4891, %v4906
  %v4909 = vunpack.c.l.s4 1966171168
  %v4910 = vunpack.c.0.s8 %v4909
  %v4911 = vlaneseq
  %v4912 = vshrl.u32 %v4911, 7
  %v4913 = vsub.s32 %v4910, %v4912
  %v4914 = vrot.slane %v4892, %v4913
  %v4916 = vunpack.c.l.s4 1966171168
  %v4917 = vunpack.c.0.s8 %v4916
  %v4918 = vlaneseq
  %v4919 = vshrl.u32 %v4918, 7
  %v4920 = vsub.s32 %v4917, %v4919
  %v4921 = vrot.slane %v4893, %v4920
  %v4922 = vcombine.high %v4900, %v4900
  %v4923 = vcombine.high %v4907, %v4907
  %v4924 = vcombine.high %v4914, %v4914
  %v4925 = vcombine.high %v4921, %v4921
  %v4950 = vpack.c.bf16 %v4868, %v4732
  %v4951 = vpack.c.bf16 %v4872, %v4736
  %v4952 = vpack.c.bf16 %v4869, %v4733
  %v4953 = vpack.c.bf16 %v4873, %v4737
  %v4954 = vpack.c.bf16 %v4870, %v4734
  %v4955 = vpack.c.bf16 %v4874, %v4738
  %v4956 = vpack.c.bf16 %v4871, %v4735
  %v4957 = vpack.c.bf16 %v4875, %v4739
  %v4958 = vpack.c.bf16 %v4900, %v4900
  %v4959 = vpack.c.bf16 %v4914, %v4914
  %v4960 = vpack.c.bf16 %v4922, %v4922
  %v4961 = vpack.c.bf16 %v4924, %v4924
  %v4962 = vpack.c.bf16 %v4907, %v4907
  %v4963 = vpack.c.bf16 %v4921, %v4921
  %v4964 = vpack.c.bf16 %v4923, %v4923
  %v4965 = vpack.c.bf16 %v4925, %v4925
  %v4966 = vld [vmem:[%s11] sm:$0xf]
  %v4967 = vld [vmem:[%s11 + $0x4] sm:$0xf]
  %v4968 = vld [vmem:[%s11 + $0x8] sm:$0xf]
  %v4969 = vld [vmem:[%s11 + $0xc] sm:$0xf]
  %v4970 = vld [vmem:[%s11 + $0x10] sm:$0xf]
  %v4971 = vld [vmem:[%s11 + $0x14] sm:$0xf]
  %v4972 = vld [vmem:[%s11 + $0x18] sm:$0xf]
  %v4973 = vld [vmem:[%s11 + $0x1c] sm:$0xf]
  %v4974 = vld [vmem:[%s11 + $0x20] sm:$0xf]
  %v4975 = vld [vmem:[%s11 + $0x24] sm:$0xf]
  %v4976 = vld [vmem:[%s11 + $0x28] sm:$0xf]
  %v4977 = vld [vmem:[%s11 + $0x2c] sm:$0xf]
  %v4978 = vld [vmem:[%s11 + $0x30] sm:$0xf]
  %v4979 = vld [vmem:[%s11 + $0x34] sm:$0xf]
  %v4980 = vld [vmem:[%s11 + $0x38] sm:$0xf]
  %v4981 = vld [vmem:[%s11 + $0x3c] sm:$0xf]
  %v4982 = vld [vmem:[%s11 + $0x40] sm:$0xf]
  %v4983 = vld [vmem:[%s11 + $0x44] sm:$0xf]
  %v4984 = vld [vmem:[%s11 + $0x48] sm:$0xf]
  %v4985 = vld [vmem:[%s11 + $0x4c] sm:$0xf]
  %v4986 = vld [vmem:[%s11 + $0x50] sm:$0xf]
  %v4987 = vld [vmem:[%s11 + $0x54] sm:$0xf]
  %v4988 = vld [vmem:[%s11 + $0x58] sm:$0xf]
  %v4989 = vld [vmem:[%s11 + $0x5c] sm:$0xf]
  %v4990 = vld [vmem:[%s11 + $0x60] sm:$0xf]
  %v4991 = vld [vmem:[%s11 + $0x64] sm:$0xf]
  %v4992 = vld [vmem:[%s11 + $0x68] sm:$0xf]
  %v4993 = vld [vmem:[%s11 + $0x6c] sm:$0xf]
  %v4994 = vld [vmem:[%s11 + $0x70] sm:$0xf]
  %v4995 = vld [vmem:[%s11 + $0x74] sm:$0xf]
  %v4996 = vld [vmem:[%s11 + $0x78] sm:$0xf]
  %v4997 = vld [vmem:[%s11 + $0x7c] sm:$0xf]
  %v4998 = vld [vmem:[%s11 + $0x80] sm:$0xf]
  %v4999 = vld [vmem:[%s11 + $0x84] sm:$0xf]
  %v5000 = vld [vmem:[%s11 + $0x88] sm:$0xf]
  %v5001 = vld [vmem:[%s11 + $0x8c] sm:$0xf]
  %v5002 = vld [vmem:[%s11 + $0x90] sm:$0xf]
  %v5003 = vld [vmem:[%s11 + $0x94] sm:$0xf]
  %v5004 = vld [vmem:[%s11 + $0x98] sm:$0xf]
  %v5005 = vld [vmem:[%s11 + $0x9c] sm:$0xf]
  %v5006 = vld [vmem:[%s11 + $0xa0] sm:$0xf]
  %v5007 = vld [vmem:[%s11 + $0xa4] sm:$0xf]
  %v5008 = vld [vmem:[%s11 + $0xa8] sm:$0xf]
  %v5009 = vld [vmem:[%s11 + $0xac] sm:$0xf]
  %v5010 = vld [vmem:[%s11 + $0xb0] sm:$0xf]
  %v5011 = vld [vmem:[%s11 + $0xb4] sm:$0xf]
  %v5012 = vld [vmem:[%s11 + $0xb8] sm:$0xf]
  %v5013 = vld [vmem:[%s11 + $0xbc] sm:$0xf]
  %v5014 = vld [vmem:[%s11 + $0xc0] sm:$0xf]
  %v5015 = vld [vmem:[%s11 + $0xc4] sm:$0xf]
  %v5016 = vld [vmem:[%s11 + $0xc8] sm:$0xf]
  %v5017 = vld [vmem:[%s11 + $0xcc] sm:$0xf]
  %v5018 = vld [vmem:[%s11 + $0xd0] sm:$0xf]
  %v5019 = vld [vmem:[%s11 + $0xd4] sm:$0xf]
  %v5020 = vld [vmem:[%s11 + $0xd8] sm:$0xf]
  %v5021 = vld [vmem:[%s11 + $0xdc] sm:$0xf]
  %v5022 = vld [vmem:[%s11 + $0xe0] sm:$0xf]
  %v5023 = vld [vmem:[%s11 + $0xe4] sm:$0xf]
  %v5024 = vld [vmem:[%s11 + $0xe8] sm:$0xf]
  %v5025 = vld [vmem:[%s11 + $0xec] sm:$0xf]
  %v5026 = vld [vmem:[%s11 + $0xf0] sm:$0xf]
  %v5027 = vld [vmem:[%s11 + $0xf4] sm:$0xf]
  %v5028 = vld [vmem:[%s11 + $0xf8] sm:$0xf]
  %v5029 = vld [vmem:[%s11 + $0xfc] sm:$0xf]
  %v5030 = vld [vmem:[%s11 + $0x100] sm:$0xf]
  %v5031 = vld [vmem:[%s11 + $0x104] sm:$0xf]
  %v5032 = vld [vmem:[%s11 + $0x108] sm:$0xf]
  %v5033 = vld [vmem:[%s11 + $0x10c] sm:$0xf]
  %v5034 = vld [vmem:[%s11 + $0x110] sm:$0xf]
  %v5035 = vld [vmem:[%s11 + $0x114] sm:$0xf]
  %v5036 = vld [vmem:[%s11 + $0x118] sm:$0xf]
  %v5037 = vld [vmem:[%s11 + $0x11c] sm:$0xf]
  %v5038 = vld [vmem:[%s11 + $0x120] sm:$0xf]
  %v5039 = vld [vmem:[%s11 + $0x124] sm:$0xf]
  %v5040 = vld [vmem:[%s11 + $0x128] sm:$0xf]
  %v5041 = vld [vmem:[%s11 + $0x12c] sm:$0xf]
  %v5042 = vld [vmem:[%s11 + $0x130] sm:$0xf]
  %v5043 = vld [vmem:[%s11 + $0x134] sm:$0xf]
  %v5044 = vld [vmem:[%s11 + $0x138] sm:$0xf]
  %v5045 = vld [vmem:[%s11 + $0x13c] sm:$0xf]
  %v5046 = vld [vmem:[%s11 + $0x140] sm:$0xf]
  %v5047 = vld [vmem:[%s11 + $0x144] sm:$0xf]
  %v5048 = vld [vmem:[%s11 + $0x148] sm:$0xf]
  %v5049 = vld [vmem:[%s11 + $0x14c] sm:$0xf]
  %v5050 = vld [vmem:[%s11 + $0x150] sm:$0xf]
  %v5051 = vld [vmem:[%s11 + $0x154] sm:$0xf]
  %v5052 = vld [vmem:[%s11 + $0x158] sm:$0xf]
  %v5053 = vld [vmem:[%s11 + $0x15c] sm:$0xf]
  %v5054 = vld [vmem:[%s11 + $0x160] sm:$0xf]
  %v5055 = vld [vmem:[%s11 + $0x164] sm:$0xf]
  %v5056 = vld [vmem:[%s11 + $0x168] sm:$0xf]
  %v5057 = vld [vmem:[%s11 + $0x16c] sm:$0xf]
  %v5058 = vld [vmem:[%s11 + $0x170] sm:$0xf]
  %v5059 = vld [vmem:[%s11 + $0x174] sm:$0xf]
  %v5060 = vld [vmem:[%s11 + $0x178] sm:$0xf]
  %v5061 = vld [vmem:[%s11 + $0x17c] sm:$0xf]
  %v5062 = vld [vmem:[%s11 + $0x180] sm:$0xf]
  %v5063 = vld [vmem:[%s11 + $0x184] sm:$0xf]
  %v5064 = vld [vmem:[%s11 + $0x188] sm:$0xf]
  %v5065 = vld [vmem:[%s11 + $0x18c] sm:$0xf]
  %v5066 = vld [vmem:[%s11 + $0x190] sm:$0xf]
  %v5067 = vld [vmem:[%s11 + $0x194] sm:$0xf]
  %v5068 = vld [vmem:[%s11 + $0x198] sm:$0xf]
  %v5069 = vld [vmem:[%s11 + $0x19c] sm:$0xf]
  %v5070 = vld [vmem:[%s11 + $0x1a0] sm:$0xf]
  %v5071 = vld [vmem:[%s11 + $0x1a4] sm:$0xf]
  %v5072 = vld [vmem:[%s11 + $0x1a8] sm:$0xf]
  %v5073 = vld [vmem:[%s11 + $0x1ac] sm:$0xf]
  %v5074 = vld [vmem:[%s11 + $0x1b0] sm:$0xf]
  %v5075 = vld [vmem:[%s11 + $0x1b4] sm:$0xf]
  %v5076 = vld [vmem:[%s11 + $0x1b8] sm:$0xf]
  %v5077 = vld [vmem:[%s11 + $0x1bc] sm:$0xf]
  %v5078 = vld [vmem:[%s11 + $0x1c0] sm:$0xf]
  %v5079 = vld [vmem:[%s11 + $0x1c4] sm:$0xf]
  %v5080 = vld [vmem:[%s11 + $0x1c8] sm:$0xf]
  %v5081 = vld [vmem:[%s11 + $0x1cc] sm:$0xf]
  %v5082 = vld [vmem:[%s11 + $0x1d0] sm:$0xf]
  %v5083 = vld [vmem:[%s11 + $0x1d4] sm:$0xf]
  %v5084 = vld [vmem:[%s11 + $0x1d8] sm:$0xf]
  %v5085 = vld [vmem:[%s11 + $0x1dc] sm:$0xf]
  %v5086 = vld [vmem:[%s11 + $0x1e0] sm:$0xf]
  %v5087 = vld [vmem:[%s11 + $0x1e4] sm:$0xf]
  %v5088 = vld [vmem:[%s11 + $0x1e8] sm:$0xf]
  %v5089 = vld [vmem:[%s11 + $0x1ec] sm:$0xf]
  %v5090 = vld [vmem:[%s11 + $0x1f0] sm:$0xf]
  %v5091 = vld [vmem:[%s11 + $0x1f4] sm:$0xf]
  %v5092 = vld [vmem:[%s11 + $0x1f8] sm:$0xf]
  %v5093 = vld [vmem:[%s11 + $0x1fc] sm:$0xf]
  %v5094 = vld [vmem:[%s12] sm:$0x1]
  %v5096 = vlaneseq
  %v5097 = vshrl.u32 %v5096, 7
  %v5098 = vsub.s32 0, %v5097
  %v5099 = vrot.slane %v5094, %v5098
  %v5229 = vunpack.c.l.b16 %v4966
  %v5230 = vunpack.c.l.b16 %v4967
  %v5231 = vunpack.c.l.b16 %v4968
  %v5232 = vunpack.c.l.b16 %v4969
  %v5233 = vunpack.c.l.b16 %v4970
  %v5234 = vunpack.c.l.b16 %v4971
  %v5235 = vunpack.c.l.b16 %v4972
  %v5236 = vunpack.c.l.b16 %v4973
  %v5237 = vunpack.c.l.b16 %v4974
  %v5238 = vunpack.c.l.b16 %v4975
  %v5239 = vunpack.c.l.b16 %v4976
  %v5240 = vunpack.c.l.b16 %v4977
  %v5241 = vunpack.c.l.b16 %v4978
  %v5242 = vunpack.c.l.b16 %v4979
  %v5243 = vunpack.c.l.b16 %v4980
  %v5244 = vunpack.c.l.b16 %v4981
  %v5245 = vunpack.c.l.b16 %v4982
  %v5246 = vunpack.c.l.b16 %v4983
  %v5247 = vunpack.c.l.b16 %v4984
  %v5248 = vunpack.c.l.b16 %v4985
  %v5249 = vunpack.c.l.b16 %v4986
  %v5250 = vunpack.c.l.b16 %v4987
  %v5251 = vunpack.c.l.b16 %v4988
  %v5252 = vunpack.c.l.b16 %v4989
  %v5253 = vunpack.c.l.b16 %v4990
  %v5254 = vunpack.c.l.b16 %v4991
  %v5255 = vunpack.c.l.b16 %v4992
  %v5256 = vunpack.c.l.b16 %v4993
  %v5257 = vunpack.c.l.b16 %v4994
  %v5258 = vunpack.c.l.b16 %v4995
  %v5259 = vunpack.c.l.b16 %v4996
  %v5260 = vunpack.c.l.b16 %v4997
  %v5261 = vunpack.c.l.b16 %v4998
  %v5262 = vunpack.c.l.b16 %v4999
  %v5263 = vunpack.c.l.b16 %v5000
  %v5264 = vunpack.c.l.b16 %v5001
  %v5265 = vunpack.c.l.b16 %v5002
  %v5266 = vunpack.c.l.b16 %v5003
  %v5267 = vunpack.c.l.b16 %v5004
  %v5268 = vunpack.c.l.b16 %v5005
  %v5269 = vunpack.c.l.b16 %v5006
  %v5270 = vunpack.c.l.b16 %v5007
  %v5271 = vunpack.c.l.b16 %v5008
  %v5272 = vunpack.c.l.b16 %v5009
  %v5273 = vunpack.c.l.b16 %v5010
  %v5274 = vunpack.c.l.b16 %v5011
  %v5275 = vunpack.c.l.b16 %v5012
  %v5276 = vunpack.c.l.b16 %v5013
  %v5277 = vunpack.c.l.b16 %v5014
  %v5278 = vunpack.c.l.b16 %v5015
  %v5279 = vunpack.c.l.b16 %v5016
  %v5280 = vunpack.c.l.b16 %v5017
  %v5281 = vunpack.c.l.b16 %v5018
  %v5282 = vunpack.c.l.b16 %v5019
  %v5283 = vunpack.c.l.b16 %v5020
  %v5284 = vunpack.c.l.b16 %v5021
  %v5285 = vunpack.c.l.b16 %v5022
  %v5286 = vunpack.c.l.b16 %v5023
  %v5287 = vunpack.c.l.b16 %v5024
  %v5288 = vunpack.c.l.b16 %v5025
  %v5289 = vunpack.c.l.b16 %v5026
  %v5290 = vunpack.c.l.b16 %v5027
  %v5291 = vunpack.c.l.b16 %v5028
  %v5292 = vunpack.c.l.b16 %v5029
  %v5293 = vunpack.c.l.b16 %v5030
  %v5294 = vunpack.c.l.b16 %v5031
  %v5295 = vunpack.c.l.b16 %v5032
  %v5296 = vunpack.c.l.b16 %v5033
  %v5297 = vunpack.c.l.b16 %v5034
  %v5298 = vunpack.c.l.b16 %v5035
  %v5299 = vunpack.c.l.b16 %v5036
  %v5300 = vunpack.c.l.b16 %v5037
  %v5301 = vunpack.c.l.b16 %v5038
  %v5302 = vunpack.c.l.b16 %v5039
  %v5303 = vunpack.c.l.b16 %v5040
  %v5304 = vunpack.c.l.b16 %v5041
  %v5305 = vunpack.c.l.b16 %v5042
  %v5306 = vunpack.c.l.b16 %v5043
  %v5307 = vunpack.c.l.b16 %v5044
  %v5308 = vunpack.c.l.b16 %v5045
  %v5309 = vunpack.c.l.b16 %v5046
  %v5310 = vunpack.c.l.b16 %v5047
  %v5311 = vunpack.c.l.b16 %v5048
  %v5312 = vunpack.c.l.b16 %v5049
  %v5313 = vunpack.c.l.b16 %v5050
  %v5314 = vunpack.c.l.b16 %v5051
  %v5315 = vunpack.c.l.b16 %v5052
  %v5316 = vunpack.c.l.b16 %v5053
  %v5317 = vunpack.c.l.b16 %v5054
  %v5318 = vunpack.c.l.b16 %v5055
  %v5319 = vunpack.c.l.b16 %v5056
  %v5320 = vunpack.c.l.b16 %v5057
  %v5321 = vunpack.c.l.b16 %v5058
  %v5322 = vunpack.c.l.b16 %v5059
  %v5323 = vunpack.c.l.b16 %v5060
  %v5324 = vunpack.c.l.b16 %v5061
  %v5325 = vunpack.c.l.b16 %v5062
  %v5326 = vunpack.c.l.b16 %v5063
  %v5327 = vunpack.c.l.b16 %v5064
  %v5328 = vunpack.c.l.b16 %v5065
  %v5329 = vunpack.c.l.b16 %v5066
  %v5330 = vunpack.c.l.b16 %v5067
  %v5331 = vunpack.c.l.b16 %v5068
  %v5332 = vunpack.c.l.b16 %v5069
  %v5333 = vunpack.c.l.b16 %v5070
  %v5334 = vunpack.c.l.b16 %v5071
  %v5335 = vunpack.c.l.b16 %v5072
  %v5336 = vunpack.c.l.b16 %v5073
  %v5337 = vunpack.c.l.b16 %v5074
  %v5338 = vunpack.c.l.b16 %v5075
  %v5339 = vunpack.c.l.b16 %v5076
  %v5340 = vunpack.c.l.b16 %v5077
  %v5341 = vunpack.c.l.b16 %v5078
  %v5342 = vunpack.c.l.b16 %v5079
  %v5343 = vunpack.c.l.b16 %v5080
  %v5344 = vunpack.c.l.b16 %v5081
  %v5345 = vunpack.c.l.b16 %v5082
  %v5346 = vunpack.c.l.b16 %v5083
  %v5347 = vunpack.c.l.b16 %v5084
  %v5348 = vunpack.c.l.b16 %v5085
  %v5349 = vunpack.c.l.b16 %v5086
  %v5350 = vunpack.c.l.b16 %v5087
  %v5351 = vunpack.c.l.b16 %v5088
  %v5352 = vunpack.c.l.b16 %v5089
  %v5353 = vunpack.c.l.b16 %v5090
  %v5354 = vunpack.c.l.b16 %v5091
  %v5355 = vunpack.c.l.b16 %v5092
  %v5356 = vunpack.c.l.b16 %v5093
  %v5357 = vpack.c.b16 %v5230, %v5229
  %v5358 = vpack.c.b16 %v5232, %v5231
  %v5359 = vpack.c.b16 %v5234, %v5233
  %v5360 = vpack.c.b16 %v5236, %v5235
  %v5361 = vpack.c.b16 %v5238, %v5237
  %v5362 = vpack.c.b16 %v5240, %v5239
  %v5363 = vpack.c.b16 %v5242, %v5241
  %v5364 = vpack.c.b16 %v5244, %v5243
  %v5365 = vpack.c.b16 %v5246, %v5245
  %v5366 = vpack.c.b16 %v5248, %v5247
  %v5367 = vpack.c.b16 %v5250, %v5249
  %v5368 = vpack.c.b16 %v5252, %v5251
  %v5369 = vpack.c.b16 %v5254, %v5253
  %v5370 = vpack.c.b16 %v5256, %v5255
  %v5371 = vpack.c.b16 %v5258, %v5257
  %v5372 = vpack.c.b16 %v5260, %v5259
  %v5373 = vpack.c.b16 %v5262, %v5261
  %v5374 = vpack.c.b16 %v5264, %v5263
  %v5375 = vpack.c.b16 %v5266, %v5265
  %v5376 = vpack.c.b16 %v5268, %v5267
  %v5377 = vpack.c.b16 %v5270, %v5269
  %v5378 = vpack.c.b16 %v5272, %v5271
  %v5379 = vpack.c.b16 %v5274, %v5273
  %v5380 = vpack.c.b16 %v5276, %v5275
  %v5381 = vpack.c.b16 %v5278, %v5277
  %v5382 = vpack.c.b16 %v5280, %v5279
  %v5383 = vpack.c.b16 %v5282, %v5281
  %v5384 = vpack.c.b16 %v5284, %v5283
  %v5385 = vpack.c.b16 %v5286, %v5285
  %v5386 = vpack.c.b16 %v5288, %v5287
  %v5387 = vpack.c.b16 %v5290, %v5289
  %v5388 = vpack.c.b16 %v5292, %v5291
  %v5389 = vpack.c.b16 %v5294, %v5293
  %v5390 = vpack.c.b16 %v5296, %v5295
  %v5391 = vpack.c.b16 %v5298, %v5297
  %v5392 = vpack.c.b16 %v5300, %v5299
  %v5393 = vpack.c.b16 %v5302, %v5301
  %v5394 = vpack.c.b16 %v5304, %v5303
  %v5395 = vpack.c.b16 %v5306, %v5305
  %v5396 = vpack.c.b16 %v5308, %v5307
  %v5397 = vpack.c.b16 %v5310, %v5309
  %v5398 = vpack.c.b16 %v5312, %v5311
  %v5399 = vpack.c.b16 %v5314, %v5313
  %v5400 = vpack.c.b16 %v5316, %v5315
  %v5401 = vpack.c.b16 %v5318, %v5317
  %v5402 = vpack.c.b16 %v5320, %v5319
  %v5403 = vpack.c.b16 %v5322, %v5321
  %v5404 = vpack.c.b16 %v5324, %v5323
  %v5405 = vpack.c.b16 %v5326, %v5325
  %v5406 = vpack.c.b16 %v5328, %v5327
  %v5407 = vpack.c.b16 %v5330, %v5329
  %v5408 = vpack.c.b16 %v5332, %v5331
  %v5409 = vpack.c.b16 %v5334, %v5333
  %v5410 = vpack.c.b16 %v5336, %v5335
  %v5411 = vpack.c.b16 %v5338, %v5337
  %v5412 = vpack.c.b16 %v5340, %v5339
  %v5413 = vpack.c.b16 %v5342, %v5341
  %v5414 = vpack.c.b16 %v5344, %v5343
  %v5415 = vpack.c.b16 %v5346, %v5345
  %v5416 = vpack.c.b16 %v5348, %v5347
  %v5417 = vpack.c.b16 %v5350, %v5349
  %v5418 = vpack.c.b16 %v5352, %v5351
  %v5419 = vpack.c.b16 %v5354, %v5353
  %v5420 = vpack.c.b16 %v5356, %v5355
  %5485 = vmatprep.subr.bf16.mxu0 0
  %5486 = vmatpush1.bf16.msra.mxu0 %v5364
  %5487 = vmatprep.subr.bf16.mxu0 0
  %5488 = vmatpush1.bf16.msra.mxu0 %v5363
  %5489 = vmatprep.subr.bf16.mxu0 0
  %5490 = vmatpush1.bf16.msra.mxu0 %v5362
  %5491 = vmatprep.subr.bf16.mxu0 0
  %5492 = vmatpush1.bf16.msra.mxu0 %v5361
  %5493 = vmatprep.subr.bf16.mxu0 0
  %5494 = vmatpush1.bf16.msra.mxu0 %v5360
  %5495 = vmatprep.subr.bf16.mxu0 0
  %5496 = vmatpush1.bf16.msra.mxu0 %v5359
  %5497 = vmatprep.subr.bf16.mxu0 0
  %5498 = vmatpush1.bf16.msra.mxu0 %v5358
  %5499 = vmatprep.subr.bf16.mxu0 0
  %5500 = vmatpush1.bf16.msra.mxu0 %v5357
  %5501 = vmatprep.subr.bf16.mxu0 0
  %5502 = vmatpush2.bf16.msra.mxu0 %v5372
  %5503 = vmatprep.subr.bf16.mxu0 0
  %5504 = vmatpush2.bf16.msra.mxu0 %v5371
  %5505 = vmatprep.subr.bf16.mxu0 0
  %5506 = vmatpush2.bf16.msra.mxu0 %v5370
  %5507 = vmatprep.subr.bf16.mxu0 0
  %5508 = vmatpush2.bf16.msra.mxu0 %v5369
  %5509 = vmatprep.subr.bf16.mxu0 0
  %5510 = vmatpush2.bf16.msra.mxu0 %v5368
  %5511 = vmatprep.subr.bf16.mxu0 0
  %5512 = vmatpush2.bf16.msra.mxu0 %v5367
  %5513 = vmatprep.subr.bf16.mxu0 0
  %5514 = vmatpush2.bf16.msra.mxu0 %v5366
  %5515 = vmatprep.subr.bf16.mxu0 0
  %5516 = vmatpush2.bf16.msra.mxu0 %v5365
  %5517 = vmatprep.mubr.bf16.mxu0 %v4951
  %5518 = vmatmul.mubr.bf16.gmra.mxu0 %v4950
  %v5519 = vpop.f32.mrf.mxu0
  %v5520 = vadd.f32 %v5099, %v5519
  %v5521 = vpop.f32.mrf.mxu0
  %v5522 = vpop.f32.mrf.mxu0
  %v5523 = vadd.f32 %v5099, %v5522
  %v5524 = vpop.f32.mrf.mxu0
  %5525 = vmatprep.mubr.bf16.mxu0 %v4959
  %5526 = vmatmul.mubr.bf16.gmra.mxu0 %v4958
  %v5527 = vpop.f32.mrf.mxu0
  %v5528 = vadd.f32 %v5099, %v5527
  %v5529 = vpop.f32.mrf.mxu0
  %v5530 = vpop.f32.mrf.mxu0
  %v5531 = vpop.f32.mrf.mxu0
  %5532 = vdwg.mxu0
  %5533 = vmatprep.subr.bf16.mxu0 0
  %5534 = vmatpush1.bf16.msra.mxu0 %v5380
  %5535 = vmatprep.subr.bf16.mxu0 0
  %5536 = vmatpush1.bf16.msra.mxu0 %v5379
  %5537 = vmatprep.subr.bf16.mxu0 0
  %5538 = vmatpush1.bf16.msra.mxu0 %v5378
  %5539 = vmatprep.subr.bf16.mxu0 0
  %5540 = vmatpush1.bf16.msra.mxu0 %v5377
  %5541 = vmatprep.subr.bf16.mxu0 0
  %5542 = vmatpush1.bf16.msra.mxu0 %v5376
  %5543 = vmatprep.subr.bf16.mxu0 0
  %5544 = vmatpush1.bf16.msra.mxu0 %v5375
  %5545 = vmatprep.subr.bf16.mxu0 0
  %5546 = vmatpush1.bf16.msra.mxu0 %v5374
  %5547 = vmatprep.subr.bf16.mxu0 0
  %5548 = vmatpush1.bf16.msra.mxu0 %v5373
  %5549 = vmatprep.subr.bf16.mxu0 0
  %5550 = vmatpush2.bf16.msra.mxu0 %v5388
  %5551 = vmatprep.subr.bf16.mxu0 0
  %5552 = vmatpush2.bf16.msra.mxu0 %v5387
  %5553 = vmatprep.subr.bf16.mxu0 0
  %5554 = vmatpush2.bf16.msra.mxu0 %v5386
  %5555 = vmatprep.subr.bf16.mxu0 0
  %5556 = vmatpush2.bf16.msra.mxu0 %v5385
  %5557 = vmatprep.subr.bf16.mxu0 0
  %5558 = vmatpush2.bf16.msra.mxu0 %v5384
  %5559 = vmatprep.subr.bf16.mxu0 0
  %5560 = vmatpush2.bf16.msra.mxu0 %v5383
  %5561 = vmatprep.subr.bf16.mxu0 0
  %5562 = vmatpush2.bf16.msra.mxu0 %v5382
  %5563 = vmatprep.subr.bf16.mxu0 0
  %5564 = vmatpush2.bf16.msra.mxu0 %v5381
  %5565 = vmatprep.mubr.bf16.mxu0 %v4953
  %5566 = vmatmul.mubr.bf16.gmra.mxu0 %v4952
  %v5567 = vpop.f32.mrf.mxu0
  %v5568 = vadd.f32 %v5520, %v5567
  %v5569 = vpop.f32.mrf.mxu0
  %v5570 = vpop.f32.mrf.mxu0
  %v5571 = vadd.f32 %v5523, %v5570
  %v5572 = vpop.f32.mrf.mxu0
  %5573 = vmatprep.mubr.bf16.mxu0 %v4961
  %5574 = vmatmul.mubr.bf16.gmra.mxu0 %v4960
  %v5575 = vpop.f32.mrf.mxu0
  %v5576 = vadd.f32 %v5528, %v5575
  %v5577 = vpop.f32.mrf.mxu0
  %v5578 = vpop.f32.mrf.mxu0
  %v5579 = vpop.f32.mrf.mxu0
  %5580 = vdwg.mxu0
  %5581 = vmatprep.subr.bf16.mxu0 0
  %5582 = vmatpush1.bf16.msra.mxu0 %v5396
  %5583 = vmatprep.subr.bf16.mxu0 0
  %5584 = vmatpush1.bf16.msra.mxu0 %v5395
  %5585 = vmatprep.subr.bf16.mxu0 0
  %5586 = vmatpush1.bf16.msra.mxu0 %v5394
  %5587 = vmatprep.subr.bf16.mxu0 0
  %5588 = vmatpush1.bf16.msra.mxu0 %v5393
  %5589 = vmatprep.subr.bf16.mxu0 0
  %5590 = vmatpush1.bf16.msra.mxu0 %v5392
  %5591 = vmatprep.subr.bf16.mxu0 0
  %5592 = vmatpush1.bf16.msra.mxu0 %v5391
  %5593 = vmatprep.subr.bf16.mxu0 0
  %5594 = vmatpush1.bf16.msra.mxu0 %v5390
  %5595 = vmatprep.subr.bf16.mxu0 0
  %5596 = vmatpush1.bf16.msra.mxu0 %v5389
  %5597 = vmatprep.subr.bf16.mxu0 0
  %5598 = vmatpush2.bf16.msra.mxu0 %v5404
  %5599 = vmatprep.subr.bf16.mxu0 0
  %5600 = vmatpush2.bf16.msra.mxu0 %v5403
  %5601 = vmatprep.subr.bf16.mxu0 0
  %5602 = vmatpush2.bf16.msra.mxu0 %v5402
  %5603 = vmatprep.subr.bf16.mxu0 0
  %5604 = vmatpush2.bf16.msra.mxu0 %v5401
  %5605 = vmatprep.subr.bf16.mxu0 0
  %5606 = vmatpush2.bf16.msra.mxu0 %v5400
  %5607 = vmatprep.subr.bf16.mxu0 0
  %5608 = vmatpush2.bf16.msra.mxu0 %v5399
  %5609 = vmatprep.subr.bf16.mxu0 0
  %5610 = vmatpush2.bf16.msra.mxu0 %v5398
  %5611 = vmatprep.subr.bf16.mxu0 0
  %5612 = vmatpush2.bf16.msra.mxu0 %v5397
  %5613 = vmatprep.mubr.bf16.mxu0 %v4955
  %5614 = vmatmul.mubr.bf16.gmra.mxu0 %v4954
  %v5615 = vpop.f32.mrf.mxu0
  %v5616 = vadd.f32 %v5568, %v5615
  %v5617 = vpop.f32.mrf.mxu0
  %v5618 = vpop.f32.mrf.mxu0
  %v5619 = vadd.f32 %v5571, %v5618
  %v5620 = vpop.f32.mrf.mxu0
  %5621 = vmatprep.mubr.bf16.mxu0 %v4963
  %5622 = vmatmul.mubr.bf16.gmra.mxu0 %v4962
  %v5623 = vpop.f32.mrf.mxu0
  %v5624 = vadd.f32 %v5576, %v5623
  %v5625 = vpop.f32.mrf.mxu0
  %v5626 = vpop.f32.mrf.mxu0
  %v5627 = vpop.f32.mrf.mxu0
  %5628 = vdwg.mxu0
  %5629 = vmatprep.subr.bf16.mxu0 0
  %5630 = vmatpush1.bf16.msra.mxu0 %v5412
  %5631 = vmatprep.subr.bf16.mxu0 0
  %5632 = vmatpush1.bf16.msra.mxu0 %v5411
  %5633 = vmatprep.subr.bf16.mxu0 0
  %5634 = vmatpush1.bf16.msra.mxu0 %v5410
  %5635 = vmatprep.subr.bf16.mxu0 0
  %5636 = vmatpush1.bf16.msra.mxu0 %v5409
  %5637 = vmatprep.subr.bf16.mxu0 0
  %5638 = vmatpush1.bf16.msra.mxu0 %v5408
  %5639 = vmatprep.subr.bf16.mxu0 0
  %5640 = vmatpush1.bf16.msra.mxu0 %v5407
  %5641 = vmatprep.subr.bf16.mxu0 0
  %5642 = vmatpush1.bf16.msra.mxu0 %v5406
  %5643 = vmatprep.subr.bf16.mxu0 0
  %5644 = vmatpush1.bf16.msra.mxu0 %v5405
  %5645 = vmatprep.subr.bf16.mxu0 0
  %5646 = vmatpush2.bf16.msra.mxu0 %v5420
  %5647 = vmatprep.subr.bf16.mxu0 0
  %5648 = vmatpush2.bf16.msra.mxu0 %v5419
  %5649 = vmatprep.subr.bf16.mxu0 0
  %5650 = vmatpush2.bf16.msra.mxu0 %v5418
  %5651 = vmatprep.subr.bf16.mxu0 0
  %5652 = vmatpush2.bf16.msra.mxu0 %v5417
  %5653 = vmatprep.subr.bf16.mxu0 0
  %5654 = vmatpush2.bf16.msra.mxu0 %v5416
  %5655 = vmatprep.subr.bf16.mxu0 0
  %5656 = vmatpush2.bf16.msra.mxu0 %v5415
  %5657 = vmatprep.subr.bf16.mxu0 0
  %5658 = vmatpush2.bf16.msra.mxu0 %v5414
  %5659 = vmatprep.subr.bf16.mxu0 0
  %5660 = vmatpush2.bf16.msra.mxu0 %v5413
  %5661 = vmatprep.mubr.bf16.mxu0 %v4957
  %5662 = vmatmul.mubr.bf16.gmra.mxu0 %v4956
  %v5663 = vpop.f32.mrf.mxu0
  %v5664 = vadd.f32 %v5616, %v5663
  %v5665 = vpop.f32.mrf.mxu0
  %v5666 = vpop.f32.mrf.mxu0
  %v5667 = vadd.f32 %v5619, %v5666
  %v5668 = vpop.f32.mrf.mxu0
  %5669 = vmatprep.mubr.bf16.mxu0 %v4965
  %5670 = vmatmul.mubr.bf16.gmra.mxu0 %v4964
  %v5671 = vpop.f32.mrf.mxu0
  %v5672 = vadd.f32 %v5624, %v5671
  %v5673 = vpop.f32.mrf.mxu0
  %v5674 = vpop.f32.mrf.mxu0
  %v5675 = vpop.f32.mrf.mxu0
  %5676 = vdwg.mxu0
  %v5677 = vadd.f32 %v5664, %v5667
  %vm5678 = vcmask 1041408
  %v5679 = vsel %vm5678, %v5672, 0.0
  %v5680 = vadd.f32 %v5677, %v5679
  %v5681 = vrot.slane %v5680, 4
  %v5682 = vadd.f32 %v5680, %v5681
  %v5683 = vrot.slane %v5682, 2
  %v5684 = vadd.f32 %v5682, %v5683
  %v5685 = vrot.slane %v5684, 1
  %v5686 = vadd.f32 %v5684, %v5685
  %v5687 = vrcp.pop 18.0
  %v5688 = vmul.f32 %v5686, %v5687
  %v5689 = vsub.f32 %v5664, %v5688
  %v5690 = vsub.f32 %v5667, %v5688
  %v5691 = vsub.f32 %v5672, %v5688
  %v5692 = vmul.f32 %v5689, %v5689
  %v5693 = vmul.f32 %v5690, %v5690
  %v5694 = vmul.f32 %v5691, %v5691
  %v5695 = vadd.f32 %v5692, %v5693
  %v5696 = vsel %vm5678, %v5694, 0.0
  %v5697 = vadd.f32 %v5695, %v5696
  %v5698 = vrot.slane %v5697, 4
  %v5699 = vadd.f32 %v5697, %v5698
  %v5700 = vrot.slane %v5699, 2
  %v5701 = vadd.f32 %v5699, %v5700
  %v5702 = vrot.slane %v5701, 1
  %v5703 = vadd.f32 %v5701, %v5702
  %v5704 = vmul.f32 %v5703, %v5687
  %v5705 = vld [vmem:[%s13] sm:$0x1]
  %v5706 = vadd.f32 %v5704, 1e-05
  %v5707 = vrsqrt.pop %v5706
  %v5708 = vmul.f32 %v5705, %v5707
  %v5710 = vlaneseq
  %v5711 = vshrl.u32 %v5710, 7
  %v5712 = vsub.s32 0, %v5711
  %v5713 = vrot.slane %v5708, %v5712
  %v5715 = vmul.f32 %v5664, %v5713
  %v5716 = vmul.f32 %v5667, %v5713
  %v5717 = vmul.f32 %v5672, %v5713
  %v5718 = vld [vmem:[%s14] sm:$0x1]
  %v5719 = vmul.f32 %v5688, %v5708
  %v5720 = vsub.f32 %v5718, %v5719
  %v5722 = vlaneseq
  %v5723 = vshrl.u32 %v5722, 7
  %v5724 = vsub.s32 0, %v5723
  %v5725 = vrot.slane %v5720, %v5724
  %v5727 = vadd.f32 %v5715, %v5725
  %v5728 = vadd.f32 %v5716, %v5725
  %v5729 = vadd.f32 %v5717, %v5725
  %v5730 = vmul.f32 %v5727, 0.2
  %v5731 = vmul.f32 %v5728, 0.2
  %v5732 = vmul.f32 %v5729, 0.2
  %v5733 = vmax.f32 %v5727, %v5730
  %v5734 = vmax.f32 %v5728, %v5731
  %v5735 = vmax.f32 %v5729, %v5732
  %v5739 = vcombine.high %v5733, %v5733
  %v5741 = vunpack.c.l.s4 1966171168
  %v5742 = vunpack.c.0.s8 %v5741
  %v5743 = vlaneseq
  %v5744 = vshrl.u32 %v5743, 7
  %v5745 = vsub.s32 %v5742, %v5744
  %v5746 = vrot.slane %v5733, %v5745
  %v5748 = vunpack.c.l.s4 1966171168
  %v5749 = vunpack.c.0.s8 %v5748
  %v5750 = vlaneseq
  %v5751 = vshrl.u32 %v5750, 7
  %v5752 = vsub.s32 %v5749, %v5751
  %v5753 = vrot.slane %v5739, %v5752
  %v5754 = vcombine.high %v5746, %v5746
  %v5755 = vcombine.high %v5753, %v5753
  %v5757 = vunpack.c.l.s4 1966171168
  %v5758 = vunpack.c.0.s8 %v5757
  %v5759 = vlaneseq
  %v5760 = vshrl.u32 %v5759, 7
  %v5761 = vsub.s32 %v5758, %v5760
  %v5762 = vrot.slane %v5746, %v5761
  %v5764 = vunpack.c.l.s4 1966171168
  %v5765 = vunpack.c.0.s8 %v5764
  %v5766 = vlaneseq
  %v5767 = vshrl.u32 %v5766, 7
  %v5768 = vsub.s32 %v5765, %v5767
  %v5769 = vrot.slane %v5753, %v5768
  %v5771 = vunpack.c.l.s4 1966171168
  %v5772 = vunpack.c.0.s8 %v5771
  %v5773 = vlaneseq
  %v5774 = vshrl.u32 %v5773, 7
  %v5775 = vsub.s32 %v5772, %v5774
  %v5776 = vrot.slane %v5754, %v5775
  %v5778 = vunpack.c.l.s4 1966171168
  %v5779 = vunpack.c.0.s8 %v5778
  %v5780 = vlaneseq
  %v5781 = vshrl.u32 %v5780, 7
  %v5782 = vsub.s32 %v5779, %v5781
  %v5783 = vrot.slane %v5755, %v5782
  %v5784 = vcombine.high %v5762, %v5762
  %v5785 = vcombine.high %v5769, %v5769
  %v5786 = vcombine.high %v5776, %v5776
  %v5787 = vcombine.high %v5783, %v5783
  %v5788 = vcombine.high %v5734, %v5734
  %v5790 = vunpack.c.l.s4 1966171168
  %v5791 = vunpack.c.0.s8 %v5790
  %v5792 = vlaneseq
  %v5793 = vshrl.u32 %v5792, 7
  %v5794 = vsub.s32 %v5791, %v5793
  %v5795 = vrot.slane %v5734, %v5794
  %v5797 = vunpack.c.l.s4 1966171168
  %v5798 = vunpack.c.0.s8 %v5797
  %v5799 = vlaneseq
  %v5800 = vshrl.u32 %v5799, 7
  %v5801 = vsub.s32 %v5798, %v5800
  %v5802 = vrot.slane %v5788, %v5801
  %v5803 = vcombine.high %v5795, %v5795
  %v5804 = vcombine.high %v5802, %v5802
  %v5806 = vunpack.c.l.s4 1966171168
  %v5807 = vunpack.c.0.s8 %v5806
  %v5808 = vlaneseq
  %v5809 = vshrl.u32 %v5808, 7
  %v5810 = vsub.s32 %v5807, %v5809
  %v5811 = vrot.slane %v5795, %v5810
  %v5813 = vunpack.c.l.s4 1966171168
  %v5814 = vunpack.c.0.s8 %v5813
  %v5815 = vlaneseq
  %v5816 = vshrl.u32 %v5815, 7
  %v5817 = vsub.s32 %v5814, %v5816
  %v5818 = vrot.slane %v5802, %v5817
  %v5820 = vunpack.c.l.s4 1966171168
  %v5821 = vunpack.c.0.s8 %v5820
  %v5822 = vlaneseq
  %v5823 = vshrl.u32 %v5822, 7
  %v5824 = vsub.s32 %v5821, %v5823
  %v5825 = vrot.slane %v5803, %v5824
  %v5827 = vunpack.c.l.s4 1966171168
  %v5828 = vunpack.c.0.s8 %v5827
  %v5829 = vlaneseq
  %v5830 = vshrl.u32 %v5829, 7
  %v5831 = vsub.s32 %v5828, %v5830
  %v5832 = vrot.slane %v5804, %v5831
  %v5833 = vcombine.high %v5811, %v5811
  %v5834 = vcombine.high %v5818, %v5818
  %v5835 = vcombine.high %v5825, %v5825
  %v5836 = vcombine.high %v5832, %v5832
  %v5838 = vunpack.c.l.s4 1966171168
  %v5839 = vunpack.c.0.s8 %v5838
  %v5840 = vlaneseq
  %v5841 = vshrl.u32 %v5840, 7
  %v5842 = vsub.s32 %v5839, %v5841
  %v5843 = vrot.slane %v5735, %v5842
  %v5844 = vcombine.high %v5843, %v5843
  %v5846 = vunpack.c.l.s4 1966171168
  %v5847 = vunpack.c.0.s8 %v5846
  %v5848 = vlaneseq
  %v5849 = vshrl.u32 %v5848, 7
  %v5850 = vsub.s32 %v5847, %v5849
  %v5851 = vrot.slane %v5843, %v5850
  %v5853 = vunpack.c.l.s4 1966171168
  %v5854 = vunpack.c.0.s8 %v5853
  %v5855 = vlaneseq
  %v5856 = vshrl.u32 %v5855, 7
  %v5857 = vsub.s32 %v5854, %v5856
  %v5858 = vrot.slane %v5844, %v5857
  %v5859 = vcombine.low %v5762, %v5776
  %v5861 = vunpack.c.l.s4 1966171168
  %v5862 = vunpack.c.0.s8 %v5861
  %v5863 = vlaneseq
  %v5864 = vshrl.u32 %v5863, 7
  %v5865 = vsub.s32 %v5862, %v5864
  %v5866 = vrot.slane %v5859, %v5865
  %v5868 = vunpack.c.l.s4 1966171168
  %v5869 = vunpack.c.0.s8 %v5868
  %v5870 = vlaneseq
  %v5871 = vshrl.u32 %v5870, 7
  %v5872 = vsub.s32 %v5869, %v5871
  %v5873 = vrot.slane %v5784, %v5872
  %v5874 = vcombine.low %v5866, %v5873
  %v5876 = vunpack.c.l.s4 1966171168
  %v5877 = vunpack.c.0.s8 %v5876
  %v5878 = vlaneseq
  %v5879 = vshrl.u32 %v5878, 7
  %v5880 = vsub.s32 %v5877, %v5879
  %v5881 = vrot.slane %v5874, %v5880
  %v5882 = vcombine.low %v5786, %v5769
  %v5884 = vunpack.c.l.s4 1966171168
  %v5885 = vunpack.c.0.s8 %v5884
  %v5886 = vlaneseq
  %v5887 = vshrl.u32 %v5886, 7
  %v5888 = vsub.s32 %v5885, %v5887
  %v5889 = vrot.slane %v5882, %v5888
  %v5891 = vunpack.c.l.s4 1966171168
  %v5892 = vunpack.c.0.s8 %v5891
  %v5893 = vlaneseq
  %v5894 = vshrl.u32 %v5893, 7
  %v5895 = vsub.s32 %v5892, %v5894
  %v5896 = vrot.slane %v5783, %v5895
  %v5897 = vcombine.low %v5889, %v5896
  %v5899 = vunpack.c.l.s4 1966171168
  %v5900 = vunpack.c.0.s8 %v5899
  %v5901 = vlaneseq
  %v5902 = vshrl.u32 %v5901, 7
  %v5903 = vsub.s32 %v5900, %v5902
  %v5904 = vrot.slane %v5897, %v5903
  %v5905 = vcombine.low %v5785, %v5787
  %v5907 = vunpack.c.l.s4 1966171168
  %v5908 = vunpack.c.0.s8 %v5907
  %v5909 = vlaneseq
  %v5910 = vshrl.u32 %v5909, 7
  %v5911 = vsub.s32 %v5908, %v5910
  %v5912 = vrot.slane %v5905, %v5911
  %v5914 = vunpack.c.l.s4 1966171168
  %v5915 = vunpack.c.0.s8 %v5914
  %v5916 = vlaneseq
  %v5917 = vshrl.u32 %v5916, 7
  %v5918 = vsub.s32 %v5915, %v5917
  %v5919 = vrot.slane %v5811, %v5918
  %v5920 = vcombine.low %v5912, %v5919
  %v5922 = vunpack.c.l.s4 1966171168
  %v5923 = vunpack.c.0.s8 %v5922
  %v5924 = vlaneseq
  %v5925 = vshrl.u32 %v5924, 7
  %v5926 = vsub.s32 %v5923, %v5925
  %v5927 = vrot.slane %v5920, %v5926
  %v5928 = vcombine.low %v5825, %v5833
  %v5930 = vunpack.c.l.s4 1966171168
  %v5931 = vunpack.c.0.s8 %v5930
  %v5932 = vlaneseq
  %v5933 = vshrl.u32 %v5932, 7
  %v5934 = vsub.s32 %v5931, %v5933
  %v5935 = vrot.slane %v5928, %v5934
  %v5937 = vunpack.c.l.s4 1966171168
  %v5938 = vunpack.c.0.s8 %v5937
  %v5939 = vlaneseq
  %v5940 = vshrl.u32 %v5939, 7
  %v5941 = vsub.s32 %v5938, %v5940
  %v5942 = vrot.slane %v5835, %v5941
  %v5943 = vcombine.low %v5935, %v5942
  %v5945 = vunpack.c.l.s4 1966171168
  %v5946 = vunpack.c.0.s8 %v5945
  %v5947 = vlaneseq
  %v5948 = vshrl.u32 %v5947, 7
  %v5949 = vsub.s32 %v5946, %v5948
  %v5950 = vrot.slane %v5943, %v5949
  %v5951 = vcombine.low %v5818, %v5832
  %v5953 = vunpack.c.l.s4 1966171168
  %v5954 = vunpack.c.0.s8 %v5953
  %v5955 = vlaneseq
  %v5956 = vshrl.u32 %v5955, 7
  %v5957 = vsub.s32 %v5954, %v5956
  %v5958 = vrot.slane %v5951, %v5957
  %v5960 = vunpack.c.l.s4 1966171168
  %v5961 = vunpack.c.0.s8 %v5960
  %v5962 = vlaneseq
  %v5963 = vshrl.u32 %v5962, 7
  %v5964 = vsub.s32 %v5961, %v5963
  %v5965 = vrot.slane %v5834, %v5964
  %v5966 = vcombine.low %v5958, %v5965
  %v5968 = vunpack.c.l.s4 1966171168
  %v5969 = vunpack.c.0.s8 %v5968
  %v5970 = vlaneseq
  %v5971 = vshrl.u32 %v5970, 7
  %v5972 = vsub.s32 %v5969, %v5971
  %v5973 = vrot.slane %v5966, %v5972
  %v5974 = vcombine.low %v5836, %v5851
  %v5976 = vunpack.c.l.s4 1966171168
  %v5977 = vunpack.c.0.s8 %v5976
  %v5978 = vlaneseq
  %v5979 = vshrl.u32 %v5978, 7
  %v5980 = vsub.s32 %v5977, %v5979
  %v5981 = vrot.slane %v5974, %v5980
  %v5983 = vunpack.c.l.s4 1966171168
  %v5984 = vunpack.c.0.s8 %v5983
  %v5985 = vlaneseq
  %v5986 = vshrl.u32 %v5985, 7
  %v5987 = vsub.s32 %v5984, %v5986
  %v5988 = vrot.slane %v5858, %v5987
  %v5989 = vcombine.low %v5981, %v5988
  %v5991 = vunpack.c.l.s4 1966171168
  %v5992 = vunpack.c.0.s8 %v5991
  %v5993 = vlaneseq
  %v5994 = vshrl.u32 %v5993, 7
  %v5995 = vsub.s32 %v5992, %v5994
  %v5996 = vrot.slane %v5989, %v5995
  %v5997 = vrot.slane %v5881, 7
  %v5998 = vrot.slane %v5904, 7
  %v5999 = vrot.slane %v5927, 7
  %v6000 = vrot.slane %v5950, 7
  %v6001 = vrot.slane %v5973, 7
  %v6002 = vrot.slane %v5996, 7
  %v6009 = vsel %vm847, 0.0, %v5997
  %v6010 = vsel %vm847, 0.0, %v5998
  %v6011 = vsel %vm847, 0.0, %v5999
  %v6012 = vsel %vm847, 0.0, %v6000
  %v6013 = vsel %vm847, 0.0, %v6001
  %v6014 = vsel %vm847, 0.0, %v6002
  %v6015 = vsel %vm3317, %v852, 0.0
  %v6016 = vsel %vm3317, %v6009, 0.0
  %v6017 = vsel %vm3317, %v6010, 0.0
  %v6018 = vsel %vm3317, %v6011, 0.0
  %v6019 = vsel %vm3317, %v6012, 0.0
  %v6020 = vsel %vm3317, %v6013, 0.0
  %v6021 = vsel %vm3317, %v6014, 0.0
  %v6022 = vld [vmem:[%s15] sm:$0xff]
  %v6023 = vld [vmem:[%s15 + $0x8] sm:$0xff]
  %v6024 = vlaneseq
  %v6025 = vshrl.u32 %v6024, 7
  %v6026 = vsub.s32 0, %v6025
  %v6027 = vrot.slane %v6022, %v6026
  %v6028 = vmul.f32 %v6015, %v6027
  %v6029 = vmul.f32 %v6016, %v6027
  %v6030 = vmul.f32 %v6019, %v6027
  %v6031 = vadd.f32 %v6028, 0.0
  %v6032 = vadd.f32 %v6029, 0.0
  %v6033 = vadd.f32 %v6030, 0.0
  %v6034 = vlaneseq
  %v6035 = vshrl.u32 %v6034, 7
  %v6036 = vsub.s32 1, %v6035
  %v6037 = vrot.slane %v6022, %v6036
  %v6038 = vmul.f32 %v6015, %v6037
  %v6039 = vmul.f32 %v6016, %v6037
  %v6040 = vmul.f32 %v6019, %v6037
  %v6044 = vrot.slane %v6038, 1
  %v6045 = vrot.slane %v6039, 1
  %v6046 = vrot.slane %v6040, 1
  %v6050 = vadd.f32 %v6031, %v6044
  %v6051 = vadd.f32 %v6032, %v6045
  %v6052 = vadd.f32 %v6033, %v6046
  %v6053 = vlaneseq
  %v6054 = vshrl.u32 %v6053, 7
  %v6055 = vsub.s32 2, %v6054
  %v6056 = vrot.slane %v6022, %v6055
  %v6057 = vmul.f32 %v6015, %v6056
  %v6058 = vmul.f32 %v6016, %v6056
  %v6059 = vmul.f32 %v6019, %v6056
  %v6063 = vrot.slane %v6057, 2
  %v6064 = vrot.slane %v6058, 2
  %v6065 = vrot.slane %v6059, 2
  %v6069 = vadd.f32 %v6050, %v6063
  %v6070 = vadd.f32 %v6051, %v6064
  %v6071 = vadd.f32 %v6052, %v6065
  %v6072 = vlaneseq
  %v6073 = vshrl.u32 %v6072, 7
  %v6074 = vsub.s32 3, %v6073
  %v6075 = vrot.slane %v6022, %v6074
  %v6076 = vmul.f32 %v6015, %v6075
  %v6077 = vmul.f32 %v6016, %v6075
  %v6078 = vmul.f32 %v6019, %v6075
  %v6082 = vrot.slane %v6076, 3
  %v6083 = vrot.slane %v6077, 3
  %v6084 = vrot.slane %v6078, 3
  %v6088 = vadd.f32 %v6069, %v6082
  %v6089 = vadd.f32 %v6070, %v6083
  %v6090 = vadd.f32 %v6071, %v6084
  %v6091 = vlaneseq
  %v6092 = vshrl.u32 %v6091, 7
  %v6093 = vsub.s32 4, %v6092
  %v6094 = vrot.slane %v6022, %v6093
  %v6095 = vmul.f32 %v6016, %v6094
  %v6096 = vmul.f32 %v6017, %v6094
  %v6097 = vmul.f32 %v6019, %v6094
  %v6098 = vmul.f32 %v6020, %v6094
  %v6099 = vadd.f32 %v6088, %v6095
  %v6100 = vadd.f32 %v6089, %v6096
  %v6101 = vadd.f32 %v6088, %v6097
  %v6102 = vadd.f32 %v6090, %v6098
  %v6103 = vlaneseq
  %v6104 = vshrl.u32 %v6103, 7
  %v6105 = vsub.s32 5, %v6104
  %v6106 = vrot.slane %v6022, %v6105
  %v6107 = vmul.f32 %v6016, %v6106
  %v6108 = vmul.f32 %v6017, %v6106
  %v6109 = vmul.f32 %v6019, %v6106
  %v6110 = vmul.f32 %v6020, %v6106
  %v6115 = vrot.slane %v6107, 1
  %v6116 = vrot.slane %v6108, 1
  %v6117 = vrot.slane %v6109, 1
  %v6118 = vrot.slane %v6110, 1
  %v6123 = vadd.f32 %v6099, %v6115
  %v6124 = vadd.f32 %v6100, %v6116
  %v6125 = vadd.f32 %v6101, %v6117
  %v6126 = vadd.f32 %v6102, %v6118
  %v6127 = vlaneseq
  %v6128 = vshrl.u32 %v6127, 7
  %v6129 = vsub.s32 6, %v6128
  %v6130 = vrot.slane %v6022, %v6129
  %v6131 = vmul.f32 %v6016, %v6130
  %v6132 = vmul.f32 %v6017, %v6130
  %v6133 = vmul.f32 %v6019, %v6130
  %v6134 = vmul.f32 %v6020, %v6130
  %v6139 = vrot.slane %v6131, 2
  %v6140 = vrot.slane %v6132, 2
  %v6141 = vrot.slane %v6133, 2
  %v6142 = vrot.slane %v6134, 2
  %v6147 = vadd.f32 %v6123, %v6139
  %v6148 = vadd.f32 %v6124, %v6140
  %v6149 = vadd.f32 %v6125, %v6141
  %v6150 = vadd.f32 %v6126, %v6142
  %v6151 = vlaneseq
  %v6152 = vshrl.u32 %v6151, 7
  %v6153 = vsub.s32 7, %v6152
  %v6154 = vrot.slane %v6022, %v6153
  %v6155 = vmul.f32 %v6016, %v6154
  %v6156 = vmul.f32 %v6017, %v6154
  %v6157 = vmul.f32 %v6019, %v6154
  %v6158 = vmul.f32 %v6020, %v6154
  %v6163 = vrot.slane %v6155, 3
  %v6164 = vrot.slane %v6156, 3
  %v6165 = vrot.slane %v6157, 3
  %v6166 = vrot.slane %v6158, 3
  %v6171 = vadd.f32 %v6147, %v6163
  %v6172 = vadd.f32 %v6148, %v6164
  %v6173 = vadd.f32 %v6149, %v6165
  %v6174 = vadd.f32 %v6150, %v6166
  %v6175 = vlaneseq
  %v6176 = vshrl.u32 %v6175, 7
  %v6177 = vsub.s32 0, %v6176
  %v6178 = vrot.slane %v6023, %v6177
  %v6179 = vmul.f32 %v6017, %v6178
  %v6180 = vmul.f32 %v6018, %v6178
  %v6181 = vmul.f32 %v6020, %v6178
  %v6182 = vmul.f32 %v6021, %v6178
  %v6183 = vadd.f32 %v6171, %v6179
  %v6184 = vadd.f32 %v6172, %v6180
  %v6185 = vadd.f32 %v6173, %v6181
  %v6186 = vadd.f32 %v6174, %v6182
  %v6187 = vlaneseq
  %v6188 = vshrl.u32 %v6187, 7
  %v6189 = vsub.s32 1, %v6188
  %v6190 = vrot.slane %v6023, %v6189
  %v6191 = vmul.f32 %v6017, %v6190
  %v6192 = vmul.f32 %v6018, %v6190
  %v6193 = vmul.f32 %v6020, %v6190
  %v6194 = vmul.f32 %v6021, %v6190
  %v6199 = vrot.slane %v6191, 1
  %v6200 = vrot.slane %v6192, 1
  %v6201 = vrot.slane %v6193, 1
  %v6202 = vrot.slane %v6194, 1
  %v6207 = vadd.f32 %v6183, %v6199
  %v6208 = vadd.f32 %v6184, %v6200
  %v6209 = vadd.f32 %v6185, %v6201
  %v6210 = vadd.f32 %v6186, %v6202
  %v6211 = vlaneseq
  %v6212 = vshrl.u32 %v6211, 7
  %v6213 = vsub.s32 2, %v6212
  %v6214 = vrot.slane %v6023, %v6213
  %v6215 = vmul.f32 %v6017, %v6214
  %v6216 = vmul.f32 %v6018, %v6214
  %v6217 = vmul.f32 %v6020, %v6214
  %v6218 = vmul.f32 %v6021, %v6214
  %v6223 = vrot.slane %v6215, 2
  %v6224 = vrot.slane %v6216, 2
  %v6225 = vrot.slane %v6217, 2
  %v6226 = vrot.slane %v6218, 2
  %v6231 = vadd.f32 %v6207, %v6223
  %v6232 = vadd.f32 %v6208, %v6224
  %v6233 = vadd.f32 %v6209, %v6225
  %v6234 = vadd.f32 %v6210, %v6226
  %v6235 = vlaneseq
  %v6236 = vshrl.u32 %v6235, 7
  %v6237 = vsub.s32 3, %v6236
  %v6238 = vrot.slane %v6023, %v6237
  %v6239 = vmul.f32 %v6017, %v6238
  %v6240 = vmul.f32 %v6018, %v6238
  %v6241 = vmul.f32 %v6020, %v6238
  %v6242 = vmul.f32 %v6021, %v6238
  %v6247 = vrot.slane %v6239, 3
  %v6248 = vrot.slane %v6240, 3
  %v6249 = vrot.slane %v6241, 3
  %v6250 = vrot.slane %v6242, 3
  %v6255 = vadd.f32 %v6231, %v6247
  %v6256 = vadd.f32 %v6232, %v6248
  %v6257 = vadd.f32 %v6233, %v6249
  %v6258 = vadd.f32 %v6234, %v6250
  %v6259 = vlaneseq
  %v6260 = vshrl.u32 %v6259, 7
  %v6261 = vsub.s32 4, %v6260
  %v6262 = vrot.slane %v6023, %v6261
  %v6263 = vmul.f32 %v6018, %v6262
  %v6264 = vmul.f32 %v6015, %v6262
  %v6265 = vmul.f32 %v6021, %v6262
  %v6266 = vadd.f32 %v6255, %v6263
  %v6267 = vadd.f32 %v6256, %v6264
  %v6268 = vadd.f32 %v6257, %v6265
  %v6269 = vadd.f32 %v6258, %v6264
  %v6270 = vlaneseq
  %v6271 = vshrl.u32 %v6270, 7
  %v6272 = vsub.s32 5, %v6271
  %v6273 = vrot.slane %v6023, %v6272
  %v6274 = vmul.f32 %v6018, %v6273
  %v6275 = vmul.f32 %v6015, %v6273
  %v6276 = vmul.f32 %v6021, %v6273
  %v6280 = vrot.slane %v6274, 1
  %v6281 = vrot.slane %v6275, 1
  %v6282 = vrot.slane %v6276, 1
  %v6286 = vadd.f32 %v6266, %v6280
  %v6287 = vadd.f32 %v6267, %v6281
  %v6288 = vadd.f32 %v6268, %v6282
  %v6289 = vadd.f32 %v6269, %v6281
  %v6290 = vlaneseq
  %v6291 = vshrl.u32 %v6290, 7
  %v6292 = vsub.s32 6, %v6291
  %v6293 = vrot.slane %v6023, %v6292
  %v6294 = vmul.f32 %v6018, %v6293
  %v6295 = vmul.f32 %v6015, %v6293
  %v6296 = vmul.f32 %v6021, %v6293
  %v6300 = vrot.slane %v6294, 2
  %v6301 = vrot.slane %v6295, 2
  %v6302 = vrot.slane %v6296, 2
  %v6306 = vadd.f32 %v6286, %v6300
  %v6307 = vadd.f32 %v6287, %v6301
  %v6308 = vadd.f32 %v6288, %v6302
  %v6309 = vadd.f32 %v6289, %v6301
  %v6310 = vlaneseq
  %v6311 = vshrl.u32 %v6310, 7
  %v6312 = vsub.s32 7, %v6311
  %v6313 = vrot.slane %v6023, %v6312
  %v6314 = vmul.f32 %v6018, %v6313
  %v6315 = vmul.f32 %v6015, %v6313
  %v6316 = vmul.f32 %v6021, %v6313
  %v6320 = vrot.slane %v6314, 3
  %v6321 = vrot.slane %v6315, 3
  %v6322 = vrot.slane %v6316, 3
  %v6326 = vadd.f32 %v6306, %v6320
  %v6327 = vadd.f32 %v6307, %v6321
  %v6328 = vadd.f32 %v6308, %v6322
  %v6329 = vadd.f32 %v6309, %v6321
  %v6330 = vsel %vm5678, %v6326, 0.0
  %6331 = vadd.xlane.f32.xlu0 %v6330
  %v6332 = vpop.xlane.xlu0 %6331
  %v6333 = vsel %vm5678, %v6327, 0.0
  %6334 = vadd.xlane.f32.xlu0 %v6333
  %v6335 = vpop.xlane.xlu0 %6334
  %v6336 = vsel %vm5678, %v6328, 0.0
  %6337 = vadd.xlane.f32.xlu0 %v6336
  %v6338 = vpop.xlane.xlu0 %6337
  %v6339 = vsel %vm5678, %v6329, 0.0
  %6340 = vadd.xlane.f32.xlu0 %v6339
  %v6341 = vpop.xlane.xlu0 %6340
  %v6342 = vld [vmem:[#allocation2] sm:$0x1]
  %v6344 = vlaneseq
  %v6345 = vshrl.u32 %v6344, 7
  %v6346 = vsub.s32 0, %v6345
  %v6347 = vrot.slane %v6342, %v6346
  %v6349 = vadd.f32 %v6332, %v6347
  %v6350 = vadd.f32 %v6335, %v6347
  %v6351 = vadd.f32 %v6338, %v6347
  %v6352 = vadd.f32 %v6341, %v6347
  %v6353 = vsub.f32 0.0, %v6349
  %v6354 = vsub.f32 0.0, %v6350
  %v6355 = vsub.f32 0.0, %v6351
  %v6356 = vsub.f32 0.0, %v6352
  %v6357 = vmul.f32 %v6353, 1.442695
  %v6358 = vpow.pop %v6357
  %v6359 = vmul.f32 %v6354, 1.442695
  %v6360 = vpow.pop %v6359
  %v6361 = vmul.f32 %v6355, 1.442695
  %v6362 = vpow.pop %v6361
  %v6363 = vmul.f32 %v6356, 1.442695
  %v6364 = vpow.pop %v6363
  %v6365 = vadd.f32 %v6358, 1.0
  %v6366 = vadd.f32 %v6360, 1.0
  %v6367 = vadd.f32 %v6362, 1.0
  %v6368 = vadd.f32 %v6364, 1.0
  %v6369 = vrcp.pop %v6365
  %v6370 = vmul.f32 1.0, %v6369
  %v6371 = vrcp.pop %v6366
  %v6372 = vmul.f32 1.0, %v6371
  %v6373 = vrcp.pop %v6367
  %v6374 = vmul.f32 1.0, %v6373
  %v6375 = vrcp.pop %v6368
  %v6376 = vmul.f32 1.0, %v6375
  %vm6377 = vcmask 1024
  %6378 = vst.msk [vmem:[%s17] sm:$0x3] %vm6377, %v6370
  %6379 = vst.msk [vmem:[%s17 + $0x2] sm:$0x3] %vm6377, %v6372
  %6380 = vst.msk [vmem:[%s17 + $0x4] sm:$0x3] %vm6377, %v6374
  %6381 = vst.msk [vmem:[%s17 + $0x6] sm:$0x3] %vm6377, %v6376
  // Predicated region
  $region70: #{discriminator_forward.1} parent=0 // pred_check
    _
  $region71: #{discriminator_forward.1} parent=0 // pred_check_branch
    %6383 = sbr.rel (0) target = $region73
  $region72: #{discriminator_forward.1} parent=0 // pred_region
    _
  $region73: #{discriminator_forward.1} parent=0 // pred_fallthru
    _
  // Predicated region
  $region74: #{discriminator_forward.1} parent=0 // pred_check
    _
  $region75: #{discriminator_forward.1} parent=0 // pred_check_branch
    %6385 = sbr.rel (0) target = $region77
  $region76: #{discriminator_forward.1} parent=0 // pred_region
    _
  $region77: #{discriminator_forward.1} parent=0 // pred_fallthru
    _

</llo_original>
